<compile_context>
chip_gen: v7x
topology: tpu7x:2x2x1
jax: 0.10.0
libtpu: 0.0.40
codegen_flags: <defaults>
</compile_context>

<pallas_src>
import math
from functools import partial

import jax
import jax.numpy as jnp
import numpy as np
from jax import lax
from jax.experimental import pallas as pl
from jax.experimental.pallas import tpu as pltpu

# ----------------------------- config ---------------------------------------
VOCAB = 64
TYPE_VOCAB = 2
MAX_POS = 16
H = 32            # hidden size
NH = 4            # attention heads
DH = H // NH      # head dim
INTER = 64        # FFN intermediate size
LAYERS = 2
LN_EPS = 1e-12
B, S = 4, 8       # batch (must be even: scores.view(-1, 2)), seq len
P = B // 2        # number of query/doc pairs  (== grid size)
B_LOC = B // P    # sequences per grid step (one pair)
R = B_LOC * S     # token rows per grid step
MARGIN = 0.3

# packed H-width slab row offsets (per layer):  wq|wk|wv|wo|wo2 then 9 bias/LN rows
_R_WQ, _R_WK, _R_WV, _R_WO = 0, H, 2 * H, 3 * H
_R_WO2 = 4 * H
_R_BIAS = 4 * H + INTER          # rows: bq bk bv bo ln1g ln1b bo2 ln2g ln2b
P32_ROWS = _R_BIAS + 9           # 201
P64_ROWS = H + 1                 # wi (H rows) + bi (1 row)
OUT_LANES = 128                  # packed output slab width (one full vreg row)


# ----------------------------- kernel helpers --------------------------------
def _gelu(x):
    # TODO(synk): HF BERT uses exact erf-GELU; tanh approximation kept for robust Mosaic lowering.
    c = math.sqrt(2.0 / math.pi)
    return 0.5 * x * (1.0 + jnp.tanh(c * (x + 0.044715 * x * x * x)))


def _ln(x, g, b):
    mu = jnp.mean(x, axis=-1, keepdims=True)
    var = jnp.mean((x - mu) ** 2, axis=-1, keepdims=True)
    return (x - mu) * lax.rsqrt(var + LN_EPS) * g + b


# ----------------------------- fused kernel ----------------------------------
def fused_ranker_kernel(x_ref, mb_ref, p32_ref, p64_ref, misc_ref, out_ref,
                        *, training, margin):
    scale = 1.0 / math.sqrt(DH)

    # embedding LayerNorm (params from misc slab rows 0/1)
    x = _ln(x_ref[...], misc_ref[0:1, :], misc_ref[1:2, :])          # (R, H) f32
    mask_b = mb_ref[...]                                             # (B_LOC, 1, S)

    # Constant per-head lane masks (0/1), built once with iota+compare (VPU only)
    # and reused for every layer: isolating heads this way keeps all attention
    # einsums rank-3 and removes the per-head 8-lane extracts / lane concats.
    lane = lax.broadcasted_iota(jnp.int32, (1, 1, H), 2)
    head_masks = [((lane >= h * DH) & (lane < (h + 1) * DH)).astype(jnp.float32)
                  for h in range(NH)]

    for li in range(LAYERS):                                          # static unroll
        # --- unpack this layer's params from the resident slabs (bf16 weights) ---
        wq = p32_ref[li, _R_WQ:_R_WQ + H, :].astype(jnp.bfloat16)
        wk = p32_ref[li, _R_WK:_R_WK + H, :].astype(jnp.bfloat16)
        wv = p32_ref[li, _R_WV:_R_WV + H, :].astype(jnp.bfloat16)
        wo = p32_ref[li, _R_WO:_R_WO + H, :].astype(jnp.bfloat16)
        wo2 = p32_ref[li, _R_WO2:_R_WO2 + INTER, :].astype(jnp.bfloat16)
        bq = p32_ref[li, _R_BIAS + 0:_R_BIAS + 1, :]
        bk = p32_ref[li, _R_BIAS + 1:_R_BIAS + 2, :]
        bv = p32_ref[li, _R_BIAS + 2:_R_BIAS + 3, :]
        bo = p32_ref[li, _R_BIAS + 3:_R_BIAS + 4, :]
        ln1g = p32_ref[li, _R_BIAS + 4:_R_BIAS + 5, :]
        ln1b = p32_ref[li, _R_BIAS + 5:_R_BIAS + 6, :]
        bo2 = p32_ref[li, _R_BIAS + 6:_R_BIAS + 7, :]
        ln2g = p32_ref[li, _R_BIAS + 7:_R_BIAS + 8, :]
        ln2b = p32_ref[li, _R_BIAS + 8:_R_BIAS + 9, :]
        wi = p64_ref[li, 0:H, :].astype(jnp.bfloat16)
        bi = p64_ref[li, H:H + 1, :]

        # --- Q/K/V projections: bf16 operands, f32 accumulation ---
        xb = x.astype(jnp.bfloat16)
        q = (jnp.dot(xb, wq, preferred_element_type=jnp.float32) + bq).reshape(B_LOC, S, H)
        k = (jnp.dot(xb, wk, preferred_element_type=jnp.float32) + bk).reshape(B_LOC, S, H)
        v = (jnp.dot(xb, wv, preferred_element_type=jnp.float32) + bv).reshape(B_LOC, S, H)
        kb = k.astype(jnp.bfloat16)

        # --- all-head attention: head isolation via lane masks, rank-3 einsums ---
        ctx = jnp.zeros((B_LOC, S, H), jnp.float32)
        for h in range(NH):
            qh = (q * head_masks[h]).astype(jnp.bfloat16)
            vh = (v * head_masks[h]).astype(jnp.bfloat16)
            s_h = jnp.einsum("bqc,bkc->bqk", qh, kb,
                             preferred_element_type=jnp.float32) * scale + mask_b
            s_h = s_h - jnp.max(s_h, axis=-1, keepdims=True)
            e = jnp.exp(s_h)
            p = e * pl.reciprocal(jnp.sum(e, axis=-1, keepdims=True), approx=True)
            # contribution lands only in head h's lanes -> accumulation == concat
            ctx = ctx + jnp.einsum("bqk,bkc->bqc", p.astype(jnp.bfloat16), vh,
                                   preferred_element_type=jnp.float32)

        attn_out = jnp.dot(ctx.reshape(R, H).astype(jnp.bfloat16), wo,
                           preferred_element_type=jnp.float32) + bo
        x = _ln(attn_out + x, ln1g, ln1b)

        inter = _gelu(jnp.dot(x.astype(jnp.bfloat16), wi,
                              preferred_element_type=jnp.float32) + bi)
        ffn = jnp.dot(inter.astype(jnp.bfloat16), wo2,
                      preferred_element_type=jnp.float32) + bo2
        x = _ln(ffn + x, ln2g, ln2b)

    # --- classifier tail: direct CLS row slices (tokens 0 and S of this pair) ---
    # TODO(synk): nn.Dropout(0.1) on the CLS vector is stochastic in train mode; identity here.
    clsw = misc_ref[2:3, :]                                  # (1, H)
    clsb = misc_ref[3:4, 0:1]                                # (1, 1)
    s0 = jnp.sum(x[0:1, :] * clsw, axis=-1, keepdims=True) + clsb
    s1 = jnp.sum(x[S:S + 1, :] * clsw, axis=-1, keepdims=True) + clsb
    sc = jnp.concatenate([s0, s1], axis=-1)                  # (1, 2) raw scores for this pair

    if training:
        m = jnp.max(sc, axis=-1, keepdims=True)
        e = jnp.exp(sc - m)
        probs = e / jnp.sum(e, axis=-1, keepdims=True)
        pos = 1.0 - probs[:, 0:1]
        neg = jnp.maximum(probs[:, 1:2] - margin, 0.0)
        loss_pair = 0.5 * (pos + neg)                        # mean over the 2 elems of this pair
        tail = jnp.concatenate([sc, probs, loss_pair], axis=-1)   # (1, 5)
        ncol = 5
    else:
        tail = sc                                            # eval: scores only
        ncol = 2

    # single lane-aligned output slab: one unmasked block writeback per grid step
    out_ref[...] = jnp.zeros_like(out_ref)
    out_ref[0:1, 0:1, 0:ncol] = tail.reshape(1, 1, ncol)


# ----------------------------- pallas_call wrapper ----------------------------
def _fused_forward_call(x_emb, mask_bias, packed, training):
    kernel = partial(fused_ranker_kernel, training=training, margin=MARGIN)
    return pl.pallas_call(
        kernel,
        out_shape=jax.ShapeDtypeStruct((P, 8, OUT_LANES), jnp.float32),
        grid=(P,),
        in_specs=[
            pl.BlockSpec((R, H), lambda i: (i, 0)),                       # pair i's token rows
            pl.BlockSpec((B_LOC, 1, S), lambda i: (i, 0, 0)),             # pair i's mask bias
            pl.BlockSpec((LAYERS, P32_ROWS, H), lambda i: (0, 0, 0)),     # resident param slab
            pl.BlockSpec((LAYERS, P64_ROWS, INTER), lambda i: (0, 0, 0)), # resident FFN-in slab
            pl.BlockSpec((4, H), lambda i: (0, 0)),                       # resident misc slab
        ],
        out_specs=pl.BlockSpec((1, 8, OUT_LANES), lambda i: (i, 0, 0)),
        compiler_params=pltpu.CompilerParams(dimension_semantics=("parallel",)),
    )(x_emb, mask_bias, packed["p32"], packed["p64"], packed["misc"])


# ----------------------------- model glue ------------------------------------
def init_params(key):
    k_top = jax.random.split(key, 6 + LAYERS)

    def nrm(k, shape, scale=0.02):
        return (scale * jax.random.normal(k, shape)).astype(jnp.float32)

    names = ("wqkv", "bqkv", "wo", "bo", "ln1_g", "ln1_b",
             "wi", "bi", "wo2", "bo2", "ln2_g", "ln2_b")
    layer = {n: [] for n in names}
    for li in range(LAYERS):
        lk = jax.random.split(k_top[6 + li], 14)
        layer["wqkv"].append(jnp.concatenate(
            [nrm(lk[0], (H, H)), nrm(lk[1], (H, H)), nrm(lk[2], (H, H))], axis=1))
        layer["bqkv"].append(nrm(lk[3], (1, 3 * H)))
        layer["wo"].append(nrm(lk[4], (H, H)))
        layer["bo"].append(nrm(lk[5], (1, H)))
        layer["ln1_g"].append(1.0 + nrm(lk[6], (1, H)))
        layer["ln1_b"].append(nrm(lk[7], (1, H)))
        layer["wi"].append(nrm(lk[8], (H, INTER)))
        layer["bi"].append(nrm(lk[9], (1, INTER)))
        layer["wo2"].append(nrm(lk[10], (INTER, H)))
        layer["bo2"].append(nrm(lk[11], (1, H)))
        layer["ln2_g"].append(1.0 + nrm(lk[12], (1, H)))
        layer["ln2_b"].append(nrm(lk[13], (1, H)))

    cw_k, cb_k = jax.random.split(k_top[5])
    params = dict(
        word_emb=nrm(k_top[0], (VOCAB, H)),
        pos_emb=nrm(k_top[1], (MAX_POS, H)),
        type_emb=nrm(k_top[2], (TYPE_VOCAB, H)),
        emb_ln_g=1.0 + nrm(k_top[3], (1, H)),
        emb_ln_b=nrm(k_top[4], (1, H)),
        cls_w=nrm(cw_k, (1, H)),
        cls_b=nrm(cb_k, (1, 1)),
        **{n: jnp.stack(v) for n, v in layer.items()},
    )
    return params


def pack_params(params):
    """Pack per-layer parameters into a few VMEM-friendly slabs (done once at init)."""
    p32_list, p64_list = [], []
    for li in range(LAYERS):
        wqkv, bqkv = params["wqkv"][li], params["bqkv"][li]
        p32_list.append(jnp.concatenate([
            wqkv[:, 0:H], wqkv[:, H:2 * H], wqkv[:, 2 * H:3 * H],     # wq wk wv
            params["wo"][li], params["wo2"][li],                      # wo wo2
            bqkv[:, 0:H], bqkv[:, H:2 * H], bqkv[:, 2 * H:3 * H],     # bq bk bv
            params["bo"][li], params["ln1_g"][li], params["ln1_b"][li],
            params["bo2"][li], params["ln2_g"][li], params["ln2_b"][li]], axis=0))
        p64_list.append(jnp.concatenate([params["wi"][li], params["bi"][li]], axis=0))
    misc = jnp.concatenate([params["emb_ln_g"], params["emb_ln_b"], params["cls_w"],
                            jnp.broadcast_to(params["cls_b"], (1, H))], axis=0)
    return dict(word_emb=params["word_emb"], pos_emb=params["pos_emb"],
                type_emb=params["type_emb"],
                p32=jnp.stack(p32_list), p64=jnp.stack(p64_list), misc=misc)


@partial(jax.jit, static_argnames=("training",))
def vanilla_bert_ranker_forward(packed, input_ids, attention_mask, token_type_ids,
                                training=False):
    """Returns OutputTuple-like (loss, scores)."""
    Bb, Ss = input_ids.shape
    # embedding gathers + mask bias are plain-JAX glue, computed once per call
    x_emb = (jnp.take(packed["word_emb"], input_ids.reshape(-1), axis=0)
             + jnp.broadcast_to(packed["pos_emb"][:Ss][None], (Bb, Ss, H)).reshape(Bb * Ss, H)
             + jnp.take(packed["type_emb"], token_type_ids.reshape(-1), axis=0))
    mask_bias = ((1.0 - attention_mask.astype(jnp.float32)) * -10000.0).reshape(Bb, 1, Ss)

    out = _fused_forward_call(x_emb, mask_bias, packed, training)     # (P, 8, 128)
    scores = out[:, 0, 0:2]
    if not training:
        return None, scores
    probs = out[:, 0, 2:4]
    loss = jnp.mean(out[:, 0, 4])
    return loss, probs


# ----------------------------- pure-JAX reference -----------------------------
def _ref_ln(x, g, b):
    mu = x.mean(-1, keepdims=True)
    var = ((x - mu) ** 2).mean(-1, keepdims=True)
    return (x - mu) * lax.rsqrt(var + LN_EPS) * g + b


def reference_forward(params, input_ids, attention_mask, token_type_ids, training=False):
    Bb, Ss = input_ids.shape
    mask_bias = (1.0 - attention_mask.astype(jnp.float32))[:, None, None, :] * -10000.0
    x = (jnp.take(params["word_emb"], input_ids, axis=0)
         + params["pos_emb"][:Ss][None]
         + jnp.take(params["type_emb"], token_type_ids, axis=0))
    x = _ref_ln(x, params["emb_ln_g"][0], params["emb_ln_b"][0])
    for li in range(LAYERS):
        wqkv = params["wqkv"][li]
        bqkv = params["bqkv"][li][0]

        def split_heads(t):
            return t.reshape(Bb, Ss, NH, DH).transpose(0, 2, 1, 3)

        q = split_heads(x @ wqkv[:, 0:H] + bqkv[0:H])
        k = split_heads(x @ wqkv[:, H:2 * H] + bqkv[H:2 * H])
        v = split_heads(x @ wqkv[:, 2 * H:3 * H] + bqkv[2 * H:3 * H])
        s = jnp.einsum("bhqd,bhkd->bhqk", q, k) / math.sqrt(DH) + mask_bias
        a = jax.nn.softmax(s, axis=-1)
        ctx = jnp.einsum("bhqk,bhkd->bhqd", a, v).transpose(0, 2, 1, 3).reshape(Bb, Ss, H)
        x = _ref_ln(ctx @ params["wo"][li] + params["bo"][li][0] + x,
                    params["ln1_g"][li][0], params["ln1_b"][li][0])
        ff = (_gelu(x @ params["wi"][li] + params["bi"][li][0]) @ params["wo2"][li]
              + params["bo2"][li][0])
        x = _ref_ln(ff + x, params["ln2_g"][li][0], params["ln2_b"][li][0])
    cls = x[:, 0, :]
    scores = (cls @ params["cls_w"].T + params["cls_b"][0]).reshape(-1, 2)
    if not training:
        return None, scores
    probs = jax.nn.softmax(scores, axis=1)
    loss_el = jnp.concatenate(
        [1.0 - probs[:, :1], jnp.maximum(probs[:, 1:] - MARGIN, 0.0)], axis=1)
    return jnp.mean(loss_el), probs


# ----------------------------- main -------------------------------------------
if __name__ == "__main__":
    key = jax.random.PRNGKey(0)
    pkey, ikey = jax.random.split(key)
    params = init_params(pkey)
    packed = pack_params(params)

    input_ids = jax.random.randint(ikey, (B, S), 0, VOCAB, dtype=jnp.int32)
    lengths = jnp.array([8, 6, 8, 5], jnp.int32)
    attention_mask = (jnp.arange(S)[None, :] < lengths[:, None]).astype(jnp.int32)
    token_type_ids = jnp.broadcast_to((jnp.arange(S) >= S // 2).astype(jnp.int32), (B, S))

    # eval mode (like the PyTorch module in .eval(): loss=None, raw scores)
    loss_e, scores_e = vanilla_bert_ranker_forward(
        packed, input_ids, attention_mask, token_type_ids, training=False)
    # training mode (softmax scores + pairwise hinge loss; dropout as identity)
    loss_t, scores_t = vanilla_bert_ranker_forward(
        packed, input_ids, attention_mask, token_type_ids, training=True)
    jax.block_until_ready((scores_e, scores_t, loss_t))

    # numeric check against an independent pure-JAX f32 reference
    # (kernel matmuls use bf16 operands with f32 accumulation -> 1e-2 tolerance)
    _, ref_scores_e = reference_forward(params, input_ids, attention_mask,
                                        token_type_ids, training=False)
    ref_loss_t, ref_scores_t = reference_forward(params, input_ids, attention_mask,
                                                 token_type_ids, training=True)
    np.testing.assert_allclose(np.asarray(scores_e), np.asarray(ref_scores_e),
                               rtol=1e-2, atol=1e-2)
    np.testing.assert_allclose(np.asarray(scores_t), np.asarray(ref_scores_t),
                               rtol=1e-2, atol=1e-2)
    np.testing.assert_allclose(np.asarray(loss_t), np.asarray(ref_loss_t),
                               rtol=1e-2, atol=1e-2)

    print("KERNEL_OK")
</pallas_src>

<mosaic_0001>
module attributes {stable_mosaic.version = 11 : i64} {
  func.func @fused_ranker_kernel(%arg0: i32, %arg1: memref<16x32xf32, #tpu.memory_space<vmem>>, %arg2: memref<2x1x8xf32, #tpu.memory_space<vmem>>, %arg3: memref<2x201x32xf32, #tpu.memory_space<vmem>>, %arg4: memref<2x33x64xf32, #tpu.memory_space<vmem>>, %arg5: memref<4x32xf32, #tpu.memory_space<vmem>>, %arg6: memref<1x8x128xf32, #tpu.memory_space<vmem>>) attributes {dimension_semantics = [#tpu.dimension_semantics<parallel>], iteration_bounds = array<i64: 2>, scalar_prefetch = 0 : i64, scratch_operands = 0 : i64, tpu.core_type = #tpu.core_type<tc>, window_params = [{transform_indices = @transform_0, window_bounds = array<i64: 16, 32>}, {transform_indices = @transform_1, window_bounds = array<i64: 2, 1, 8>}, {pipeline_mode = #tpu.pipeline_mode<synchronous>, transform_indices = @transform_2, window_bounds = array<i64: 2, 201, 32>}, {pipeline_mode = #tpu.pipeline_mode<synchronous>, transform_indices = @transform_3, window_bounds = array<i64: 2, 33, 64>}, {pipeline_mode = #tpu.pipeline_mode<synchronous>, transform_indices = @transform_4, window_bounds = array<i64: 4, 32>}, {transform_indices = @transform_5, window_bounds = array<i64: 1, 8, 128>}]} {
    %c0 = arith.constant 0 : index
    %c0_0 = arith.constant 0 : index
    %0 = vector.load %arg1[%c0, %c0_0] : memref<16x32xf32, #tpu.memory_space<vmem>>, vector<16x32xf32>
    %c0_1 = arith.constant 0 : index
    %c0_2 = arith.constant 0 : index
    %1 = vector.load %arg5[%c0_1, %c0_2] : memref<4x32xf32, #tpu.memory_space<vmem>>, vector<1x32xf32>
    %c1 = arith.constant 1 : index
    %c0_3 = arith.constant 0 : index
    %2 = vector.load %arg5[%c1, %c0_3] : memref<4x32xf32, #tpu.memory_space<vmem>>, vector<1x32xf32>
    %cst = arith.constant dense<0.000000e+00> : vector<16xf32>
    %3 = vector.multi_reduction <add>, %0, %cst [1] : vector<16x32xf32> to vector<16xf32>
    %4 = vector.shape_cast %3 : vector<16xf32> to vector<16x1xf32>
    %cst_4 = arith.constant 3.200000e+01 : f32
    %5 = vector.broadcast %cst_4 : f32 to vector<16x1xf32>
    %6 = arith.divf %4, %5 : vector<16x1xf32>
    %7 = vector.broadcast %6 : vector<16x1xf32> to vector<16x32xf32>
    %8 = arith.subf %0, %7 : vector<16x32xf32>
    %9 = arith.mulf %8, %8 : vector<16x32xf32>
    %cst_5 = arith.constant dense<0.000000e+00> : vector<16xf32>
    %10 = vector.multi_reduction <add>, %9, %cst_5 [1] : vector<16x32xf32> to vector<16xf32>
    %11 = vector.shape_cast %10 : vector<16xf32> to vector<16x1xf32>
    %cst_6 = arith.constant 3.200000e+01 : f32
    %12 = vector.broadcast %cst_6 : f32 to vector<16x1xf32>
    %13 = arith.divf %11, %12 : vector<16x1xf32>
    %14 = vector.broadcast %6 : vector<16x1xf32> to vector<16x32xf32>
    %15 = arith.subf %0, %14 : vector<16x32xf32>
    %cst_7 = arith.constant 9.99999996E-13 : f32
    %16 = vector.broadcast %cst_7 : f32 to vector<16x1xf32>
    %17 = arith.addf %13, %16 : vector<16x1xf32>
    %18 = math.rsqrt %17 : vector<16x1xf32>
    %19 = vector.broadcast %18 : vector<16x1xf32> to vector<16x32xf32>
    %20 = arith.mulf %15, %19 : vector<16x32xf32>
    %21 = vector.broadcast %1 : vector<1x32xf32> to vector<16x32xf32>
    %22 = arith.mulf %20, %21 : vector<16x32xf32>
    %23 = vector.broadcast %2 : vector<1x32xf32> to vector<16x32xf32>
    %24 = arith.addf %22, %23 : vector<16x32xf32>
    %c0_8 = arith.constant 0 : index
    %c0_9 = arith.constant 0 : index
    %c0_10 = arith.constant 0 : index
    %25 = vector.load %arg2[%c0_8, %c0_9, %c0_10] : memref<2x1x8xf32, #tpu.memory_space<vmem>>, vector<2x1x8xf32>
    %26 = tpu.iota {dimensions = array<i32: 2>} : vector<1x1x32xi32>
    %c0_i32 = arith.constant 0 : i32
    %27 = vector.broadcast %c0_i32 : i32 to vector<1x1x32xi32>
    %28 = arith.cmpi sge, %26, %27 : vector<1x1x32xi32>
    %c8_i32 = arith.constant 8 : i32
    %29 = vector.broadcast %c8_i32 : i32 to vector<1x1x32xi32>
    %30 = arith.cmpi slt, %26, %29 : vector<1x1x32xi32>
    %31 = arith.andi %28, %30 : vector<1x1x32xi1>
    %32 = arith.extui %31 : vector<1x1x32xi1> to vector<1x1x32xi32>
    %33 = arith.sitofp %32 : vector<1x1x32xi32> to vector<1x1x32xf32>
    %c8_i32_11 = arith.constant 8 : i32
    %34 = vector.broadcast %c8_i32_11 : i32 to vector<1x1x32xi32>
    %35 = arith.cmpi sge, %26, %34 : vector<1x1x32xi32>
    %c16_i32 = arith.constant 16 : i32
    %36 = vector.broadcast %c16_i32 : i32 to vector<1x1x32xi32>
    %37 = arith.cmpi slt, %26, %36 : vector<1x1x32xi32>
    %38 = arith.andi %35, %37 : vector<1x1x32xi1>
    %39 = arith.extui %38 : vector<1x1x32xi1> to vector<1x1x32xi32>
    %40 = arith.sitofp %39 : vector<1x1x32xi32> to vector<1x1x32xf32>
    %c16_i32_12 = arith.constant 16 : i32
    %41 = vector.broadcast %c16_i32_12 : i32 to vector<1x1x32xi32>
    %42 = arith.cmpi sge, %26, %41 : vector<1x1x32xi32>
    %c24_i32 = arith.constant 24 : i32
    %43 = vector.broadcast %c24_i32 : i32 to vector<1x1x32xi32>
    %44 = arith.cmpi slt, %26, %43 : vector<1x1x32xi32>
    %45 = arith.andi %42, %44 : vector<1x1x32xi1>
    %46 = arith.extui %45 : vector<1x1x32xi1> to vector<1x1x32xi32>
    %47 = arith.sitofp %46 : vector<1x1x32xi32> to vector<1x1x32xf32>
    %c24_i32_13 = arith.constant 24 : i32
    %48 = vector.broadcast %c24_i32_13 : i32 to vector<1x1x32xi32>
    %49 = arith.cmpi sge, %26, %48 : vector<1x1x32xi32>
    %c32_i32 = arith.constant 32 : i32
    %50 = vector.broadcast %c32_i32 : i32 to vector<1x1x32xi32>
    %51 = arith.cmpi slt, %26, %50 : vector<1x1x32xi32>
    %52 = arith.andi %49, %51 : vector<1x1x32xi1>
    %53 = arith.extui %52 : vector<1x1x32xi1> to vector<1x1x32xi32>
    %54 = arith.sitofp %53 : vector<1x1x32xi32> to vector<1x1x32xf32>
    %c0_14 = arith.constant 0 : index
    %c0_15 = arith.constant 0 : index
    %c0_16 = arith.constant 0 : index
    %55 = vector.load %arg3[%c0_14, %c0_15, %c0_16] : memref<2x201x32xf32, #tpu.memory_space<vmem>>, vector<1x32x32xf32>
    %56 = vector.shape_cast %55 : vector<1x32x32xf32> to vector<32x32xf32>
    %57 = arith.truncf %56 : vector<32x32xf32> to vector<32x32xbf16>
    %c0_17 = arith.constant 0 : index
    %c32 = arith.constant 32 : index
    %c0_18 = arith.constant 0 : index
    %58 = vector.load %arg3[%c0_17, %c32, %c0_18] : memref<2x201x32xf32, #tpu.memory_space<vmem>>, vector<1x32x32xf32>
    %59 = vector.shape_cast %58 : vector<1x32x32xf32> to vector<32x32xf32>
    %60 = arith.truncf %59 : vector<32x32xf32> to vector<32x32xbf16>
    %c0_19 = arith.constant 0 : index
    %c64 = arith.constant 64 : index
    %c0_20 = arith.constant 0 : index
    %61 = vector.load %arg3[%c0_19, %c64, %c0_20] : memref<2x201x32xf32, #tpu.memory_space<vmem>>, vector<1x32x32xf32>
    %62 = vector.shape_cast %61 : vector<1x32x32xf32> to vector<32x32xf32>
    %63 = arith.truncf %62 : vector<32x32xf32> to vector<32x32xbf16>
    %c0_21 = arith.constant 0 : index
    %c96 = arith.constant 96 : index
    %c0_22 = arith.constant 0 : index
    %64 = vector.load %arg3[%c0_21, %c96, %c0_22] : memref<2x201x32xf32, #tpu.memory_space<vmem>>, vector<1x32x32xf32>
    %65 = vector.shape_cast %64 : vector<1x32x32xf32> to vector<32x32xf32>
    %66 = arith.truncf %65 : vector<32x32xf32> to vector<32x32xbf16>
    %c0_23 = arith.constant 0 : index
    %c128 = arith.constant 128 : index
    %c0_24 = arith.constant 0 : index
    %67 = vector.load %arg3[%c0_23, %c128, %c0_24] : memref<2x201x32xf32, #tpu.memory_space<vmem>>, vector<1x64x32xf32>
    %68 = vector.shape_cast %67 : vector<1x64x32xf32> to vector<64x32xf32>
    %69 = arith.truncf %68 : vector<64x32xf32> to vector<64x32xbf16>
    %c0_25 = arith.constant 0 : index
    %c192 = arith.constant 192 : index
    %c0_26 = arith.constant 0 : index
    %70 = vector.load %arg3[%c0_25, %c192, %c0_26] : memref<2x201x32xf32, #tpu.memory_space<vmem>>, vector<1x1x32xf32>
    %71 = vector.shape_cast %70 : vector<1x1x32xf32> to vector<1x32xf32>
    %c0_27 = arith.constant 0 : index
    %c193 = arith.constant 193 : index
    %c0_28 = arith.constant 0 : index
    %72 = vector.load %arg3[%c0_27, %c193, %c0_28] : memref<2x201x32xf32, #tpu.memory_space<vmem>>, vector<1x1x32xf32>
    %73 = vector.shape_cast %72 : vector<1x1x32xf32> to vector<1x32xf32>
    %c0_29 = arith.constant 0 : index
    %c194 = arith.constant 194 : index
    %c0_30 = arith.constant 0 : index
    %74 = vector.load %arg3[%c0_29, %c194, %c0_30] : memref<2x201x32xf32, #tpu.memory_space<vmem>>, vector<1x1x32xf32>
    %75 = vector.shape_cast %74 : vector<1x1x32xf32> to vector<1x32xf32>
    %c0_31 = arith.constant 0 : index
    %c195 = arith.constant 195 : index
    %c0_32 = arith.constant 0 : index
    %76 = vector.load %arg3[%c0_31, %c195, %c0_32] : memref<2x201x32xf32, #tpu.memory_space<vmem>>, vector<1x1x32xf32>
    %77 = vector.shape_cast %76 : vector<1x1x32xf32> to vector<1x32xf32>
    %c0_33 = arith.constant 0 : index
    %c196 = arith.constant 196 : index
    %c0_34 = arith.constant 0 : index
    %78 = vector.load %arg3[%c0_33, %c196, %c0_34] : memref<2x201x32xf32, #tpu.memory_space<vmem>>, vector<1x1x32xf32>
    %79 = vector.shape_cast %78 : vector<1x1x32xf32> to vector<1x32xf32>
    %c0_35 = arith.constant 0 : index
    %c197 = arith.constant 197 : index
    %c0_36 = arith.constant 0 : index
    %80 = vector.load %arg3[%c0_35, %c197, %c0_36] : memref<2x201x32xf32, #tpu.memory_space<vmem>>, vector<1x1x32xf32>
    %81 = vector.shape_cast %80 : vector<1x1x32xf32> to vector<1x32xf32>
    %c0_37 = arith.constant 0 : index
    %c198 = arith.constant 198 : index
    %c0_38 = arith.constant 0 : index
    %82 = vector.load %arg3[%c0_37, %c198, %c0_38] : memref<2x201x32xf32, #tpu.memory_space<vmem>>, vector<1x1x32xf32>
    %83 = vector.shape_cast %82 : vector<1x1x32xf32> to vector<1x32xf32>
    %c0_39 = arith.constant 0 : index
    %c199 = arith.constant 199 : index
    %c0_40 = arith.constant 0 : index
    %84 = vector.load %arg3[%c0_39, %c199, %c0_40] : memref<2x201x32xf32, #tpu.memory_space<vmem>>, vector<1x1x32xf32>
    %85 = vector.shape_cast %84 : vector<1x1x32xf32> to vector<1x32xf32>
    %c0_41 = arith.constant 0 : index
    %c200 = arith.constant 200 : index
    %c0_42 = arith.constant 0 : index
    %86 = vector.load %arg3[%c0_41, %c200, %c0_42] : memref<2x201x32xf32, #tpu.memory_space<vmem>>, vector<1x1x32xf32>
    %87 = vector.shape_cast %86 : vector<1x1x32xf32> to vector<1x32xf32>
    %c0_43 = arith.constant 0 : index
    %c0_44 = arith.constant 0 : index
    %c0_45 = arith.constant 0 : index
    %88 = vector.load %arg4[%c0_43, %c0_44, %c0_45] : memref<2x33x64xf32, #tpu.memory_space<vmem>>, vector<1x32x64xf32>
    %89 = vector.shape_cast %88 : vector<1x32x64xf32> to vector<32x64xf32>
    %90 = arith.truncf %89 : vector<32x64xf32> to vector<32x64xbf16>
    %c0_46 = arith.constant 0 : index
    %c32_47 = arith.constant 32 : index
    %c0_48 = arith.constant 0 : index
    %91 = vector.load %arg4[%c0_46, %c32_47, %c0_48] : memref<2x33x64xf32, #tpu.memory_space<vmem>>, vector<1x1x64xf32>
    %92 = vector.shape_cast %91 : vector<1x1x64xf32> to vector<1x64xf32>
    %93 = arith.truncf %24 : vector<16x32xf32> to vector<16x32xbf16>
    %cst_49 = arith.constant dense<0.000000e+00> : vector<16x32xf32>
    %94 = tpu.matmul %93, %57, %cst_49 {dimension_numbers = #tpu.dot_dimension_numbers<[1], [0], [0], [1], [0, 0, 1, 1], [], []>} : vector<16x32xbf16>, vector<32x32xbf16>, vector<16x32xf32> -> vector<16x32xf32>
    %95 = vector.broadcast %71 : vector<1x32xf32> to vector<16x32xf32>
    %96 = arith.addf %94, %95 : vector<16x32xf32>
    %97 = vector.shape_cast %96 : vector<16x32xf32> to vector<2x8x32xf32>
    %cst_50 = arith.constant dense<0.000000e+00> : vector<16x32xf32>
    %98 = tpu.matmul %93, %60, %cst_50 {dimension_numbers = #tpu.dot_dimension_numbers<[1], [0], [0], [1], [0, 0, 1, 1], [], []>} : vector<16x32xbf16>, vector<32x32xbf16>, vector<16x32xf32> -> vector<16x32xf32>
    %99 = vector.broadcast %73 : vector<1x32xf32> to vector<16x32xf32>
    %100 = arith.addf %98, %99 : vector<16x32xf32>
    %101 = vector.shape_cast %100 : vector<16x32xf32> to vector<2x8x32xf32>
    %cst_51 = arith.constant dense<0.000000e+00> : vector<16x32xf32>
    %102 = tpu.matmul %93, %63, %cst_51 {dimension_numbers = #tpu.dot_dimension_numbers<[1], [0], [0], [1], [0, 0, 1, 1], [], []>} : vector<16x32xbf16>, vector<32x32xbf16>, vector<16x32xf32> -> vector<16x32xf32>
    %103 = vector.broadcast %75 : vector<1x32xf32> to vector<16x32xf32>
    %104 = arith.addf %102, %103 : vector<16x32xf32>
    %105 = vector.shape_cast %104 : vector<16x32xf32> to vector<2x8x32xf32>
    %106 = arith.truncf %101 : vector<2x8x32xf32> to vector<2x8x32xbf16>
    %cst_52 = arith.constant 0.000000e+00 : f32
    %107 = vector.broadcast %cst_52 : f32 to vector<2x8x32xf32>
    %108 = vector.broadcast %33 : vector<1x1x32xf32> to vector<2x8x32xf32>
    %109 = arith.mulf %97, %108 : vector<2x8x32xf32>
    %110 = arith.truncf %109 : vector<2x8x32xf32> to vector<2x8x32xbf16>
    %111 = vector.broadcast %33 : vector<1x1x32xf32> to vector<2x8x32xf32>
    %112 = arith.mulf %105, %111 : vector<2x8x32xf32>
    %113 = arith.truncf %112 : vector<2x8x32xf32> to vector<2x8x32xbf16>
    "tpu.trace_start"() <{level = 10 : i32, message = "bqc,bkc->bqk"}> : () -> ()
    %cst_53 = arith.constant dense<0.000000e+00> : vector<2x8x8xf32>
    %114 = tpu.matmul %110, %106, %cst_53 {dimension_numbers = #tpu.dot_dimension_numbers<[2], [2], [1], [1], [0, 0, 0, 1, 1, 1], [0], [0]>} : vector<2x8x32xbf16>, vector<2x8x32xbf16>, vector<2x8x8xf32> -> vector<2x8x8xf32>
    "tpu.trace_stop"() : () -> ()
    %cst_54 = arith.constant 0.353553385 : f32
    %115 = vector.broadcast %cst_54 : f32 to vector<2x8x8xf32>
    %116 = arith.mulf %114, %115 : vector<2x8x8xf32>
    %117 = vector.broadcast %25 : vector<2x1x8xf32> to vector<2x8x8xf32>
    %118 = arith.addf %116, %117 : vector<2x8x8xf32>
    %cst_55 = arith.constant dense<0xFF800000> : vector<2x8xf32>
    %119 = vector.multi_reduction <maximumf>, %118, %cst_55 [2] : vector<2x8x8xf32> to vector<2x8xf32>
    %120 = vector.shape_cast %119 : vector<2x8xf32> to vector<2x8x1xf32>
    %121 = vector.broadcast %120 : vector<2x8x1xf32> to vector<2x8x8xf32>
    %122 = arith.subf %118, %121 : vector<2x8x8xf32>
    %123 = math.exp %122 : vector<2x8x8xf32>
    %cst_56 = arith.constant dense<0.000000e+00> : vector<2x8xf32>
    %124 = vector.multi_reduction <add>, %123, %cst_56 [2] : vector<2x8x8xf32> to vector<2x8xf32>
    %125 = vector.shape_cast %124 : vector<2x8xf32> to vector<2x8x1xf32>
    %126 = tpu.reciprocal %125 {approx = true} : vector<2x8x1xf32> -> vector<2x8x1xf32>
    %127 = vector.broadcast %126 : vector<2x8x1xf32> to vector<2x8x8xf32>
    %128 = arith.mulf %123, %127 : vector<2x8x8xf32>
    %129 = arith.truncf %128 : vector<2x8x8xf32> to vector<2x8x8xbf16>
    "tpu.trace_start"() <{level = 10 : i32, message = "bqk,bkc->bqc"}> : () -> ()
    %cst_57 = arith.constant dense<0.000000e+00> : vector<2x8x32xf32>
    %130 = tpu.matmul %129, %113, %cst_57 {dimension_numbers = #tpu.dot_dimension_numbers<[2], [1], [1], [2], [0, 0, 0, 1, 1, 2], [0], [0]>} : vector<2x8x8xbf16>, vector<2x8x32xbf16>, vector<2x8x32xf32> -> vector<2x8x32xf32>
    "tpu.trace_stop"() : () -> ()
    %131 = arith.addf %107, %130 : vector<2x8x32xf32>
    %132 = vector.broadcast %40 : vector<1x1x32xf32> to vector<2x8x32xf32>
    %133 = arith.mulf %97, %132 : vector<2x8x32xf32>
    %134 = arith.truncf %133 : vector<2x8x32xf32> to vector<2x8x32xbf16>
    %135 = vector.broadcast %40 : vector<1x1x32xf32> to vector<2x8x32xf32>
    %136 = arith.mulf %105, %135 : vector<2x8x32xf32>
    %137 = arith.truncf %136 : vector<2x8x32xf32> to vector<2x8x32xbf16>
    "tpu.trace_start"() <{level = 10 : i32, message = "bqc,bkc->bqk"}> : () -> ()
    %cst_58 = arith.constant dense<0.000000e+00> : vector<2x8x8xf32>
    %138 = tpu.matmul %134, %106, %cst_58 {dimension_numbers = #tpu.dot_dimension_numbers<[2], [2], [1], [1], [0, 0, 0, 1, 1, 1], [0], [0]>} : vector<2x8x32xbf16>, vector<2x8x32xbf16>, vector<2x8x8xf32> -> vector<2x8x8xf32>
    "tpu.trace_stop"() : () -> ()
    %cst_59 = arith.constant 0.353553385 : f32
    %139 = vector.broadcast %cst_59 : f32 to vector<2x8x8xf32>
    %140 = arith.mulf %138, %139 : vector<2x8x8xf32>
    %141 = vector.broadcast %25 : vector<2x1x8xf32> to vector<2x8x8xf32>
    %142 = arith.addf %140, %141 : vector<2x8x8xf32>
    %cst_60 = arith.constant dense<0xFF800000> : vector<2x8xf32>
    %143 = vector.multi_reduction <maximumf>, %142, %cst_60 [2] : vector<2x8x8xf32> to vector<2x8xf32>
    %144 = vector.shape_cast %143 : vector<2x8xf32> to vector<2x8x1xf32>
    %145 = vector.broadcast %144 : vector<2x8x1xf32> to vector<2x8x8xf32>
    %146 = arith.subf %142, %145 : vector<2x8x8xf32>
    %147 = math.exp %146 : vector<2x8x8xf32>
    %cst_61 = arith.constant dense<0.000000e+00> : vector<2x8xf32>
    %148 = vector.multi_reduction <add>, %147, %cst_61 [2] : vector<2x8x8xf32> to vector<2x8xf32>
    %149 = vector.shape_cast %148 : vector<2x8xf32> to vector<2x8x1xf32>
    %150 = tpu.reciprocal %149 {approx = true} : vector<2x8x1xf32> -> vector<2x8x1xf32>
    %151 = vector.broadcast %150 : vector<2x8x1xf32> to vector<2x8x8xf32>
    %152 = arith.mulf %147, %151 : vector<2x8x8xf32>
    %153 = arith.truncf %152 : vector<2x8x8xf32> to vector<2x8x8xbf16>
    "tpu.trace_start"() <{level = 10 : i32, message = "bqk,bkc->bqc"}> : () -> ()
    %cst_62 = arith.constant dense<0.000000e+00> : vector<2x8x32xf32>
    %154 = tpu.matmul %153, %137, %cst_62 {dimension_numbers = #tpu.dot_dimension_numbers<[2], [1], [1], [2], [0, 0, 0, 1, 1, 2], [0], [0]>} : vector<2x8x8xbf16>, vector<2x8x32xbf16>, vector<2x8x32xf32> -> vector<2x8x32xf32>
    "tpu.trace_stop"() : () -> ()
    %155 = arith.addf %131, %154 : vector<2x8x32xf32>
    %156 = vector.broadcast %47 : vector<1x1x32xf32> to vector<2x8x32xf32>
    %157 = arith.mulf %97, %156 : vector<2x8x32xf32>
    %158 = arith.truncf %157 : vector<2x8x32xf32> to vector<2x8x32xbf16>
    %159 = vector.broadcast %47 : vector<1x1x32xf32> to vector<2x8x32xf32>
    %160 = arith.mulf %105, %159 : vector<2x8x32xf32>
    %161 = arith.truncf %160 : vector<2x8x32xf32> to vector<2x8x32xbf16>
    "tpu.trace_start"() <{level = 10 : i32, message = "bqc,bkc->bqk"}> : () -> ()
    %cst_63 = arith.constant dense<0.000000e+00> : vector<2x8x8xf32>
    %162 = tpu.matmul %158, %106, %cst_63 {dimension_numbers = #tpu.dot_dimension_numbers<[2], [2], [1], [1], [0, 0, 0, 1, 1, 1], [0], [0]>} : vector<2x8x32xbf16>, vector<2x8x32xbf16>, vector<2x8x8xf32> -> vector<2x8x8xf32>
    "tpu.trace_stop"() : () -> ()
    %cst_64 = arith.constant 0.353553385 : f32
    %163 = vector.broadcast %cst_64 : f32 to vector<2x8x8xf32>
    %164 = arith.mulf %162, %163 : vector<2x8x8xf32>
    %165 = vector.broadcast %25 : vector<2x1x8xf32> to vector<2x8x8xf32>
    %166 = arith.addf %164, %165 : vector<2x8x8xf32>
    %cst_65 = arith.constant dense<0xFF800000> : vector<2x8xf32>
    %167 = vector.multi_reduction <maximumf>, %166, %cst_65 [2] : vector<2x8x8xf32> to vector<2x8xf32>
    %168 = vector.shape_cast %167 : vector<2x8xf32> to vector<2x8x1xf32>
    %169 = vector.broadcast %168 : vector<2x8x1xf32> to vector<2x8x8xf32>
    %170 = arith.subf %166, %169 : vector<2x8x8xf32>
    %171 = math.exp %170 : vector<2x8x8xf32>
    %cst_66 = arith.constant dense<0.000000e+00> : vector<2x8xf32>
    %172 = vector.multi_reduction <add>, %171, %cst_66 [2] : vector<2x8x8xf32> to vector<2x8xf32>
    %173 = vector.shape_cast %172 : vector<2x8xf32> to vector<2x8x1xf32>
    %174 = tpu.reciprocal %173 {approx = true} : vector<2x8x1xf32> -> vector<2x8x1xf32>
    %175 = vector.broadcast %174 : vector<2x8x1xf32> to vector<2x8x8xf32>
    %176 = arith.mulf %171, %175 : vector<2x8x8xf32>
    %177 = arith.truncf %176 : vector<2x8x8xf32> to vector<2x8x8xbf16>
    "tpu.trace_start"() <{level = 10 : i32, message = "bqk,bkc->bqc"}> : () -> ()
    %cst_67 = arith.constant dense<0.000000e+00> : vector<2x8x32xf32>
    %178 = tpu.matmul %177, %161, %cst_67 {dimension_numbers = #tpu.dot_dimension_numbers<[2], [1], [1], [2], [0, 0, 0, 1, 1, 2], [0], [0]>} : vector<2x8x8xbf16>, vector<2x8x32xbf16>, vector<2x8x32xf32> -> vector<2x8x32xf32>
    "tpu.trace_stop"() : () -> ()
    %179 = arith.addf %155, %178 : vector<2x8x32xf32>
    %180 = vector.broadcast %54 : vector<1x1x32xf32> to vector<2x8x32xf32>
    %181 = arith.mulf %97, %180 : vector<2x8x32xf32>
    %182 = arith.truncf %181 : vector<2x8x32xf32> to vector<2x8x32xbf16>
    %183 = vector.broadcast %54 : vector<1x1x32xf32> to vector<2x8x32xf32>
    %184 = arith.mulf %105, %183 : vector<2x8x32xf32>
    %185 = arith.truncf %184 : vector<2x8x32xf32> to vector<2x8x32xbf16>
    "tpu.trace_start"() <{level = 10 : i32, message = "bqc,bkc->bqk"}> : () -> ()
    %cst_68 = arith.constant dense<0.000000e+00> : vector<2x8x8xf32>
    %186 = tpu.matmul %182, %106, %cst_68 {dimension_numbers = #tpu.dot_dimension_numbers<[2], [2], [1], [1], [0, 0, 0, 1, 1, 1], [0], [0]>} : vector<2x8x32xbf16>, vector<2x8x32xbf16>, vector<2x8x8xf32> -> vector<2x8x8xf32>
    "tpu.trace_stop"() : () -> ()
    %cst_69 = arith.constant 0.353553385 : f32
    %187 = vector.broadcast %cst_69 : f32 to vector<2x8x8xf32>
    %188 = arith.mulf %186, %187 : vector<2x8x8xf32>
    %189 = vector.broadcast %25 : vector<2x1x8xf32> to vector<2x8x8xf32>
    %190 = arith.addf %188, %189 : vector<2x8x8xf32>
    %cst_70 = arith.constant dense<0xFF800000> : vector<2x8xf32>
    %191 = vector.multi_reduction <maximumf>, %190, %cst_70 [2] : vector<2x8x8xf32> to vector<2x8xf32>
    %192 = vector.shape_cast %191 : vector<2x8xf32> to vector<2x8x1xf32>
    %193 = vector.broadcast %192 : vector<2x8x1xf32> to vector<2x8x8xf32>
    %194 = arith.subf %190, %193 : vector<2x8x8xf32>
    %195 = math.exp %194 : vector<2x8x8xf32>
    %cst_71 = arith.constant dense<0.000000e+00> : vector<2x8xf32>
    %196 = vector.multi_reduction <add>, %195, %cst_71 [2] : vector<2x8x8xf32> to vector<2x8xf32>
    %197 = vector.shape_cast %196 : vector<2x8xf32> to vector<2x8x1xf32>
    %198 = tpu.reciprocal %197 {approx = true} : vector<2x8x1xf32> -> vector<2x8x1xf32>
    %199 = vector.broadcast %198 : vector<2x8x1xf32> to vector<2x8x8xf32>
    %200 = arith.mulf %195, %199 : vector<2x8x8xf32>
    %201 = arith.truncf %200 : vector<2x8x8xf32> to vector<2x8x8xbf16>
    "tpu.trace_start"() <{level = 10 : i32, message = "bqk,bkc->bqc"}> : () -> ()
    %cst_72 = arith.constant dense<0.000000e+00> : vector<2x8x32xf32>
    %202 = tpu.matmul %201, %185, %cst_72 {dimension_numbers = #tpu.dot_dimension_numbers<[2], [1], [1], [2], [0, 0, 0, 1, 1, 2], [0], [0]>} : vector<2x8x8xbf16>, vector<2x8x32xbf16>, vector<2x8x32xf32> -> vector<2x8x32xf32>
    "tpu.trace_stop"() : () -> ()
    %203 = arith.addf %179, %202 : vector<2x8x32xf32>
    %204 = vector.shape_cast %203 : vector<2x8x32xf32> to vector<16x32xf32>
    %205 = arith.truncf %204 : vector<16x32xf32> to vector<16x32xbf16>
    %cst_73 = arith.constant dense<0.000000e+00> : vector<16x32xf32>
    %206 = tpu.matmul %205, %66, %cst_73 {dimension_numbers = #tpu.dot_dimension_numbers<[1], [0], [0], [1], [0, 0, 1, 1], [], []>} : vector<16x32xbf16>, vector<32x32xbf16>, vector<16x32xf32> -> vector<16x32xf32>
    %207 = vector.broadcast %77 : vector<1x32xf32> to vector<16x32xf32>
    %208 = arith.addf %206, %207 : vector<16x32xf32>
    %209 = arith.addf %208, %24 : vector<16x32xf32>
    %cst_74 = arith.constant dense<0.000000e+00> : vector<16xf32>
    %210 = vector.multi_reduction <add>, %209, %cst_74 [1] : vector<16x32xf32> to vector<16xf32>
    %211 = vector.shape_cast %210 : vector<16xf32> to vector<16x1xf32>
    %cst_75 = arith.constant 3.200000e+01 : f32
    %212 = vector.broadcast %cst_75 : f32 to vector<16x1xf32>
    %213 = arith.divf %211, %212 : vector<16x1xf32>
    %214 = vector.broadcast %213 : vector<16x1xf32> to vector<16x32xf32>
    %215 = arith.subf %209, %214 : vector<16x32xf32>
    %216 = arith.mulf %215, %215 : vector<16x32xf32>
    %cst_76 = arith.constant dense<0.000000e+00> : vector<16xf32>
    %217 = vector.multi_reduction <add>, %216, %cst_76 [1] : vector<16x32xf32> to vector<16xf32>
    %218 = vector.shape_cast %217 : vector<16xf32> to vector<16x1xf32>
    %cst_77 = arith.constant 3.200000e+01 : f32
    %219 = vector.broadcast %cst_77 : f32 to vector<16x1xf32>
    %220 = arith.divf %218, %219 : vector<16x1xf32>
    %221 = vector.broadcast %213 : vector<16x1xf32> to vector<16x32xf32>
    %222 = arith.subf %209, %221 : vector<16x32xf32>
    %cst_78 = arith.constant 9.99999996E-13 : f32
    %223 = vector.broadcast %cst_78 : f32 to vector<16x1xf32>
    %224 = arith.addf %220, %223 : vector<16x1xf32>
    %225 = math.rsqrt %224 : vector<16x1xf32>
    %226 = vector.broadcast %225 : vector<16x1xf32> to vector<16x32xf32>
    %227 = arith.mulf %222, %226 : vector<16x32xf32>
    %228 = vector.broadcast %79 : vector<1x32xf32> to vector<16x32xf32>
    %229 = arith.mulf %227, %228 : vector<16x32xf32>
    %230 = vector.broadcast %81 : vector<1x32xf32> to vector<16x32xf32>
    %231 = arith.addf %229, %230 : vector<16x32xf32>
    %232 = arith.truncf %231 : vector<16x32xf32> to vector<16x32xbf16>
    %cst_79 = arith.constant dense<0.000000e+00> : vector<16x64xf32>
    %233 = tpu.matmul %232, %90, %cst_79 {dimension_numbers = #tpu.dot_dimension_numbers<[1], [0], [0], [1], [0, 0, 1, 1], [], []>} : vector<16x32xbf16>, vector<32x64xbf16>, vector<16x64xf32> -> vector<16x64xf32>
    %234 = vector.broadcast %92 : vector<1x64xf32> to vector<16x64xf32>
    %235 = arith.addf %233, %234 : vector<16x64xf32>
    %cst_80 = arith.constant 5.000000e-01 : f32
    %236 = vector.broadcast %cst_80 : f32 to vector<16x64xf32>
    %237 = arith.mulf %236, %235 : vector<16x64xf32>
    %cst_81 = arith.constant 4.471500e-02 : f32
    %238 = vector.broadcast %cst_81 : f32 to vector<16x64xf32>
    %239 = arith.mulf %238, %235 : vector<16x64xf32>
    %240 = arith.mulf %239, %235 : vector<16x64xf32>
    %241 = arith.mulf %240, %235 : vector<16x64xf32>
    %242 = arith.addf %235, %241 : vector<16x64xf32>
    %cst_82 = arith.constant 0.797884583 : f32
    %243 = vector.broadcast %cst_82 : f32 to vector<16x64xf32>
    %244 = arith.mulf %243, %242 : vector<16x64xf32>
    %245 = math.tanh %244 : vector<16x64xf32>
    %cst_83 = arith.constant 1.000000e+00 : f32
    %246 = vector.broadcast %cst_83 : f32 to vector<16x64xf32>
    %247 = arith.addf %246, %245 : vector<16x64xf32>
    %248 = arith.mulf %237, %247 : vector<16x64xf32>
    %249 = arith.truncf %248 : vector<16x64xf32> to vector<16x64xbf16>
    %cst_84 = arith.constant dense<0.000000e+00> : vector<16x32xf32>
    %250 = tpu.matmul %249, %69, %cst_84 {dimension_numbers = #tpu.dot_dimension_numbers<[1], [0], [0], [1], [0, 0, 1, 1], [], []>} : vector<16x64xbf16>, vector<64x32xbf16>, vector<16x32xf32> -> vector<16x32xf32>
    %251 = vector.broadcast %83 : vector<1x32xf32> to vector<16x32xf32>
    %252 = arith.addf %250, %251 : vector<16x32xf32>
    %253 = arith.addf %252, %231 : vector<16x32xf32>
    %cst_85 = arith.constant dense<0.000000e+00> : vector<16xf32>
    %254 = vector.multi_reduction <add>, %253, %cst_85 [1] : vector<16x32xf32> to vector<16xf32>
    %255 = vector.shape_cast %254 : vector<16xf32> to vector<16x1xf32>
    %cst_86 = arith.constant 3.200000e+01 : f32
    %256 = vector.broadcast %cst_86 : f32 to vector<16x1xf32>
    %257 = arith.divf %255, %256 : vector<16x1xf32>
    %258 = vector.broadcast %257 : vector<16x1xf32> to vector<16x32xf32>
    %259 = arith.subf %253, %258 : vector<16x32xf32>
    %260 = arith.mulf %259, %259 : vector<16x32xf32>
    %cst_87 = arith.constant dense<0.000000e+00> : vector<16xf32>
    %261 = vector.multi_reduction <add>, %260, %cst_87 [1] : vector<16x32xf32> to vector<16xf32>
    %262 = vector.shape_cast %261 : vector<16xf32> to vector<16x1xf32>
    %cst_88 = arith.constant 3.200000e+01 : f32
    %263 = vector.broadcast %cst_88 : f32 to vector<16x1xf32>
    %264 = arith.divf %262, %263 : vector<16x1xf32>
    %265 = vector.broadcast %257 : vector<16x1xf32> to vector<16x32xf32>
    %266 = arith.subf %253, %265 : vector<16x32xf32>
    %cst_89 = arith.constant 9.99999996E-13 : f32
    %267 = vector.broadcast %cst_89 : f32 to vector<16x1xf32>
    %268 = arith.addf %264, %267 : vector<16x1xf32>
    %269 = math.rsqrt %268 : vector<16x1xf32>
    %270 = vector.broadcast %269 : vector<16x1xf32> to vector<16x32xf32>
    %271 = arith.mulf %266, %270 : vector<16x32xf32>
    %272 = vector.broadcast %85 : vector<1x32xf32> to vector<16x32xf32>
    %273 = arith.mulf %271, %272 : vector<16x32xf32>
    %274 = vector.broadcast %87 : vector<1x32xf32> to vector<16x32xf32>
    %275 = arith.addf %273, %274 : vector<16x32xf32>
    %c1_90 = arith.constant 1 : index
    %c0_91 = arith.constant 0 : index
    %c0_92 = arith.constant 0 : index
    %276 = vector.load %arg3[%c1_90, %c0_91, %c0_92] : memref<2x201x32xf32, #tpu.memory_space<vmem>>, vector<1x32x32xf32>
    %277 = vector.shape_cast %276 : vector<1x32x32xf32> to vector<32x32xf32>
    %278 = arith.truncf %277 : vector<32x32xf32> to vector<32x32xbf16>
    %c1_93 = arith.constant 1 : index
    %c32_94 = arith.constant 32 : index
    %c0_95 = arith.constant 0 : index
    %279 = vector.load %arg3[%c1_93, %c32_94, %c0_95] : memref<2x201x32xf32, #tpu.memory_space<vmem>>, vector<1x32x32xf32>
    %280 = vector.shape_cast %279 : vector<1x32x32xf32> to vector<32x32xf32>
    %281 = arith.truncf %280 : vector<32x32xf32> to vector<32x32xbf16>
    %c1_96 = arith.constant 1 : index
    %c64_97 = arith.constant 64 : index
    %c0_98 = arith.constant 0 : index
    %282 = vector.load %arg3[%c1_96, %c64_97, %c0_98] : memref<2x201x32xf32, #tpu.memory_space<vmem>>, vector<1x32x32xf32>
    %283 = vector.shape_cast %282 : vector<1x32x32xf32> to vector<32x32xf32>
    %284 = arith.truncf %283 : vector<32x32xf32> to vector<32x32xbf16>
    %c1_99 = arith.constant 1 : index
    %c96_100 = arith.constant 96 : index
    %c0_101 = arith.constant 0 : index
    %285 = vector.load %arg3[%c1_99, %c96_100, %c0_101] : memref<2x201x32xf32, #tpu.memory_space<vmem>>, vector<1x32x32xf32>
    %286 = vector.shape_cast %285 : vector<1x32x32xf32> to vector<32x32xf32>
    %287 = arith.truncf %286 : vector<32x32xf32> to vector<32x32xbf16>
    %c1_102 = arith.constant 1 : index
    %c128_103 = arith.constant 128 : index
    %c0_104 = arith.constant 0 : index
    %288 = vector.load %arg3[%c1_102, %c128_103, %c0_104] : memref<2x201x32xf32, #tpu.memory_space<vmem>>, vector<1x64x32xf32>
    %289 = vector.shape_cast %288 : vector<1x64x32xf32> to vector<64x32xf32>
    %290 = arith.truncf %289 : vector<64x32xf32> to vector<64x32xbf16>
    %c1_105 = arith.constant 1 : index
    %c192_106 = arith.constant 192 : index
    %c0_107 = arith.constant 0 : index
    %291 = vector.load %arg3[%c1_105, %c192_106, %c0_107] : memref<2x201x32xf32, #tpu.memory_space<vmem>>, vector<1x1x32xf32>
    %292 = vector.shape_cast %291 : vector<1x1x32xf32> to vector<1x32xf32>
    %c1_108 = arith.constant 1 : index
    %c193_109 = arith.constant 193 : index
    %c0_110 = arith.constant 0 : index
    %293 = vector.load %arg3[%c1_108, %c193_109, %c0_110] : memref<2x201x32xf32, #tpu.memory_space<vmem>>, vector<1x1x32xf32>
    %294 = vector.shape_cast %293 : vector<1x1x32xf32> to vector<1x32xf32>
    %c1_111 = arith.constant 1 : index
    %c194_112 = arith.constant 194 : index
    %c0_113 = arith.constant 0 : index
    %295 = vector.load %arg3[%c1_111, %c194_112, %c0_113] : memref<2x201x32xf32, #tpu.memory_space<vmem>>, vector<1x1x32xf32>
    %296 = vector.shape_cast %295 : vector<1x1x32xf32> to vector<1x32xf32>
    %c1_114 = arith.constant 1 : index
    %c195_115 = arith.constant 195 : index
    %c0_116 = arith.constant 0 : index
    %297 = vector.load %arg3[%c1_114, %c195_115, %c0_116] : memref<2x201x32xf32, #tpu.memory_space<vmem>>, vector<1x1x32xf32>
    %298 = vector.shape_cast %297 : vector<1x1x32xf32> to vector<1x32xf32>
    %c1_117 = arith.constant 1 : index
    %c196_118 = arith.constant 196 : index
    %c0_119 = arith.constant 0 : index
    %299 = vector.load %arg3[%c1_117, %c196_118, %c0_119] : memref<2x201x32xf32, #tpu.memory_space<vmem>>, vector<1x1x32xf32>
    %300 = vector.shape_cast %299 : vector<1x1x32xf32> to vector<1x32xf32>
    %c1_120 = arith.constant 1 : index
    %c197_121 = arith.constant 197 : index
    %c0_122 = arith.constant 0 : index
    %301 = vector.load %arg3[%c1_120, %c197_121, %c0_122] : memref<2x201x32xf32, #tpu.memory_space<vmem>>, vector<1x1x32xf32>
    %302 = vector.shape_cast %301 : vector<1x1x32xf32> to vector<1x32xf32>
    %c1_123 = arith.constant 1 : index
    %c198_124 = arith.constant 198 : index
    %c0_125 = arith.constant 0 : index
    %303 = vector.load %arg3[%c1_123, %c198_124, %c0_125] : memref<2x201x32xf32, #tpu.memory_space<vmem>>, vector<1x1x32xf32>
    %304 = vector.shape_cast %303 : vector<1x1x32xf32> to vector<1x32xf32>
    %c1_126 = arith.constant 1 : index
    %c199_127 = arith.constant 199 : index
    %c0_128 = arith.constant 0 : index
    %305 = vector.load %arg3[%c1_126, %c199_127, %c0_128] : memref<2x201x32xf32, #tpu.memory_space<vmem>>, vector<1x1x32xf32>
    %306 = vector.shape_cast %305 : vector<1x1x32xf32> to vector<1x32xf32>
    %c1_129 = arith.constant 1 : index
    %c200_130 = arith.constant 200 : index
    %c0_131 = arith.constant 0 : index
    %307 = vector.load %arg3[%c1_129, %c200_130, %c0_131] : memref<2x201x32xf32, #tpu.memory_space<vmem>>, vector<1x1x32xf32>
    %308 = vector.shape_cast %307 : vector<1x1x32xf32> to vector<1x32xf32>
    %c1_132 = arith.constant 1 : index
    %c0_133 = arith.constant 0 : index
    %c0_134 = arith.constant 0 : index
    %309 = vector.load %arg4[%c1_132, %c0_133, %c0_134] : memref<2x33x64xf32, #tpu.memory_space<vmem>>, vector<1x32x64xf32>
    %310 = vector.shape_cast %309 : vector<1x32x64xf32> to vector<32x64xf32>
    %311 = arith.truncf %310 : vector<32x64xf32> to vector<32x64xbf16>
    %c1_135 = arith.constant 1 : index
    %c32_136 = arith.constant 32 : index
    %c0_137 = arith.constant 0 : index
    %312 = vector.load %arg4[%c1_135, %c32_136, %c0_137] : memref<2x33x64xf32, #tpu.memory_space<vmem>>, vector<1x1x64xf32>
    %313 = vector.shape_cast %312 : vector<1x1x64xf32> to vector<1x64xf32>
    %314 = arith.truncf %275 : vector<16x32xf32> to vector<16x32xbf16>
    %cst_138 = arith.constant dense<0.000000e+00> : vector<16x32xf32>
    %315 = tpu.matmul %314, %278, %cst_138 {dimension_numbers = #tpu.dot_dimension_numbers<[1], [0], [0], [1], [0, 0, 1, 1], [], []>} : vector<16x32xbf16>, vector<32x32xbf16>, vector<16x32xf32> -> vector<16x32xf32>
    %316 = vector.broadcast %292 : vector<1x32xf32> to vector<16x32xf32>
    %317 = arith.addf %315, %316 : vector<16x32xf32>
    %318 = vector.shape_cast %317 : vector<16x32xf32> to vector<2x8x32xf32>
    %cst_139 = arith.constant dense<0.000000e+00> : vector<16x32xf32>
    %319 = tpu.matmul %314, %281, %cst_139 {dimension_numbers = #tpu.dot_dimension_numbers<[1], [0], [0], [1], [0, 0, 1, 1], [], []>} : vector<16x32xbf16>, vector<32x32xbf16>, vector<16x32xf32> -> vector<16x32xf32>
    %320 = vector.broadcast %294 : vector<1x32xf32> to vector<16x32xf32>
    %321 = arith.addf %319, %320 : vector<16x32xf32>
    %322 = vector.shape_cast %321 : vector<16x32xf32> to vector<2x8x32xf32>
    %cst_140 = arith.constant dense<0.000000e+00> : vector<16x32xf32>
    %323 = tpu.matmul %314, %284, %cst_140 {dimension_numbers = #tpu.dot_dimension_numbers<[1], [0], [0], [1], [0, 0, 1, 1], [], []>} : vector<16x32xbf16>, vector<32x32xbf16>, vector<16x32xf32> -> vector<16x32xf32>
    %324 = vector.broadcast %296 : vector<1x32xf32> to vector<16x32xf32>
    %325 = arith.addf %323, %324 : vector<16x32xf32>
    %326 = vector.shape_cast %325 : vector<16x32xf32> to vector<2x8x32xf32>
    %327 = arith.truncf %322 : vector<2x8x32xf32> to vector<2x8x32xbf16>
    %cst_141 = arith.constant 0.000000e+00 : f32
    %328 = vector.broadcast %cst_141 : f32 to vector<2x8x32xf32>
    %329 = vector.broadcast %33 : vector<1x1x32xf32> to vector<2x8x32xf32>
    %330 = arith.mulf %318, %329 : vector<2x8x32xf32>
    %331 = arith.truncf %330 : vector<2x8x32xf32> to vector<2x8x32xbf16>
    %332 = vector.broadcast %33 : vector<1x1x32xf32> to vector<2x8x32xf32>
    %333 = arith.mulf %326, %332 : vector<2x8x32xf32>
    %334 = arith.truncf %333 : vector<2x8x32xf32> to vector<2x8x32xbf16>
    "tpu.trace_start"() <{level = 10 : i32, message = "bqc,bkc->bqk"}> : () -> ()
    %cst_142 = arith.constant dense<0.000000e+00> : vector<2x8x8xf32>
    %335 = tpu.matmul %331, %327, %cst_142 {dimension_numbers = #tpu.dot_dimension_numbers<[2], [2], [1], [1], [0, 0, 0, 1, 1, 1], [0], [0]>} : vector<2x8x32xbf16>, vector<2x8x32xbf16>, vector<2x8x8xf32> -> vector<2x8x8xf32>
    "tpu.trace_stop"() : () -> ()
    %cst_143 = arith.constant 0.353553385 : f32
    %336 = vector.broadcast %cst_143 : f32 to vector<2x8x8xf32>
    %337 = arith.mulf %335, %336 : vector<2x8x8xf32>
    %338 = vector.broadcast %25 : vector<2x1x8xf32> to vector<2x8x8xf32>
    %339 = arith.addf %337, %338 : vector<2x8x8xf32>
    %cst_144 = arith.constant dense<0xFF800000> : vector<2x8xf32>
    %340 = vector.multi_reduction <maximumf>, %339, %cst_144 [2] : vector<2x8x8xf32> to vector<2x8xf32>
    %341 = vector.shape_cast %340 : vector<2x8xf32> to vector<2x8x1xf32>
    %342 = vector.broadcast %341 : vector<2x8x1xf32> to vector<2x8x8xf32>
    %343 = arith.subf %339, %342 : vector<2x8x8xf32>
    %344 = math.exp %343 : vector<2x8x8xf32>
    %cst_145 = arith.constant dense<0.000000e+00> : vector<2x8xf32>
    %345 = vector.multi_reduction <add>, %344, %cst_145 [2] : vector<2x8x8xf32> to vector<2x8xf32>
    %346 = vector.shape_cast %345 : vector<2x8xf32> to vector<2x8x1xf32>
    %347 = tpu.reciprocal %346 {approx = true} : vector<2x8x1xf32> -> vector<2x8x1xf32>
    %348 = vector.broadcast %347 : vector<2x8x1xf32> to vector<2x8x8xf32>
    %349 = arith.mulf %344, %348 : vector<2x8x8xf32>
    %350 = arith.truncf %349 : vector<2x8x8xf32> to vector<2x8x8xbf16>
    "tpu.trace_start"() <{level = 10 : i32, message = "bqk,bkc->bqc"}> : () -> ()
    %cst_146 = arith.constant dense<0.000000e+00> : vector<2x8x32xf32>
    %351 = tpu.matmul %350, %334, %cst_146 {dimension_numbers = #tpu.dot_dimension_numbers<[2], [1], [1], [2], [0, 0, 0, 1, 1, 2], [0], [0]>} : vector<2x8x8xbf16>, vector<2x8x32xbf16>, vector<2x8x32xf32> -> vector<2x8x32xf32>
    "tpu.trace_stop"() : () -> ()
    %352 = arith.addf %328, %351 : vector<2x8x32xf32>
    %353 = vector.broadcast %40 : vector<1x1x32xf32> to vector<2x8x32xf32>
    %354 = arith.mulf %318, %353 : vector<2x8x32xf32>
    %355 = arith.truncf %354 : vector<2x8x32xf32> to vector<2x8x32xbf16>
    %356 = vector.broadcast %40 : vector<1x1x32xf32> to vector<2x8x32xf32>
    %357 = arith.mulf %326, %356 : vector<2x8x32xf32>
    %358 = arith.truncf %357 : vector<2x8x32xf32> to vector<2x8x32xbf16>
    "tpu.trace_start"() <{level = 10 : i32, message = "bqc,bkc->bqk"}> : () -> ()
    %cst_147 = arith.constant dense<0.000000e+00> : vector<2x8x8xf32>
    %359 = tpu.matmul %355, %327, %cst_147 {dimension_numbers = #tpu.dot_dimension_numbers<[2], [2], [1], [1], [0, 0, 0, 1, 1, 1], [0], [0]>} : vector<2x8x32xbf16>, vector<2x8x32xbf16>, vector<2x8x8xf32> -> vector<2x8x8xf32>
    "tpu.trace_stop"() : () -> ()
    %cst_148 = arith.constant 0.353553385 : f32
    %360 = vector.broadcast %cst_148 : f32 to vector<2x8x8xf32>
    %361 = arith.mulf %359, %360 : vector<2x8x8xf32>
    %362 = vector.broadcast %25 : vector<2x1x8xf32> to vector<2x8x8xf32>
    %363 = arith.addf %361, %362 : vector<2x8x8xf32>
    %cst_149 = arith.constant dense<0xFF800000> : vector<2x8xf32>
    %364 = vector.multi_reduction <maximumf>, %363, %cst_149 [2] : vector<2x8x8xf32> to vector<2x8xf32>
    %365 = vector.shape_cast %364 : vector<2x8xf32> to vector<2x8x1xf32>
    %366 = vector.broadcast %365 : vector<2x8x1xf32> to vector<2x8x8xf32>
    %367 = arith.subf %363, %366 : vector<2x8x8xf32>
    %368 = math.exp %367 : vector<2x8x8xf32>
    %cst_150 = arith.constant dense<0.000000e+00> : vector<2x8xf32>
    %369 = vector.multi_reduction <add>, %368, %cst_150 [2] : vector<2x8x8xf32> to vector<2x8xf32>
    %370 = vector.shape_cast %369 : vector<2x8xf32> to vector<2x8x1xf32>
    %371 = tpu.reciprocal %370 {approx = true} : vector<2x8x1xf32> -> vector<2x8x1xf32>
    %372 = vector.broadcast %371 : vector<2x8x1xf32> to vector<2x8x8xf32>
    %373 = arith.mulf %368, %372 : vector<2x8x8xf32>
    %374 = arith.truncf %373 : vector<2x8x8xf32> to vector<2x8x8xbf16>
    "tpu.trace_start"() <{level = 10 : i32, message = "bqk,bkc->bqc"}> : () -> ()
    %cst_151 = arith.constant dense<0.000000e+00> : vector<2x8x32xf32>
    %375 = tpu.matmul %374, %358, %cst_151 {dimension_numbers = #tpu.dot_dimension_numbers<[2], [1], [1], [2], [0, 0, 0, 1, 1, 2], [0], [0]>} : vector<2x8x8xbf16>, vector<2x8x32xbf16>, vector<2x8x32xf32> -> vector<2x8x32xf32>
    "tpu.trace_stop"() : () -> ()
    %376 = arith.addf %352, %375 : vector<2x8x32xf32>
    %377 = vector.broadcast %47 : vector<1x1x32xf32> to vector<2x8x32xf32>
    %378 = arith.mulf %318, %377 : vector<2x8x32xf32>
    %379 = arith.truncf %378 : vector<2x8x32xf32> to vector<2x8x32xbf16>
    %380 = vector.broadcast %47 : vector<1x1x32xf32> to vector<2x8x32xf32>
    %381 = arith.mulf %326, %380 : vector<2x8x32xf32>
    %382 = arith.truncf %381 : vector<2x8x32xf32> to vector<2x8x32xbf16>
    "tpu.trace_start"() <{level = 10 : i32, message = "bqc,bkc->bqk"}> : () -> ()
    %cst_152 = arith.constant dense<0.000000e+00> : vector<2x8x8xf32>
    %383 = tpu.matmul %379, %327, %cst_152 {dimension_numbers = #tpu.dot_dimension_numbers<[2], [2], [1], [1], [0, 0, 0, 1, 1, 1], [0], [0]>} : vector<2x8x32xbf16>, vector<2x8x32xbf16>, vector<2x8x8xf32> -> vector<2x8x8xf32>
    "tpu.trace_stop"() : () -> ()
    %cst_153 = arith.constant 0.353553385 : f32
    %384 = vector.broadcast %cst_153 : f32 to vector<2x8x8xf32>
    %385 = arith.mulf %383, %384 : vector<2x8x8xf32>
    %386 = vector.broadcast %25 : vector<2x1x8xf32> to vector<2x8x8xf32>
    %387 = arith.addf %385, %386 : vector<2x8x8xf32>
    %cst_154 = arith.constant dense<0xFF800000> : vector<2x8xf32>
    %388 = vector.multi_reduction <maximumf>, %387, %cst_154 [2] : vector<2x8x8xf32> to vector<2x8xf32>
    %389 = vector.shape_cast %388 : vector<2x8xf32> to vector<2x8x1xf32>
    %390 = vector.broadcast %389 : vector<2x8x1xf32> to vector<2x8x8xf32>
    %391 = arith.subf %387, %390 : vector<2x8x8xf32>
    %392 = math.exp %391 : vector<2x8x8xf32>
    %cst_155 = arith.constant dense<0.000000e+00> : vector<2x8xf32>
    %393 = vector.multi_reduction <add>, %392, %cst_155 [2] : vector<2x8x8xf32> to vector<2x8xf32>
    %394 = vector.shape_cast %393 : vector<2x8xf32> to vector<2x8x1xf32>
    %395 = tpu.reciprocal %394 {approx = true} : vector<2x8x1xf32> -> vector<2x8x1xf32>
    %396 = vector.broadcast %395 : vector<2x8x1xf32> to vector<2x8x8xf32>
    %397 = arith.mulf %392, %396 : vector<2x8x8xf32>
    %398 = arith.truncf %397 : vector<2x8x8xf32> to vector<2x8x8xbf16>
    "tpu.trace_start"() <{level = 10 : i32, message = "bqk,bkc->bqc"}> : () -> ()
    %cst_156 = arith.constant dense<0.000000e+00> : vector<2x8x32xf32>
    %399 = tpu.matmul %398, %382, %cst_156 {dimension_numbers = #tpu.dot_dimension_numbers<[2], [1], [1], [2], [0, 0, 0, 1, 1, 2], [0], [0]>} : vector<2x8x8xbf16>, vector<2x8x32xbf16>, vector<2x8x32xf32> -> vector<2x8x32xf32>
    "tpu.trace_stop"() : () -> ()
    %400 = arith.addf %376, %399 : vector<2x8x32xf32>
    %401 = vector.broadcast %54 : vector<1x1x32xf32> to vector<2x8x32xf32>
    %402 = arith.mulf %318, %401 : vector<2x8x32xf32>
    %403 = arith.truncf %402 : vector<2x8x32xf32> to vector<2x8x32xbf16>
    %404 = vector.broadcast %54 : vector<1x1x32xf32> to vector<2x8x32xf32>
    %405 = arith.mulf %326, %404 : vector<2x8x32xf32>
    %406 = arith.truncf %405 : vector<2x8x32xf32> to vector<2x8x32xbf16>
    "tpu.trace_start"() <{level = 10 : i32, message = "bqc,bkc->bqk"}> : () -> ()
    %cst_157 = arith.constant dense<0.000000e+00> : vector<2x8x8xf32>
    %407 = tpu.matmul %403, %327, %cst_157 {dimension_numbers = #tpu.dot_dimension_numbers<[2], [2], [1], [1], [0, 0, 0, 1, 1, 1], [0], [0]>} : vector<2x8x32xbf16>, vector<2x8x32xbf16>, vector<2x8x8xf32> -> vector<2x8x8xf32>
    "tpu.trace_stop"() : () -> ()
    %cst_158 = arith.constant 0.353553385 : f32
    %408 = vector.broadcast %cst_158 : f32 to vector<2x8x8xf32>
    %409 = arith.mulf %407, %408 : vector<2x8x8xf32>
    %410 = vector.broadcast %25 : vector<2x1x8xf32> to vector<2x8x8xf32>
    %411 = arith.addf %409, %410 : vector<2x8x8xf32>
    %cst_159 = arith.constant dense<0xFF800000> : vector<2x8xf32>
    %412 = vector.multi_reduction <maximumf>, %411, %cst_159 [2] : vector<2x8x8xf32> to vector<2x8xf32>
    %413 = vector.shape_cast %412 : vector<2x8xf32> to vector<2x8x1xf32>
    %414 = vector.broadcast %413 : vector<2x8x1xf32> to vector<2x8x8xf32>
    %415 = arith.subf %411, %414 : vector<2x8x8xf32>
    %416 = math.exp %415 : vector<2x8x8xf32>
    %cst_160 = arith.constant dense<0.000000e+00> : vector<2x8xf32>
    %417 = vector.multi_reduction <add>, %416, %cst_160 [2] : vector<2x8x8xf32> to vector<2x8xf32>
    %418 = vector.shape_cast %417 : vector<2x8xf32> to vector<2x8x1xf32>
    %419 = tpu.reciprocal %418 {approx = true} : vector<2x8x1xf32> -> vector<2x8x1xf32>
    %420 = vector.broadcast %419 : vector<2x8x1xf32> to vector<2x8x8xf32>
    %421 = arith.mulf %416, %420 : vector<2x8x8xf32>
    %422 = arith.truncf %421 : vector<2x8x8xf32> to vector<2x8x8xbf16>
    "tpu.trace_start"() <{level = 10 : i32, message = "bqk,bkc->bqc"}> : () -> ()
    %cst_161 = arith.constant dense<0.000000e+00> : vector<2x8x32xf32>
    %423 = tpu.matmul %422, %406, %cst_161 {dimension_numbers = #tpu.dot_dimension_numbers<[2], [1], [1], [2], [0, 0, 0, 1, 1, 2], [0], [0]>} : vector<2x8x8xbf16>, vector<2x8x32xbf16>, vector<2x8x32xf32> -> vector<2x8x32xf32>
    "tpu.trace_stop"() : () -> ()
    %424 = arith.addf %400, %423 : vector<2x8x32xf32>
    %425 = vector.shape_cast %424 : vector<2x8x32xf32> to vector<16x32xf32>
    %426 = arith.truncf %425 : vector<16x32xf32> to vector<16x32xbf16>
    %cst_162 = arith.constant dense<0.000000e+00> : vector<16x32xf32>
    %427 = tpu.matmul %426, %287, %cst_162 {dimension_numbers = #tpu.dot_dimension_numbers<[1], [0], [0], [1], [0, 0, 1, 1], [], []>} : vector<16x32xbf16>, vector<32x32xbf16>, vector<16x32xf32> -> vector<16x32xf32>
    %428 = vector.broadcast %298 : vector<1x32xf32> to vector<16x32xf32>
    %429 = arith.addf %427, %428 : vector<16x32xf32>
    %430 = arith.addf %429, %275 : vector<16x32xf32>
    %cst_163 = arith.constant dense<0.000000e+00> : vector<16xf32>
    %431 = vector.multi_reduction <add>, %430, %cst_163 [1] : vector<16x32xf32> to vector<16xf32>
    %432 = vector.shape_cast %431 : vector<16xf32> to vector<16x1xf32>
    %cst_164 = arith.constant 3.200000e+01 : f32
    %433 = vector.broadcast %cst_164 : f32 to vector<16x1xf32>
    %434 = arith.divf %432, %433 : vector<16x1xf32>
    %435 = vector.broadcast %434 : vector<16x1xf32> to vector<16x32xf32>
    %436 = arith.subf %430, %435 : vector<16x32xf32>
    %437 = arith.mulf %436, %436 : vector<16x32xf32>
    %cst_165 = arith.constant dense<0.000000e+00> : vector<16xf32>
    %438 = vector.multi_reduction <add>, %437, %cst_165 [1] : vector<16x32xf32> to vector<16xf32>
    %439 = vector.shape_cast %438 : vector<16xf32> to vector<16x1xf32>
    %cst_166 = arith.constant 3.200000e+01 : f32
    %440 = vector.broadcast %cst_166 : f32 to vector<16x1xf32>
    %441 = arith.divf %439, %440 : vector<16x1xf32>
    %442 = vector.broadcast %434 : vector<16x1xf32> to vector<16x32xf32>
    %443 = arith.subf %430, %442 : vector<16x32xf32>
    %cst_167 = arith.constant 9.99999996E-13 : f32
    %444 = vector.broadcast %cst_167 : f32 to vector<16x1xf32>
    %445 = arith.addf %441, %444 : vector<16x1xf32>
    %446 = math.rsqrt %445 : vector<16x1xf32>
    %447 = vector.broadcast %446 : vector<16x1xf32> to vector<16x32xf32>
    %448 = arith.mulf %443, %447 : vector<16x32xf32>
    %449 = vector.broadcast %300 : vector<1x32xf32> to vector<16x32xf32>
    %450 = arith.mulf %448, %449 : vector<16x32xf32>
    %451 = vector.broadcast %302 : vector<1x32xf32> to vector<16x32xf32>
    %452 = arith.addf %450, %451 : vector<16x32xf32>
    %453 = arith.truncf %452 : vector<16x32xf32> to vector<16x32xbf16>
    %cst_168 = arith.constant dense<0.000000e+00> : vector<16x64xf32>
    %454 = tpu.matmul %453, %311, %cst_168 {dimension_numbers = #tpu.dot_dimension_numbers<[1], [0], [0], [1], [0, 0, 1, 1], [], []>} : vector<16x32xbf16>, vector<32x64xbf16>, vector<16x64xf32> -> vector<16x64xf32>
    %455 = vector.broadcast %313 : vector<1x64xf32> to vector<16x64xf32>
    %456 = arith.addf %454, %455 : vector<16x64xf32>
    %cst_169 = arith.constant 5.000000e-01 : f32
    %457 = vector.broadcast %cst_169 : f32 to vector<16x64xf32>
    %458 = arith.mulf %457, %456 : vector<16x64xf32>
    %cst_170 = arith.constant 4.471500e-02 : f32
    %459 = vector.broadcast %cst_170 : f32 to vector<16x64xf32>
    %460 = arith.mulf %459, %456 : vector<16x64xf32>
    %461 = arith.mulf %460, %456 : vector<16x64xf32>
    %462 = arith.mulf %461, %456 : vector<16x64xf32>
    %463 = arith.addf %456, %462 : vector<16x64xf32>
    %cst_171 = arith.constant 0.797884583 : f32
    %464 = vector.broadcast %cst_171 : f32 to vector<16x64xf32>
    %465 = arith.mulf %464, %463 : vector<16x64xf32>
    %466 = math.tanh %465 : vector<16x64xf32>
    %cst_172 = arith.constant 1.000000e+00 : f32
    %467 = vector.broadcast %cst_172 : f32 to vector<16x64xf32>
    %468 = arith.addf %467, %466 : vector<16x64xf32>
    %469 = arith.mulf %458, %468 : vector<16x64xf32>
    %470 = arith.truncf %469 : vector<16x64xf32> to vector<16x64xbf16>
    %cst_173 = arith.constant dense<0.000000e+00> : vector<16x32xf32>
    %471 = tpu.matmul %470, %290, %cst_173 {dimension_numbers = #tpu.dot_dimension_numbers<[1], [0], [0], [1], [0, 0, 1, 1], [], []>} : vector<16x64xbf16>, vector<64x32xbf16>, vector<16x32xf32> -> vector<16x32xf32>
    %472 = vector.broadcast %304 : vector<1x32xf32> to vector<16x32xf32>
    %473 = arith.addf %471, %472 : vector<16x32xf32>
    %474 = arith.addf %473, %452 : vector<16x32xf32>
    %cst_174 = arith.constant dense<0.000000e+00> : vector<16xf32>
    %475 = vector.multi_reduction <add>, %474, %cst_174 [1] : vector<16x32xf32> to vector<16xf32>
    %476 = vector.shape_cast %475 : vector<16xf32> to vector<16x1xf32>
    %cst_175 = arith.constant 3.200000e+01 : f32
    %477 = vector.broadcast %cst_175 : f32 to vector<16x1xf32>
    %478 = arith.divf %476, %477 : vector<16x1xf32>
    %479 = vector.broadcast %478 : vector<16x1xf32> to vector<16x32xf32>
    %480 = arith.subf %474, %479 : vector<16x32xf32>
    %481 = arith.mulf %480, %480 : vector<16x32xf32>
    %cst_176 = arith.constant dense<0.000000e+00> : vector<16xf32>
    %482 = vector.multi_reduction <add>, %481, %cst_176 [1] : vector<16x32xf32> to vector<16xf32>
    %483 = vector.shape_cast %482 : vector<16xf32> to vector<16x1xf32>
    %cst_177 = arith.constant 3.200000e+01 : f32
    %484 = vector.broadcast %cst_177 : f32 to vector<16x1xf32>
    %485 = arith.divf %483, %484 : vector<16x1xf32>
    %486 = vector.broadcast %478 : vector<16x1xf32> to vector<16x32xf32>
    %487 = arith.subf %474, %486 : vector<16x32xf32>
    %cst_178 = arith.constant 9.99999996E-13 : f32
    %488 = vector.broadcast %cst_178 : f32 to vector<16x1xf32>
    %489 = arith.addf %485, %488 : vector<16x1xf32>
    %490 = math.rsqrt %489 : vector<16x1xf32>
    %491 = vector.broadcast %490 : vector<16x1xf32> to vector<16x32xf32>
    %492 = arith.mulf %487, %491 : vector<16x32xf32>
    %493 = vector.broadcast %306 : vector<1x32xf32> to vector<16x32xf32>
    %494 = arith.mulf %492, %493 : vector<16x32xf32>
    %495 = vector.broadcast %308 : vector<1x32xf32> to vector<16x32xf32>
    %496 = arith.addf %494, %495 : vector<16x32xf32>
    %c2 = arith.constant 2 : index
    %c0_179 = arith.constant 0 : index
    %497 = vector.load %arg5[%c2, %c0_179] : memref<4x32xf32, #tpu.memory_space<vmem>>, vector<1x32xf32>
    %c3 = arith.constant 3 : index
    %c0_180 = arith.constant 0 : index
    %498 = vector.load %arg5[%c3, %c0_180] : memref<4x32xf32, #tpu.memory_space<vmem>>, vector<1x1xf32>
    %499 = vector.extract_strided_slice %496 {offsets = [0, 0], sizes = [1, 32], strides = [1, 1]} : vector<16x32xf32> to vector<1x32xf32>
    %500 = arith.mulf %499, %497 : vector<1x32xf32>
    %cst_181 = arith.constant dense<0.000000e+00> : vector<1xf32>
    %501 = vector.multi_reduction <add>, %500, %cst_181 [1] : vector<1x32xf32> to vector<1xf32>
    %502 = vector.shape_cast %501 : vector<1xf32> to vector<1x1xf32>
    %503 = arith.addf %502, %498 : vector<1x1xf32>
    %504 = vector.extract_strided_slice %496 {offsets = [8, 0], sizes = [1, 32], strides = [1, 1]} : vector<16x32xf32> to vector<1x32xf32>
    %505 = arith.mulf %504, %497 : vector<1x32xf32>
    %cst_182 = arith.constant dense<0.000000e+00> : vector<1xf32>
    %506 = vector.multi_reduction <add>, %505, %cst_182 [1] : vector<1x32xf32> to vector<1xf32>
    %507 = vector.shape_cast %506 : vector<1xf32> to vector<1x1xf32>
    %508 = arith.addf %507, %498 : vector<1x1xf32>
    %509 = tpu.concatenate %503, %508 in 1 : vector<1x1xf32>, vector<1x1xf32> -> vector<1x2xf32>
    %cst_183 = arith.constant 0.000000e+00 : f32
    %510 = vector.broadcast %cst_183 : f32 to vector<1x8x128xf32>
    %c0_184 = arith.constant 0 : index
    %c0_185 = arith.constant 0 : index
    %c0_186 = arith.constant 0 : index
    %511 = vector.load %arg6[%c0_184, %c0_185, %c0_186] : memref<1x8x128xf32, #tpu.memory_space<vmem>>, vector<1x8x128xf32>
    tpu.vector_store %arg6[%c0_184, %c0_185, %c0_186], %510 {strides = array<i32>} : memref<1x8x128xf32, #tpu.memory_space<vmem>>, vector<1x8x128xf32>,
    %512 = vector.shape_cast %509 : vector<1x2xf32> to vector<1x1x2xf32>
    %c0_187 = arith.constant 0 : index
    %c0_188 = arith.constant 0 : index
    %c0_189 = arith.constant 0 : index
    %513 = vector.load %arg6[%c0_187, %c0_188, %c0_189] : memref<1x8x128xf32, #tpu.memory_space<vmem>>, vector<1x1x2xf32>
    tpu.vector_store %arg6[%c0_187, %c0_188, %c0_189], %512 {strides = array<i32>} : memref<1x8x128xf32, #tpu.memory_space<vmem>>, vector<1x1x2xf32>,
    return
  }
  func.func @transform_0(%arg0: i32) -> (i32, i32) {
    %c0_i32 = arith.constant 0 : i32
    %c0_i32_0 = arith.constant 0 : i32
    return %arg0, %c0_i32 : i32, i32
  }
  func.func @transform_1(%arg0: i32) -> (i32, i32, i32) {
    %c0_i32 = arith.constant 0 : i32
    %c0_i32_0 = arith.constant 0 : i32
    %c0_i32_1 = arith.constant 0 : i32
    return %arg0, %c0_i32, %c0_i32_0 : i32, i32, i32
  }
  func.func @transform_2(%arg0: i32) -> (i32, i32, i32) {
    %c0_i32 = arith.constant 0 : i32
    %c0_i32_0 = arith.constant 0 : i32
    %c0_i32_1 = arith.constant 0 : i32
    %c0_i32_2 = arith.constant 0 : i32
    return %c0_i32, %c0_i32_0, %c0_i32_1 : i32, i32, i32
  }
  func.func @transform_3(%arg0: i32) -> (i32, i32, i32) {
    %c0_i32 = arith.constant 0 : i32
    %c0_i32_0 = arith.constant 0 : i32
    %c0_i32_1 = arith.constant 0 : i32
    %c0_i32_2 = arith.constant 0 : i32
    return %c0_i32, %c0_i32_0, %c0_i32_1 : i32, i32, i32
  }
  func.func @transform_4(%arg0: i32) -> (i32, i32) {
    %c0_i32 = arith.constant 0 : i32
    %c0_i32_0 = arith.constant 0 : i32
    %c0_i32_1 = arith.constant 0 : i32
    return %c0_i32, %c0_i32_0 : i32, i32
  }
  func.func @transform_5(%arg0: i32) -> (i32, i32, i32) {
    %c0_i32 = arith.constant 0 : i32
    %c0_i32_0 = arith.constant 0 : i32
    %c0_i32_1 = arith.constant 0 : i32
    return %arg0, %c0_i32, %c0_i32_0 : i32, i32, i32
  }
}

</mosaic_0001>

<llo_original>
// kernel: vanilla_bert_ranker_forward.1
$region0: #{vanilla_bert_ranker_forward.1}
  #allocation0 [shape = 'u32[]', space=smem, size = 0x4, offset = 0x4, fixed_abs, tag = 'smem constant byte address 0x4 - core index']
  #allocation1 [shape = 'u32[144,128]{1,0:T(1,128)}', space=vmem, size = 0x12000, scoped, tag = 'internal scratch']
  %s0 = inlined_call_operand.vmem [shape: f32[32,32], index: 0, kind: input, shape index: {}]
  %s1 = inlined_call_operand.vmem [shape: f32[4,1,8], index: 1, kind: input, shape index: {}]
  %s2 = inlined_call_operand.vmem [shape: f32[2,201,32], index: 2, kind: input, shape index: {}]
  %s3 = inlined_call_operand.vmem [shape: f32[2,33,64], index: 3, kind: input, shape index: {}]
  %s4 = inlined_call_operand.vmem [shape: f32[4,32], index: 4, kind: input, shape index: {}]
  %s5 = inlined_call_operand.vmem [shape: f32[2,8,128], index: 5, kind: output, shape index: {}]
  %s6 = sld [smem:[#allocation0]]
  $region53: #{vanilla_bert_ranker_forward.1} parent=0
    _
  %s8 = ssub.s32 1, %s6
  %s9 = scalar_select 0, %s8, %s6
  loop: start=0, step=1, limit=4
  $region2: #{vanilla_bert_ranker_forward.1} parent=0 // loop_pre_header
    _
  $region3: #{vanilla_bert_ranker_forward.1} parent=0 // loop_header
    %s11 = sphi 0, %s15
    %p12 = scmp.ge.s32.totalorder %s11, 4
    %s21 = sphi 0, %s23
    %s24 = sphi 0, %s21
    %s25 = sphi 0, %s24
    %s41 = sphi 0, %s25
    %s47 = sphi 0, %s49
    %s50 = sphi 0, %s47
    %s51 = sphi 0, %s50
    %s67 = sphi 0, %s51
    %s71 = sphi 0, %s71
    %s73 = sphi 0, %s71
    %s74 = sphi 0, %s73
    %s88 = sphi 0, %s74
    %s92 = sphi 0, %s92
    %s94 = sphi 0, %s92
    %s95 = sphi 0, %s94
    %s109 = sphi 0, %s95
    %s113 = sphi 0, %s113
    %s115 = sphi 0, %s113
    %s116 = sphi 0, %s115
    %s130 = sphi 0, %s116
    %s136 = sphi 0, %s138
    %s139 = sphi 0, %s136
    %s140 = sphi 0, %s139
    %s156 = sphi 0, %s140
  $region4: #{vanilla_bert_ranker_forward.1} parent=0 // loop_header_branch
    %14 = sbr.rel (%p12) target = $region8
  $region5: #{vanilla_bert_ranker_forward.1} parent=0 // loop_body
    %s16 = ssub.s32 %s11, 1
    %s17 = ssub.s32 %s11, 2
    %s18 = sadd.s32 %s11, 1
    %s19 = ssub.s32 %s11, %s18
    %p20 = scmp.eq.s32.totalorder %s19, 0
    %s22 = sadd.s32 %s21, 1
    %s23 = scalar_select %p20, %s21, %s22
    %p26 = pneg %p20
    %p27 = scmp.eq.s32.totalorder %s11, 1
    %p28 = por %p26, %p27
    %p29 = scmp.ne.s32.totalorder %s21, %s24
    %p30 = scmp.eq.s32.totalorder %s11, 0
    %p31 = por %p29, %p30
    %p32 = scmp.ne.s32.totalorder %s21, %s24
    %p33 = scmp.eq.s32.totalorder %s16, 1
    %p34 = por %p32, %p33
    %p35 = scmp.ne.s32.totalorder %s24, %s25
    %p36 = scmp.eq.s32.totalorder %s16, 0
    %p37 = por %p35, %p36
    %p38 = scmp.ne.s32.totalorder %s24, %s25
    %p39 = scmp.eq.s32.totalorder %s17, 1
    %p40 = por %p38, %p39
    %p42 = scmp.ne.s32.totalorder %s25, %s41
    %p43 = scmp.eq.s32.totalorder %s17, 0
    %p44 = por %p42, %p43
    %s45 = ssub.s32 %s11, %s18
    %p46 = scmp.eq.s32.totalorder %s45, 0
    %s48 = sadd.s32 %s47, 1
    %s49 = scalar_select %p46, %s47, %s48
    %p52 = pneg %p46
    %p53 = scmp.eq.s32.totalorder %s11, 1
    %p54 = por %p52, %p53
    %p55 = scmp.ne.s32.totalorder %s47, %s50
    %p56 = scmp.eq.s32.totalorder %s11, 0
    %p57 = por %p55, %p56
    %p58 = scmp.ne.s32.totalorder %s47, %s50
    %p59 = scmp.eq.s32.totalorder %s16, 1
    %p60 = por %p58, %p59
    %p61 = scmp.ne.s32.totalorder %s50, %s51
    %p62 = scmp.eq.s32.totalorder %s16, 0
    %p63 = por %p61, %p62
    %p64 = scmp.ne.s32.totalorder %s50, %s51
    %p65 = scmp.eq.s32.totalorder %s17, 1
    %p66 = por %p64, %p65
    %p68 = scmp.ne.s32.totalorder %s51, %s67
    %p69 = scmp.eq.s32.totalorder %s17, 0
    %p70 = por %p68, %p69
    %s72 = sadd.s32 %s71, 1
    %p75 = scmp.eq.s32.totalorder %s11, 1
    %p76 = scmp.ne.s32.totalorder %s71, %s73
    %p77 = scmp.eq.s32.totalorder %s11, 0
    %p78 = por %p76, %p77
    %p79 = scmp.ne.s32.totalorder %s71, %s73
    %p80 = scmp.eq.s32.totalorder %s16, 1
    %p81 = por %p79, %p80
    %p82 = scmp.ne.s32.totalorder %s73, %s74
    %p83 = scmp.eq.s32.totalorder %s16, 0
    %p84 = por %p82, %p83
    %p85 = scmp.ne.s32.totalorder %s73, %s74
    %p86 = scmp.eq.s32.totalorder %s17, 1
    %p87 = por %p85, %p86
    %p89 = scmp.ne.s32.totalorder %s74, %s88
    %p90 = scmp.eq.s32.totalorder %s17, 0
    %p91 = por %p89, %p90
    %s93 = sadd.s32 %s92, 1
    %p96 = scmp.eq.s32.totalorder %s11, 1
    %p97 = scmp.ne.s32.totalorder %s92, %s94
    %p98 = scmp.eq.s32.totalorder %s11, 0
    %p99 = por %p97, %p98
    %p100 = scmp.ne.s32.totalorder %s92, %s94
    %p101 = scmp.eq.s32.totalorder %s16, 1
    %p102 = por %p100, %p101
    %p103 = scmp.ne.s32.totalorder %s94, %s95
    %p104 = scmp.eq.s32.totalorder %s16, 0
    %p105 = por %p103, %p104
    %p106 = scmp.ne.s32.totalorder %s94, %s95
    %p107 = scmp.eq.s32.totalorder %s17, 1
    %p108 = por %p106, %p107
    %p110 = scmp.ne.s32.totalorder %s95, %s109
    %p111 = scmp.eq.s32.totalorder %s17, 0
    %p112 = por %p110, %p111
    %s114 = sadd.s32 %s113, 1
    %p117 = scmp.eq.s32.totalorder %s11, 1
    %p118 = scmp.ne.s32.totalorder %s113, %s115
    %p119 = scmp.eq.s32.totalorder %s11, 0
    %p120 = por %p118, %p119
    %p121 = scmp.ne.s32.totalorder %s113, %s115
    %p122 = scmp.eq.s32.totalorder %s16, 1
    %p123 = por %p121, %p122
    %p124 = scmp.ne.s32.totalorder %s115, %s116
    %p125 = scmp.eq.s32.totalorder %s16, 0
    %p126 = por %p124, %p125
    %p127 = scmp.ne.s32.totalorder %s115, %s116
    %p128 = scmp.eq.s32.totalorder %s17, 1
    %p129 = por %p127, %p128
    %p131 = scmp.ne.s32.totalorder %s116, %s130
    %p132 = scmp.eq.s32.totalorder %s17, 0
    %p133 = por %p131, %p132
    %s134 = ssub.s32 %s11, %s18
    %p135 = scmp.eq.s32.totalorder %s134, 0
    %s137 = sadd.s32 %s136, 1
    %s138 = scalar_select %p135, %s136, %s137
    %p141 = pneg %p135
    %p142 = scmp.eq.s32.totalorder %s11, 1
    %p143 = por %p141, %p142
    %p144 = scmp.ne.s32.totalorder %s136, %s139
    %p145 = scmp.eq.s32.totalorder %s11, 0
    %p146 = por %p144, %p145
    %p147 = scmp.ne.s32.totalorder %s136, %s139
    %p148 = scmp.eq.s32.totalorder %s16, 1
    %p149 = por %p147, %p148
    %p150 = scmp.ne.s32.totalorder %s139, %s140
    %p151 = scmp.eq.s32.totalorder %s16, 0
    %p152 = por %p150, %p151
    %p153 = scmp.ne.s32.totalorder %s139, %s140
    %p154 = scmp.eq.s32.totalorder %s17, 1
    %p155 = por %p153, %p154
    %p157 = scmp.ne.s32.totalorder %s140, %s156
    %p158 = scmp.eq.s32.totalorder %s17, 0
    %p159 = por %p157, %p158
    %p160 = scmp.le.s32.totalorder 1, %s11
    %p161 = scmp.lt.s32.totalorder %s11, 3
    %p162 = pnand %p160, %p161
    %p163 = pneg %p162
    // Predicated region
    $region9: #{vanilla_bert_ranker_forward.1} parent=5 // pred_check
      _
    $region10: #{vanilla_bert_ranker_forward.1} parent=5 // pred_check_branch
      %165 = sbr.rel (%p162) target = $region12
    $region11: #{vanilla_bert_ranker_forward.1} parent=5 // pred_region
      %s166 = ssub.s32 %s11, 1
      // Predicated region
      $region13: #{vanilla_bert_ranker_forward.1} parent=11 // pred_check
        %p167 = pneg %p84
      $region14: #{vanilla_bert_ranker_forward.1} parent=11 // pred_check_branch
        %169 = sbr.rel (%p167) target = $region16
      $region15: #{vanilla_bert_ranker_forward.1} parent=11 // pred_region
        _
      $region16: #{vanilla_bert_ranker_forward.1} parent=11 // pred_fallthru
        _
      // Predicated region
      $region17: #{vanilla_bert_ranker_forward.1} parent=11 // pred_check
        %p170 = pneg %p105
      $region18: #{vanilla_bert_ranker_forward.1} parent=11 // pred_check_branch
        %172 = sbr.rel (%p170) target = $region20
      $region19: #{vanilla_bert_ranker_forward.1} parent=11 // pred_region
        _
      $region20: #{vanilla_bert_ranker_forward.1} parent=11 // pred_fallthru
        _
      // Predicated region
      $region21: #{vanilla_bert_ranker_forward.1} parent=11 // pred_check
        %p173 = pneg %p126
      $region22: #{vanilla_bert_ranker_forward.1} parent=11 // pred_check_branch
        %175 = sbr.rel (%p173) target = $region24
      $region23: #{vanilla_bert_ranker_forward.1} parent=11 // pred_region
        _
      $region24: #{vanilla_bert_ranker_forward.1} parent=11 // pred_fallthru
        _
    $region12: #{vanilla_bert_ranker_forward.1} parent=5 // pred_fallthru
      _
    %p176 = scmp.lt.s32.totalorder %s11, 2
    // Predicated region
    $region25: #{vanilla_bert_ranker_forward.1} parent=5 // pred_check
      %p177 = pneg %p176
    $region26: #{vanilla_bert_ranker_forward.1} parent=5 // pred_check_branch
      %179 = sbr.rel (%p177) target = $region28
    $region27: #{vanilla_bert_ranker_forward.1} parent=5 // pred_region
      // Predicated region
      $region29: #{vanilla_bert_ranker_forward.1} parent=27 // pred_check
        %p180 = pneg %p31
      $region30: #{vanilla_bert_ranker_forward.1} parent=27 // pred_check_branch
        %182 = sbr.rel (%p180) target = $region32
      $region31: #{vanilla_bert_ranker_forward.1} parent=27 // pred_region
        %s183 = smul.u32 2, %s11
        %p184 = scmp.lt.s32.totalorder %s183, 3
        %s185 = scalar_select %p184, %s183, 3
        %s186 = smul.addr %s185, 8
        %s187 = scalar_lea.vmem %s0, %s186
        %s188 = smul.u32 2, %s11
      $region32: #{vanilla_bert_ranker_forward.1} parent=27 // pred_fallthru
        _
      // Predicated region
      $region33: #{vanilla_bert_ranker_forward.1} parent=27 // pred_check
        %p189 = pneg %p57
      $region34: #{vanilla_bert_ranker_forward.1} parent=27 // pred_check_branch
        %191 = sbr.rel (%p189) target = $region36
      $region35: #{vanilla_bert_ranker_forward.1} parent=27 // pred_region
        %s192 = smul.u32 2, %s11
        %p193 = scmp.lt.s32.totalorder %s192, 3
        %s194 = scalar_select %p193, %s192, 3
        %s195 = scalar_lea.vmem %s1, %s194
        %s196 = smul.u32 2, %s11
      $region36: #{vanilla_bert_ranker_forward.1} parent=27 // pred_fallthru
        _
    $region28: #{vanilla_bert_ranker_forward.1} parent=5 // pred_fallthru
      _
    %p197 = scmp.le.s32.totalorder 1, %s11
    %p198 = scmp.lt.s32.totalorder %s11, 3
    %p199 = pnand %p197, %p198
    %p200 = pneg %p199
    // Predicated region
    $region37: #{vanilla_bert_ranker_forward.1} parent=5 // pred_check
      _
    $region38: #{vanilla_bert_ranker_forward.1} parent=5 // pred_check_branch
      %202 = sbr.rel (%p199) target = $region40
    $region39: #{vanilla_bert_ranker_forward.1} parent=5 // pred_region
      %s203 = ssub.s32 %s11, 1
      %s204 = smul.u32 2, %s16
      %p205 = scmp.lt.s32.totalorder %s204, 3
      %s206 = scalar_select %p205, %s204, 3
      %s207 = smul.addr %s206, 8
      %s208 = scalar_lea.vmem %s0, %s207
      %p209 = pneg %p37
      %p210 = pneg %p34
      %s211 = smul.u32 2, %s16
      %p212 = scmp.lt.s32.totalorder %s211, 3
      %s213 = scalar_select %p212, %s211, 3
      %s214 = scalar_lea.vmem %s1, %s213
      %p215 = pneg %p63
      %p216 = pneg %p60
      %p217 = pneg %p84
      %p218 = pneg %p81
      %p219 = pneg %p105
      %p220 = pneg %p102
      %p221 = pneg %p126
      %p222 = pneg %p123
      %p223 = pneg %p152
      %p224 = pneg %p149
      %p225 = scmp.lt.s32.totalorder %s16, 1
      %s226 = scalar_select %p225, %s16, 1
      %s227 = smul.addr %s226, 8
      %s228 = scalar_lea.vmem %s5, %s227
      %s229 = smul.u32 2, %s16
      %p230 = scmp.lt.s32.totalorder %s229, 3
      %s231 = scalar_select %p230, %s229, 3
      %s232 = smul.addr %s231, 8
      %s233 = scalar_lea.vmem %s0, %s232
      %s234 = smul.u32 2, %s16
      %s235 = smul.u32 2, %s16
      %p236 = scmp.lt.s32.totalorder %s235, 3
      %s237 = scalar_select %p236, %s235, 3
      %s238 = scalar_lea.vmem %s1, %s237
      %s239 = smul.u32 2, %s16
      %p240 = scmp.lt.s32.totalorder %s16, 1
      %s241 = scalar_select %p240, %s16, 1
      %s242 = smul.addr %s241, 8
      %s243 = scalar_lea.vmem %s5, %s242
      %v245 = vld [vmem:[%s233] sm:$0xff]
      %v246 = vld [vmem:[%s233 + $0x8] sm:$0xff]
      %v247 = vld [vmem:[%s4] sm:$0x1]
      %v248 = vld [vmem:[%s4 + $0x1] sm:$0x1]
      %vm249 = vcmask 261120
      %v250 = vsel %vm249, %v245, 0.0
      %251 = vadd.xlane.f32.xlu0 %v250
      %v252 = vpop.xlane.xlu0 %251
      %v253 = vsel %vm249, %v246, 0.0
      %254 = vadd.xlane.f32.xlu0 %v253
      %v255 = vpop.xlane.xlu0 %254
      %v256 = vrcp.pop 32.0
      %v257 = vmul.f32 %v252, %v256
      %v258 = vmul.f32 %v255, %v256
      %v259 = vsub.f32 %v245, %v257
      %v260 = vsub.f32 %v246, %v258
      %v261 = vmul.f32 %v259, %v259
      %v262 = vmul.f32 %v260, %v260
      %v263 = vsel %vm249, %v261, 0.0
      %264 = vadd.xlane.f32.xlu0 %v263
      %v265 = vpop.xlane.xlu0 %264
      %v266 = vsel %vm249, %v262, 0.0
      %267 = vadd.xlane.f32.xlu0 %v266
      %v268 = vpop.xlane.xlu0 %267
      %v269 = vmul.f32 %v265, %v256
      %v270 = vmul.f32 %v268, %v256
      %v271 = vadd.f32 %v269, 1e-12
      %v272 = vadd.f32 %v270, 1e-12
      %v273 = vrsqrt.pop %v271
      %v274 = vrsqrt.pop %v272
      %v275 = vmul.f32 %v259, %v273
      %v276 = vmul.f32 %v260, %v274
      %v277 = vlaneseq
      %v278 = vshrl.u32 %v277, 7
      %v279 = vsub.s32 0, %v278
      %v280 = vrot.slane %v247, %v279
      %v281 = vmul.f32 %v275, %v280
      %v282 = vmul.f32 %v276, %v280
      %v283 = vlaneseq
      %v284 = vshrl.u32 %v283, 7
      %v285 = vsub.s32 0, %v284
      %v286 = vrot.slane %v248, %v285
      %v287 = vadd.f32 %v281, %v286
      %v288 = vadd.f32 %v282, %v286
      %v289 = vld [vmem:[%s238] sm:$0x1]
      %v290 = vld [vmem:[%s238 + $0x1] sm:$0x1]
      %v291 = vlaneseq
      %v292 = vand.u32 %v291, 127
      %vm293 = vcmp.ge.s32.totalorder %v292, 0
      %vm294 = vcmp.lt.s32.totalorder %v292, 8
      %vm295 = vmand %vm293, %vm294
      %v296 = vsel %vm295, 1, 0
      %v297 = vcvt.s32.f32 %v296
      %vm298 = vcmp.ge.s32.totalorder %v292, 8
      %vm299 = vcmp.lt.s32.totalorder %v292, 16
      %vm300 = vmand %vm298, %vm299
      %v301 = vsel %vm300, 1, 0
      %v302 = vcvt.s32.f32 %v301
      %vm303 = vcmp.ge.s32.totalorder %v292, 16
      %vm304 = vcmp.lt.s32.totalorder %v292, 24
      %vm305 = vmand %vm303, %vm304
      %v306 = vsel %vm305, 1, 0
      %v307 = vcvt.s32.f32 %v306
      %vm308 = vcmp.ge.s32.totalorder %v292, 24
      %vm309 = vcmp.lt.s32.totalorder %v292, 32
      %vm310 = vmand %vm308, %vm309
      %v311 = vsel %vm310, 1, 0
      %v312 = vcvt.s32.f32 %v311
      %v313 = vld [vmem:[%s2] sm:$0xff]
      %v314 = vld [vmem:[%s2 + $0x8] sm:$0xff]
      %v315 = vld [vmem:[%s2 + $0x10] sm:$0xff]
      %v316 = vld [vmem:[%s2 + $0x18] sm:$0xff]
      %v317 = vpack.c.bf16 %v314, %v313
      %v318 = vpack.c.bf16 %v316, %v315
      %v319 = vld [vmem:[%s2 + $0x20] sm:$0xff]
      %v320 = vld [vmem:[%s2 + $0x28] sm:$0xff]
      %v321 = vld [vmem:[%s2 + $0x30] sm:$0xff]
      %v322 = vld [vmem:[%s2 + $0x38] sm:$0xff]
      %v323 = vpack.c.bf16 %v320, %v319
      %v324 = vpack.c.bf16 %v322, %v321
      %v325 = vld [vmem:[%s2 + $0x40] sm:$0xff]
      %v326 = vld [vmem:[%s2 + $0x48] sm:$0xff]
      %v327 = vld [vmem:[%s2 + $0x50] sm:$0xff]
      %v328 = vld [vmem:[%s2 + $0x58] sm:$0xff]
      %v329 = vpack.c.bf16 %v326, %v325
      %v330 = vpack.c.bf16 %v328, %v327
      %v331 = vld [vmem:[%s2 + $0x60] sm:$0xff]
      %v332 = vld [vmem:[%s2 + $0x68] sm:$0xff]
      %v333 = vld [vmem:[%s2 + $0x70] sm:$0xff]
      %v334 = vld [vmem:[%s2 + $0x78] sm:$0xff]
      %v335 = vpack.c.bf16 %v332, %v331
      %v336 = vpack.c.bf16 %v334, %v333
      %v337 = vld [vmem:[%s2 + $0x80] sm:$0xff]
      %v338 = vld [vmem:[%s2 + $0x88] sm:$0xff]
      %v339 = vld [vmem:[%s2 + $0x90] sm:$0xff]
      %v340 = vld [vmem:[%s2 + $0x98] sm:$0xff]
      %v341 = vld [vmem:[%s2 + $0xa0] sm:$0xff]
      %v342 = vld [vmem:[%s2 + $0xa8] sm:$0xff]
      %v343 = vld [vmem:[%s2 + $0xb0] sm:$0xff]
      %v344 = vld [vmem:[%s2 + $0xb8] sm:$0xff]
      %v345 = vpack.c.bf16 %v338, %v337
      %v346 = vpack.c.bf16 %v340, %v339
      %v347 = vpack.c.bf16 %v342, %v341
      %v348 = vpack.c.bf16 %v344, %v343
      %v349 = vld [vmem:[%s2 + $0xc0] sm:$0x1]
      %v350 = vld [vmem:[%s2 + $0xc1] sm:$0x1]
      %v351 = vld [vmem:[%s2 + $0xc2] sm:$0x1]
      %v352 = vld [vmem:[%s2 + $0xc3] sm:$0x1]
      %v353 = vld [vmem:[%s2 + $0xc4] sm:$0x1]
      %v354 = vld [vmem:[%s2 + $0xc5] sm:$0x1]
      %v355 = vld [vmem:[%s2 + $0xc6] sm:$0x1]
      %v356 = vld [vmem:[%s2 + $0xc7] sm:$0x1]
      %v357 = vld [vmem:[%s2 + $0xc8] sm:$0x1]
      %v358 = vld [vmem:[%s3] sm:$0xff]
      %v359 = vld [vmem:[%s3 + $0x8] sm:$0xff]
      %v360 = vld [vmem:[%s3 + $0x10] sm:$0xff]
      %v361 = vld [vmem:[%s3 + $0x18] sm:$0xff]
      %v362 = vpack.c.bf16 %v359, %v358
      %v363 = vpack.c.bf16 %v361, %v360
      %v364 = vld [vmem:[%s3 + $0x20] sm:$0x1]
      %v365 = vpack.c.bf16 %v288, %v287
      %v366 = vlaneseq
      %v367 = vshrl.u32 %v366, 7
      %v368 = vsub.s32 0, %v367
      %v369 = vrot.slane %v349, %v368
      %v371 = vsel %vm249, %v365, 0
      %373 = vmatprep.subr.bf16.mxu0 0
      %374 = vmatpush1.bf16.msra.mxu0 %v317
      %375 = vmatprep.subr.bf16.mxu0 0
      %376 = vmatpush1.bf16.msra.mxu0 %v318
      %377 = vmatprep.subr.bf16.mxu0 0
      %378 = vmatpush1.bf16.msra.mxu0 0
      %379 = vmatprep.subr.bf16.mxu0 0
      %380 = vmatpush1.bf16.msra.mxu0 0
      %381 = vmatprep.subr.bf16.mxu0 0
      %382 = vmatpush1.bf16.msra.mxu0 0
      %383 = vmatprep.subr.bf16.mxu0 0
      %384 = vmatpush1.bf16.msra.mxu0 0
      %385 = vmatprep.subr.bf16.mxu0 0
      %386 = vmatpush1.bf16.msra.mxu0 0
      %387 = vmatprep.subr.bf16.mxu0 0
      %388 = vmatpush1.bf16.msra.mxu0 0
      %389 = vmatprep.subr.bf16.mxu0 0
      %390 = vmatpush1.bf16.msra.mxu0 0
      %391 = vmatprep.subr.bf16.mxu0 0
      %392 = vmatpush1.bf16.msra.mxu0 0
      %393 = vmatprep.subr.bf16.mxu0 0
      %394 = vmatpush1.bf16.msra.mxu0 0
      %395 = vmatprep.subr.bf16.mxu0 0
      %396 = vmatpush1.bf16.msra.mxu0 0
      %397 = vmatprep.subr.bf16.mxu0 0
      %398 = vmatpush1.bf16.msra.mxu0 0
      %399 = vmatprep.subr.bf16.mxu0 0
      %400 = vmatpush1.bf16.msra.mxu0 0
      %401 = vmatprep.subr.bf16.mxu0 0
      %402 = vmatpush1.bf16.msra.mxu0 0
      %403 = vmatprep.subr.bf16.mxu0 0
      %404 = vmatpush1.bf16.msra.mxu0 0
      %405 = vmatprep.mubr.bf16.mxu0 0
      %406 = vmatmul.mubr.bf16.gmra.mrb[0].mxu0 %v371
      %v407 = vpop.f32.mrb[0].mxu0
      %v408 = vadd.f32 %v369, %v407
      %v409 = vpop.f32.mrb[0].mxu0
      %v410 = vpop.f32.mrb[0].mxu0
      %v411 = vadd.f32 %v369, %v410
      %v412 = vpop.f32.mrb[0].mxu0
      %413 = vdwg.mxu0
      %v414 = vlaneseq
      %v415 = vshrl.u32 %v414, 7
      %v416 = vsub.s32 0, %v415
      %v417 = vrot.slane %v350, %v416
      %418 = vmatprep.subr.bf16.mxu0 0
      %419 = vmatpush1.bf16.msra.mxu0 %v323
      %420 = vmatprep.subr.bf16.mxu0 0
      %421 = vmatpush1.bf16.msra.mxu0 %v324
      %422 = vmatprep.subr.bf16.mxu0 0
      %423 = vmatpush1.bf16.msra.mxu0 0
      %424 = vmatprep.subr.bf16.mxu0 0
      %425 = vmatpush1.bf16.msra.mxu0 0
      %426 = vmatprep.subr.bf16.mxu0 0
      %427 = vmatpush1.bf16.msra.mxu0 0
      %428 = vmatprep.subr.bf16.mxu0 0
      %429 = vmatpush1.bf16.msra.mxu0 0
      %430 = vmatprep.subr.bf16.mxu0 0
      %431 = vmatpush1.bf16.msra.mxu0 0
      %432 = vmatprep.subr.bf16.mxu0 0
      %433 = vmatpush1.bf16.msra.mxu0 0
      %434 = vmatprep.subr.bf16.mxu0 0
      %435 = vmatpush1.bf16.msra.mxu0 0
      %436 = vmatprep.subr.bf16.mxu0 0
      %437 = vmatpush1.bf16.msra.mxu0 0
      %438 = vmatprep.subr.bf16.mxu0 0
      %439 = vmatpush1.bf16.msra.mxu0 0
      %440 = vmatprep.subr.bf16.mxu0 0
      %441 = vmatpush1.bf16.msra.mxu0 0
      %442 = vmatprep.subr.bf16.mxu0 0
      %443 = vmatpush1.bf16.msra.mxu0 0
      %444 = vmatprep.subr.bf16.mxu0 0
      %445 = vmatpush1.bf16.msra.mxu0 0
      %446 = vmatprep.subr.bf16.mxu0 0
      %447 = vmatpush1.bf16.msra.mxu0 0
      %448 = vmatprep.subr.bf16.mxu0 0
      %449 = vmatpush1.bf16.msra.mxu0 0
      %450 = vmatprep.mubr.bf16.mxu0 0
      %451 = vmatmul.mubr.bf16.gmra.mrb[0].mxu0 %v371
      %v452 = vpop.f32.mrb[0].mxu0
      %v453 = vadd.f32 %v417, %v452
      %v454 = vpop.f32.mrb[0].mxu0
      %v455 = vpop.f32.mrb[0].mxu0
      %v456 = vadd.f32 %v417, %v455
      %v457 = vpop.f32.mrb[0].mxu0
      %458 = vdwg.mxu0
      %v459 = vlaneseq
      %v460 = vshrl.u32 %v459, 7
      %v461 = vsub.s32 0, %v460
      %v462 = vrot.slane %v351, %v461
      %463 = vmatprep.subr.bf16.mxu0 0
      %464 = vmatpush1.bf16.msra.mxu0 %v329
      %465 = vmatprep.subr.bf16.mxu0 0
      %466 = vmatpush1.bf16.msra.mxu0 %v330
      %467 = vmatprep.subr.bf16.mxu0 0
      %468 = vmatpush1.bf16.msra.mxu0 0
      %469 = vmatprep.subr.bf16.mxu0 0
      %470 = vmatpush1.bf16.msra.mxu0 0
      %471 = vmatprep.subr.bf16.mxu0 0
      %472 = vmatpush1.bf16.msra.mxu0 0
      %473 = vmatprep.subr.bf16.mxu0 0
      %474 = vmatpush1.bf16.msra.mxu0 0
      %475 = vmatprep.subr.bf16.mxu0 0
      %476 = vmatpush1.bf16.msra.mxu0 0
      %477 = vmatprep.subr.bf16.mxu0 0
      %478 = vmatpush1.bf16.msra.mxu0 0
      %479 = vmatprep.subr.bf16.mxu0 0
      %480 = vmatpush1.bf16.msra.mxu0 0
      %481 = vmatprep.subr.bf16.mxu0 0
      %482 = vmatpush1.bf16.msra.mxu0 0
      %483 = vmatprep.subr.bf16.mxu0 0
      %484 = vmatpush1.bf16.msra.mxu0 0
      %485 = vmatprep.subr.bf16.mxu0 0
      %486 = vmatpush1.bf16.msra.mxu0 0
      %487 = vmatprep.subr.bf16.mxu0 0
      %488 = vmatpush1.bf16.msra.mxu0 0
      %489 = vmatprep.subr.bf16.mxu0 0
      %490 = vmatpush1.bf16.msra.mxu0 0
      %491 = vmatprep.subr.bf16.mxu0 0
      %492 = vmatpush1.bf16.msra.mxu0 0
      %493 = vmatprep.subr.bf16.mxu0 0
      %494 = vmatpush1.bf16.msra.mxu0 0
      %495 = vmatprep.mubr.bf16.mxu0 0
      %496 = vmatmul.mubr.bf16.gmra.mrb[0].mxu0 %v371
      %v497 = vpop.f32.mrb[0].mxu0
      %v498 = vadd.f32 %v462, %v497
      %v499 = vpop.f32.mrb[0].mxu0
      %v500 = vpop.f32.mrb[0].mxu0
      %v501 = vadd.f32 %v462, %v500
      %v502 = vpop.f32.mrb[0].mxu0
      %503 = vdwg.mxu0
      %v504 = vpack.c.bf16 %v453, %v453
      %v505 = vpack.c.bf16 %v456, %v456
      %v506 = vmul.f32 %v408, %v297
      %v507 = vmul.f32 %v411, %v297
      %v508 = vpack.c.bf16 %v506, %v506
      %v509 = vpack.c.bf16 %v507, %v507
      %v510 = vmul.f32 %v498, %v297
      %v511 = vmul.f32 %v501, %v297
      %v512 = vpack.c.bf16 %v510, %v510
      %v513 = vpack.c.bf16 %v511, %v511
      %v515 = vsel %vm249, %v508, 0
      %v518 = vsel %vm249, %v504, 0
      %520 = vmatprep.subr.bf16.mxu0 0
      %521 = vmatpush1.bf16.xpose.msra.mxu0 %v518
      %522 = vmatprep.subr.bf16.mxu0 0
      %523 = vmatpush1.bf16.xpose.msra.mxu0 0
      %524 = vmatprep.subr.bf16.mxu0 0
      %525 = vmatpush1.bf16.xpose.msra.mxu0 0
      %526 = vmatprep.subr.bf16.mxu0 0
      %527 = vmatpush1.bf16.xpose.msra.mxu0 0
      %528 = vmatprep.subr.bf16.mxu0 0
      %529 = vmatpush1.bf16.xpose.msra.mxu0 0
      %530 = vmatprep.subr.bf16.mxu0 0
      %531 = vmatpush1.bf16.xpose.msra.mxu0 0
      %532 = vmatprep.subr.bf16.mxu0 0
      %533 = vmatpush1.bf16.xpose.msra.mxu0 0
      %534 = vmatprep.subr.bf16.mxu0 0
      %535 = vmatpush1.bf16.xpose.msra.mxu0 0
      %536 = vmatprep.subr.bf16.mxu0 0
      %537 = vmatpush1.bf16.xpose.msra.mxu0 0
      %538 = vmatprep.subr.bf16.mxu0 0
      %539 = vmatpush1.bf16.xpose.msra.mxu0 0
      %540 = vmatprep.subr.bf16.mxu0 0
      %541 = vmatpush1.bf16.xpose.msra.mxu0 0
      %542 = vmatprep.subr.bf16.mxu0 0
      %543 = vmatpush1.bf16.xpose.msra.mxu0 0
      %544 = vmatprep.subr.bf16.mxu0 0
      %545 = vmatpush1.bf16.xpose.msra.mxu0 0
      %546 = vmatprep.subr.bf16.mxu0 0
      %547 = vmatpush1.bf16.xpose.msra.mxu0 0
      %548 = vmatprep.subr.bf16.mxu0 0
      %549 = vmatpush1.bf16.xpose.msra.mxu0 0
      %550 = vmatprep.subr.bf16.mxu0 0
      %551 = vmatpush1.bf16.xpose.msra.mxu0 0
      %552 = vmatprep.mubr.bf16.mxu0 0
      %553 = vmatmul.mubr.bf16.gmra.mrb[0].mxu0 %v515
      %v554 = vpop.f32.mrb[0].mxu0
      %v555 = vadd.f32 0.0, %v554
      %v556 = vpop.f32.mrb[0].mxu0
      %v557 = vpop.f32.mrb[0].mxu0
      %v558 = vpop.f32.mrb[0].mxu0
      %559 = vdwg.mxu0
      %v561 = vsel %vm249, %v509, 0
      %v564 = vsel %vm249, %v505, 0
      %566 = vmatprep.subr.bf16.mxu0 0
      %567 = vmatpush1.bf16.xpose.msra.mxu0 %v564
      %568 = vmatprep.subr.bf16.mxu0 0
      %569 = vmatpush1.bf16.xpose.msra.mxu0 0
      %570 = vmatprep.subr.bf16.mxu0 0
      %571 = vmatpush1.bf16.xpose.msra.mxu0 0
      %572 = vmatprep.subr.bf16.mxu0 0
      %573 = vmatpush1.bf16.xpose.msra.mxu0 0
      %574 = vmatprep.subr.bf16.mxu0 0
      %575 = vmatpush1.bf16.xpose.msra.mxu0 0
      %576 = vmatprep.subr.bf16.mxu0 0
      %577 = vmatpush1.bf16.xpose.msra.mxu0 0
      %578 = vmatprep.subr.bf16.mxu0 0
      %579 = vmatpush1.bf16.xpose.msra.mxu0 0
      %580 = vmatprep.subr.bf16.mxu0 0
      %581 = vmatpush1.bf16.xpose.msra.mxu0 0
      %582 = vmatprep.subr.bf16.mxu0 0
      %583 = vmatpush1.bf16.xpose.msra.mxu0 0
      %584 = vmatprep.subr.bf16.mxu0 0
      %585 = vmatpush1.bf16.xpose.msra.mxu0 0
      %586 = vmatprep.subr.bf16.mxu0 0
      %587 = vmatpush1.bf16.xpose.msra.mxu0 0
      %588 = vmatprep.subr.bf16.mxu0 0
      %589 = vmatpush1.bf16.xpose.msra.mxu0 0
      %590 = vmatprep.subr.bf16.mxu0 0
      %591 = vmatpush1.bf16.xpose.msra.mxu0 0
      %592 = vmatprep.subr.bf16.mxu0 0
      %593 = vmatpush1.bf16.xpose.msra.mxu0 0
      %594 = vmatprep.subr.bf16.mxu0 0
      %595 = vmatpush1.bf16.xpose.msra.mxu0 0
      %596 = vmatprep.subr.bf16.mxu0 0
      %597 = vmatpush1.bf16.xpose.msra.mxu0 0
      %598 = vmatprep.mubr.bf16.mxu0 0
      %599 = vmatmul.mubr.bf16.gmra.mrb[0].mxu0 %v561
      %v600 = vpop.f32.mrb[0].mxu0
      %v601 = vadd.f32 0.0, %v600
      %v602 = vpop.f32.mrb[0].mxu0
      %v603 = vpop.f32.mrb[0].mxu0
      %v604 = vpop.f32.mrb[0].mxu0
      %605 = vdwg.mxu0
      %v606 = vmul.f32 %v555, 0.35355338
      %v607 = vmul.f32 %v601, 0.35355338
      %v610 = vlaneseq
      %v611 = vshrl.u32 %v610, 7
      %v612 = vsub.s32 0, %v611
      %v613 = vrot.slane %v289, %v612
      %v614 = vlaneseq
      %v615 = vshrl.u32 %v614, 7
      %v616 = vsub.s32 0, %v615
      %v617 = vrot.slane %v290, %v616
      %v620 = vadd.f32 %v606, %v613
      %v621 = vadd.f32 %v607, %v617
      %vm622 = vcmask 64512
      %v623 = vsel %vm622, %v620, -inf
      %624 = vmax.xlane.f32.xlu0 %v623
      %v625 = vpop.xlane.xlu0 %624
      %v626 = vsel %vm622, %v621, -inf
      %627 = vmax.xlane.f32.xlu0 %v626
      %v628 = vpop.xlane.xlu0 %627
      %v629 = vsub.f32 %v620, %v625
      %v630 = vsub.f32 %v621, %v628
      %v631 = vmul.f32 %v629, 1.442695
      %v632 = vpow.pop %v631
      %v633 = vmul.f32 %v630, 1.442695
      %v634 = vpow.pop %v633
      %v635 = vsel %vm622, %v632, 0.0
      %636 = vadd.xlane.f32.xlu0 %v635
      %v637 = vpop.xlane.xlu0 %636
      %v638 = vsel %vm622, %v634, 0.0
      %639 = vadd.xlane.f32.xlu0 %v638
      %v640 = vpop.xlane.xlu0 %639
      %v641 = vrcp.pop %v637
      %v642 = vrcp.pop %v640
      %v643 = vmul.f32 %v632, %v641
      %v644 = vmul.f32 %v634, %v642
      %v645 = vpack.c.bf16 %v643, %v643
      %v646 = vpack.c.bf16 %v644, %v644
      %v647 = vmul.f32 %v408, %v302
      %v648 = vmul.f32 %v411, %v302
      %v649 = vpack.c.bf16 %v647, %v647
      %v650 = vpack.c.bf16 %v648, %v648
      %v651 = vmul.f32 %v498, %v302
      %v652 = vmul.f32 %v501, %v302
      %v653 = vpack.c.bf16 %v651, %v651
      %v654 = vpack.c.bf16 %v652, %v652
      %v656 = vsel %vm249, %v649, 0
      %658 = vmatprep.subr.bf16.mxu0 0
      %659 = vmatpush1.bf16.xpose.msra.mxu0 %v518
      %660 = vmatprep.subr.bf16.mxu0 0
      %661 = vmatpush1.bf16.xpose.msra.mxu0 0
      %662 = vmatprep.subr.bf16.mxu0 0
      %663 = vmatpush1.bf16.xpose.msra.mxu0 0
      %664 = vmatprep.subr.bf16.mxu0 0
      %665 = vmatpush1.bf16.xpose.msra.mxu0 0
      %666 = vmatprep.subr.bf16.mxu0 0
      %667 = vmatpush1.bf16.xpose.msra.mxu0 0
      %668 = vmatprep.subr.bf16.mxu0 0
      %669 = vmatpush1.bf16.xpose.msra.mxu0 0
      %670 = vmatprep.subr.bf16.mxu0 0
      %671 = vmatpush1.bf16.xpose.msra.mxu0 0
      %672 = vmatprep.subr.bf16.mxu0 0
      %673 = vmatpush1.bf16.xpose.msra.mxu0 0
      %674 = vmatprep.subr.bf16.mxu0 0
      %675 = vmatpush1.bf16.xpose.msra.mxu0 0
      %676 = vmatprep.subr.bf16.mxu0 0
      %677 = vmatpush1.bf16.xpose.msra.mxu0 0
      %678 = vmatprep.subr.bf16.mxu0 0
      %679 = vmatpush1.bf16.xpose.msra.mxu0 0
      %680 = vmatprep.subr.bf16.mxu0 0
      %681 = vmatpush1.bf16.xpose.msra.mxu0 0
      %682 = vmatprep.subr.bf16.mxu0 0
      %683 = vmatpush1.bf16.xpose.msra.mxu0 0
      %684 = vmatprep.subr.bf16.mxu0 0
      %685 = vmatpush1.bf16.xpose.msra.mxu0 0
      %686 = vmatprep.subr.bf16.mxu0 0
      %687 = vmatpush1.bf16.xpose.msra.mxu0 0
      %688 = vmatprep.subr.bf16.mxu0 0
      %689 = vmatpush1.bf16.xpose.msra.mxu0 0
      %690 = vmatprep.mubr.bf16.mxu0 0
      %691 = vmatmul.mubr.bf16.gmra.mrb[0].mxu0 %v656
      %v692 = vpop.f32.mrb[0].mxu0
      %v693 = vadd.f32 0.0, %v692
      %v694 = vpop.f32.mrb[0].mxu0
      %v695 = vpop.f32.mrb[0].mxu0
      %v696 = vpop.f32.mrb[0].mxu0
      %697 = vdwg.mxu0
      %v699 = vsel %vm249, %v650, 0
      %701 = vmatprep.subr.bf16.mxu0 0
      %702 = vmatpush1.bf16.xpose.msra.mxu0 %v564
      %703 = vmatprep.subr.bf16.mxu0 0
      %704 = vmatpush1.bf16.xpose.msra.mxu0 0
      %705 = vmatprep.subr.bf16.mxu0 0
      %706 = vmatpush1.bf16.xpose.msra.mxu0 0
      %707 = vmatprep.subr.bf16.mxu0 0
      %708 = vmatpush1.bf16.xpose.msra.mxu0 0
      %709 = vmatprep.subr.bf16.mxu0 0
      %710 = vmatpush1.bf16.xpose.msra.mxu0 0
      %711 = vmatprep.subr.bf16.mxu0 0
      %712 = vmatpush1.bf16.xpose.msra.mxu0 0
      %713 = vmatprep.subr.bf16.mxu0 0
      %714 = vmatpush1.bf16.xpose.msra.mxu0 0
      %715 = vmatprep.subr.bf16.mxu0 0
      %716 = vmatpush1.bf16.xpose.msra.mxu0 0
      %717 = vmatprep.subr.bf16.mxu0 0
      %718 = vmatpush1.bf16.xpose.msra.mxu0 0
      %719 = vmatprep.subr.bf16.mxu0 0
      %720 = vmatpush1.bf16.xpose.msra.mxu0 0
      %721 = vmatprep.subr.bf16.mxu0 0
      %722 = vmatpush1.bf16.xpose.msra.mxu0 0
      %723 = vmatprep.subr.bf16.mxu0 0
      %724 = vmatpush1.bf16.xpose.msra.mxu0 0
      %725 = vmatprep.subr.bf16.mxu0 0
      %726 = vmatpush1.bf16.xpose.msra.mxu0 0
      %727 = vmatprep.subr.bf16.mxu0 0
      %728 = vmatpush1.bf16.xpose.msra.mxu0 0
      %729 = vmatprep.subr.bf16.mxu0 0
      %730 = vmatpush1.bf16.xpose.msra.mxu0 0
      %731 = vmatprep.subr.bf16.mxu0 0
      %732 = vmatpush1.bf16.xpose.msra.mxu0 0
      %733 = vmatprep.mubr.bf16.mxu0 0
      %734 = vmatmul.mubr.bf16.gmra.mrb[0].mxu0 %v699
      %v735 = vpop.f32.mrb[0].mxu0
      %v736 = vadd.f32 0.0, %v735
      %v737 = vpop.f32.mrb[0].mxu0
      %v738 = vpop.f32.mrb[0].mxu0
      %v739 = vpop.f32.mrb[0].mxu0
      %740 = vdwg.mxu0
      %v741 = vmul.f32 %v693, 0.35355338
      %v742 = vmul.f32 %v736, 0.35355338
      %v743 = vadd.f32 %v741, %v613
      %v744 = vadd.f32 %v742, %v617
      %v745 = vsel %vm622, %v743, -inf
      %746 = vmax.xlane.f32.xlu0 %v745
      %v747 = vpop.xlane.xlu0 %746
      %v748 = vsel %vm622, %v744, -inf
      %749 = vmax.xlane.f32.xlu0 %v748
      %v750 = vpop.xlane.xlu0 %749
      %v751 = vsub.f32 %v743, %v747
      %v752 = vsub.f32 %v744, %v750
      %v753 = vmul.f32 %v751, 1.442695
      %v754 = vpow.pop %v753
      %v755 = vmul.f32 %v752, 1.442695
      %v756 = vpow.pop %v755
      %v757 = vsel %vm622, %v754, 0.0
      %758 = vadd.xlane.f32.xlu0 %v757
      %v759 = vpop.xlane.xlu0 %758
      %v760 = vsel %vm622, %v756, 0.0
      %761 = vadd.xlane.f32.xlu0 %v760
      %v762 = vpop.xlane.xlu0 %761
      %v763 = vrcp.pop %v759
      %v764 = vrcp.pop %v762
      %v765 = vmul.f32 %v754, %v763
      %v766 = vmul.f32 %v756, %v764
      %v767 = vpack.c.bf16 %v765, %v765
      %v768 = vpack.c.bf16 %v766, %v766
      %v770 = vsel %vm622, %v767, 0
      %vm772 = vcmask 1043456
      %v774 = vsel %vm772, %v653, 0
      %776 = vmatprep.subr.bf16.mxu0 0
      %777 = vmatpush1.bf16.msra.mxu0 %v774
      %778 = vmatprep.subr.bf16.mxu0 0
      %779 = vmatpush1.bf16.msra.mxu0 0
      %780 = vmatprep.subr.bf16.mxu0 0
      %781 = vmatpush1.bf16.msra.mxu0 0
      %782 = vmatprep.subr.bf16.mxu0 0
      %783 = vmatpush1.bf16.msra.mxu0 0
      %784 = vmatprep.subr.bf16.mxu0 0
      %785 = vmatpush1.bf16.msra.mxu0 0
      %786 = vmatprep.subr.bf16.mxu0 0
      %787 = vmatpush1.bf16.msra.mxu0 0
      %788 = vmatprep.subr.bf16.mxu0 0
      %789 = vmatpush1.bf16.msra.mxu0 0
      %790 = vmatprep.subr.bf16.mxu0 0
      %791 = vmatpush1.bf16.msra.mxu0 0
      %792 = vmatprep.subr.bf16.mxu0 0
      %793 = vmatpush1.bf16.msra.mxu0 0
      %794 = vmatprep.subr.bf16.mxu0 0
      %795 = vmatpush1.bf16.msra.mxu0 0
      %796 = vmatprep.subr.bf16.mxu0 0
      %797 = vmatpush1.bf16.msra.mxu0 0
      %798 = vmatprep.subr.bf16.mxu0 0
      %799 = vmatpush1.bf16.msra.mxu0 0
      %800 = vmatprep.subr.bf16.mxu0 0
      %801 = vmatpush1.bf16.msra.mxu0 0
      %802 = vmatprep.subr.bf16.mxu0 0
      %803 = vmatpush1.bf16.msra.mxu0 0
      %804 = vmatprep.subr.bf16.mxu0 0
      %805 = vmatpush1.bf16.msra.mxu0 0
      %806 = vmatprep.subr.bf16.mxu0 0
      %807 = vmatpush1.bf16.msra.mxu0 0
      %808 = vmatprep.mubr.bf16.mxu0 0
      %809 = vmatmul.mubr.bf16.gmra.mrb[0].mxu0 %v770
      %v810 = vpop.f32.mrb[0].mxu0
      %v811 = vadd.f32 0.0, %v810
      %v812 = vpop.f32.mrb[0].mxu0
      %v813 = vpop.f32.mrb[0].mxu0
      %v814 = vpop.f32.mrb[0].mxu0
      %815 = vdwg.mxu0
      %v817 = vsel %vm622, %v768, 0
      %v820 = vsel %vm772, %v654, 0
      %822 = vmatprep.subr.bf16.mxu0 0
      %823 = vmatpush1.bf16.msra.mxu0 %v820
      %824 = vmatprep.subr.bf16.mxu0 0
      %825 = vmatpush1.bf16.msra.mxu0 0
      %826 = vmatprep.subr.bf16.mxu0 0
      %827 = vmatpush1.bf16.msra.mxu0 0
      %828 = vmatprep.subr.bf16.mxu0 0
      %829 = vmatpush1.bf16.msra.mxu0 0
      %830 = vmatprep.subr.bf16.mxu0 0
      %831 = vmatpush1.bf16.msra.mxu0 0
      %832 = vmatprep.subr.bf16.mxu0 0
      %833 = vmatpush1.bf16.msra.mxu0 0
      %834 = vmatprep.subr.bf16.mxu0 0
      %835 = vmatpush1.bf16.msra.mxu0 0
      %836 = vmatprep.subr.bf16.mxu0 0
      %837 = vmatpush1.bf16.msra.mxu0 0
      %838 = vmatprep.subr.bf16.mxu0 0
      %839 = vmatpush1.bf16.msra.mxu0 0
      %840 = vmatprep.subr.bf16.mxu0 0
      %841 = vmatpush1.bf16.msra.mxu0 0
      %842 = vmatprep.subr.bf16.mxu0 0
      %843 = vmatpush1.bf16.msra.mxu0 0
      %844 = vmatprep.subr.bf16.mxu0 0
      %845 = vmatpush1.bf16.msra.mxu0 0
      %846 = vmatprep.subr.bf16.mxu0 0
      %847 = vmatpush1.bf16.msra.mxu0 0
      %848 = vmatprep.subr.bf16.mxu0 0
      %849 = vmatpush1.bf16.msra.mxu0 0
      %850 = vmatprep.subr.bf16.mxu0 0
      %851 = vmatpush1.bf16.msra.mxu0 0
      %852 = vmatprep.subr.bf16.mxu0 0
      %853 = vmatpush1.bf16.msra.mxu0 0
      %854 = vmatprep.mubr.bf16.mxu0 0
      %855 = vmatmul.mubr.bf16.gmra.mrb[0].mxu0 %v817
      %v856 = vpop.f32.mrb[0].mxu0
      %v857 = vadd.f32 0.0, %v856
      %v858 = vpop.f32.mrb[0].mxu0
      %v859 = vpop.f32.mrb[0].mxu0
      %v860 = vpop.f32.mrb[0].mxu0
      %861 = vdwg.mxu0
      %v863 = vsel %vm622, %v645, 0
      %v866 = vsel %vm772, %v512, 0
      %868 = vmatprep.subr.bf16.mxu0 0
      %869 = vmatpush1.bf16.msra.mxu0 %v866
      %870 = vmatprep.subr.bf16.mxu0 0
      %871 = vmatpush1.bf16.msra.mxu0 0
      %872 = vmatprep.subr.bf16.mxu0 0
      %873 = vmatpush1.bf16.msra.mxu0 0
      %874 = vmatprep.subr.bf16.mxu0 0
      %875 = vmatpush1.bf16.msra.mxu0 0
      %876 = vmatprep.subr.bf16.mxu0 0
      %877 = vmatpush1.bf16.msra.mxu0 0
      %878 = vmatprep.subr.bf16.mxu0 0
      %879 = vmatpush1.bf16.msra.mxu0 0
      %880 = vmatprep.subr.bf16.mxu0 0
      %881 = vmatpush1.bf16.msra.mxu0 0
      %882 = vmatprep.subr.bf16.mxu0 0
      %883 = vmatpush1.bf16.msra.mxu0 0
      %884 = vmatprep.subr.bf16.mxu0 0
      %885 = vmatpush1.bf16.msra.mxu0 0
      %886 = vmatprep.subr.bf16.mxu0 0
      %887 = vmatpush1.bf16.msra.mxu0 0
      %888 = vmatprep.subr.bf16.mxu0 0
      %889 = vmatpush1.bf16.msra.mxu0 0
      %890 = vmatprep.subr.bf16.mxu0 0
      %891 = vmatpush1.bf16.msra.mxu0 0
      %892 = vmatprep.subr.bf16.mxu0 0
      %893 = vmatpush1.bf16.msra.mxu0 0
      %894 = vmatprep.subr.bf16.mxu0 0
      %895 = vmatpush1.bf16.msra.mxu0 0
      %896 = vmatprep.subr.bf16.mxu0 0
      %897 = vmatpush1.bf16.msra.mxu0 0
      %898 = vmatprep.subr.bf16.mxu0 0
      %899 = vmatpush1.bf16.msra.mxu0 0
      %900 = vmatprep.mubr.bf16.mxu0 0
      %901 = vmatmul.mubr.bf16.gmra.mrb[0].mxu0 %v863
      %v902 = vpop.f32.mrb[0].mxu0
      %v903 = vadd.f32 %v811, %v902
      %v904 = vpop.f32.mrb[0].mxu0
      %v905 = vpop.f32.mrb[0].mxu0
      %v906 = vpop.f32.mrb[0].mxu0
      %907 = vdwg.mxu0
      %v909 = vsel %vm622, %v646, 0
      %v912 = vsel %vm772, %v513, 0
      %914 = vmatprep.subr.bf16.mxu0 0
      %915 = vmatpush1.bf16.msra.mxu0 %v912
      %916 = vmatprep.subr.bf16.mxu0 0
      %917 = vmatpush1.bf16.msra.mxu0 0
      %918 = vmatprep.subr.bf16.mxu0 0
      %919 = vmatpush1.bf16.msra.mxu0 0
      %920 = vmatprep.subr.bf16.mxu0 0
      %921 = vmatpush1.bf16.msra.mxu0 0
      %922 = vmatprep.subr.bf16.mxu0 0
      %923 = vmatpush1.bf16.msra.mxu0 0
      %924 = vmatprep.subr.bf16.mxu0 0
      %925 = vmatpush1.bf16.msra.mxu0 0
      %926 = vmatprep.subr.bf16.mxu0 0
      %927 = vmatpush1.bf16.msra.mxu0 0
      %928 = vmatprep.subr.bf16.mxu0 0
      %929 = vmatpush1.bf16.msra.mxu0 0
      %930 = vmatprep.subr.bf16.mxu0 0
      %931 = vmatpush1.bf16.msra.mxu0 0
      %932 = vmatprep.subr.bf16.mxu0 0
      %933 = vmatpush1.bf16.msra.mxu0 0
      %934 = vmatprep.subr.bf16.mxu0 0
      %935 = vmatpush1.bf16.msra.mxu0 0
      %936 = vmatprep.subr.bf16.mxu0 0
      %937 = vmatpush1.bf16.msra.mxu0 0
      %938 = vmatprep.subr.bf16.mxu0 0
      %939 = vmatpush1.bf16.msra.mxu0 0
      %940 = vmatprep.subr.bf16.mxu0 0
      %941 = vmatpush1.bf16.msra.mxu0 0
      %942 = vmatprep.subr.bf16.mxu0 0
      %943 = vmatpush1.bf16.msra.mxu0 0
      %944 = vmatprep.subr.bf16.mxu0 0
      %945 = vmatpush1.bf16.msra.mxu0 0
      %946 = vmatprep.mubr.bf16.mxu0 0
      %947 = vmatmul.mubr.bf16.gmra.mrb[0].mxu0 %v909
      %v948 = vpop.f32.mrb[0].mxu0
      %v949 = vadd.f32 %v857, %v948
      %v950 = vpop.f32.mrb[0].mxu0
      %v951 = vpop.f32.mrb[0].mxu0
      %v952 = vpop.f32.mrb[0].mxu0
      %953 = vdwg.mxu0
      %v954 = vmul.f32 %v408, %v307
      %v955 = vmul.f32 %v411, %v307
      %v956 = vpack.c.bf16 %v954, %v954
      %v957 = vpack.c.bf16 %v955, %v955
      %v958 = vmul.f32 %v498, %v307
      %v959 = vmul.f32 %v501, %v307
      %v960 = vpack.c.bf16 %v958, %v958
      %v961 = vpack.c.bf16 %v959, %v959
      %v963 = vsel %vm249, %v956, 0
      %965 = vmatprep.subr.bf16.mxu0 0
      %966 = vmatpush1.bf16.xpose.msra.mxu0 %v518
      %967 = vmatprep.subr.bf16.mxu0 0
      %968 = vmatpush1.bf16.xpose.msra.mxu0 0
      %969 = vmatprep.subr.bf16.mxu0 0
      %970 = vmatpush1.bf16.xpose.msra.mxu0 0
      %971 = vmatprep.subr.bf16.mxu0 0
      %972 = vmatpush1.bf16.xpose.msra.mxu0 0
      %973 = vmatprep.subr.bf16.mxu0 0
      %974 = vmatpush1.bf16.xpose.msra.mxu0 0
      %975 = vmatprep.subr.bf16.mxu0 0
      %976 = vmatpush1.bf16.xpose.msra.mxu0 0
      %977 = vmatprep.subr.bf16.mxu0 0
      %978 = vmatpush1.bf16.xpose.msra.mxu0 0
      %979 = vmatprep.subr.bf16.mxu0 0
      %980 = vmatpush1.bf16.xpose.msra.mxu0 0
      %981 = vmatprep.subr.bf16.mxu0 0
      %982 = vmatpush1.bf16.xpose.msra.mxu0 0
      %983 = vmatprep.subr.bf16.mxu0 0
      %984 = vmatpush1.bf16.xpose.msra.mxu0 0
      %985 = vmatprep.subr.bf16.mxu0 0
      %986 = vmatpush1.bf16.xpose.msra.mxu0 0
      %987 = vmatprep.subr.bf16.mxu0 0
      %988 = vmatpush1.bf16.xpose.msra.mxu0 0
      %989 = vmatprep.subr.bf16.mxu0 0
      %990 = vmatpush1.bf16.xpose.msra.mxu0 0
      %991 = vmatprep.subr.bf16.mxu0 0
      %992 = vmatpush1.bf16.xpose.msra.mxu0 0
      %993 = vmatprep.subr.bf16.mxu0 0
      %994 = vmatpush1.bf16.xpose.msra.mxu0 0
      %995 = vmatprep.subr.bf16.mxu0 0
      %996 = vmatpush1.bf16.xpose.msra.mxu0 0
      %997 = vmatprep.mubr.bf16.mxu0 0
      %998 = vmatmul.mubr.bf16.gmra.mrb[0].mxu0 %v963
      %v999 = vpop.f32.mrb[0].mxu0
      %v1000 = vadd.f32 0.0, %v999
      %v1001 = vpop.f32.mrb[0].mxu0
      %v1002 = vpop.f32.mrb[0].mxu0
      %v1003 = vpop.f32.mrb[0].mxu0
      %1004 = vdwg.mxu0
      %v1006 = vsel %vm249, %v957, 0
      %1008 = vmatprep.subr.bf16.mxu0 0
      %1009 = vmatpush1.bf16.xpose.msra.mxu0 %v564
      %1010 = vmatprep.subr.bf16.mxu0 0
      %1011 = vmatpush1.bf16.xpose.msra.mxu0 0
      %1012 = vmatprep.subr.bf16.mxu0 0
      %1013 = vmatpush1.bf16.xpose.msra.mxu0 0
      %1014 = vmatprep.subr.bf16.mxu0 0
      %1015 = vmatpush1.bf16.xpose.msra.mxu0 0
      %1016 = vmatprep.subr.bf16.mxu0 0
      %1017 = vmatpush1.bf16.xpose.msra.mxu0 0
      %1018 = vmatprep.subr.bf16.mxu0 0
      %1019 = vmatpush1.bf16.xpose.msra.mxu0 0
      %1020 = vmatprep.subr.bf16.mxu0 0
      %1021 = vmatpush1.bf16.xpose.msra.mxu0 0
      %1022 = vmatprep.subr.bf16.mxu0 0
      %1023 = vmatpush1.bf16.xpose.msra.mxu0 0
      %1024 = vmatprep.subr.bf16.mxu0 0
      %1025 = vmatpush1.bf16.xpose.msra.mxu0 0
      %1026 = vmatprep.subr.bf16.mxu0 0
      %1027 = vmatpush1.bf16.xpose.msra.mxu0 0
      %1028 = vmatprep.subr.bf16.mxu0 0
      %1029 = vmatpush1.bf16.xpose.msra.mxu0 0
      %1030 = vmatprep.subr.bf16.mxu0 0
      %1031 = vmatpush1.bf16.xpose.msra.mxu0 0
      %1032 = vmatprep.subr.bf16.mxu0 0
      %1033 = vmatpush1.bf16.xpose.msra.mxu0 0
      %1034 = vmatprep.subr.bf16.mxu0 0
      %1035 = vmatpush1.bf16.xpose.msra.mxu0 0
      %1036 = vmatprep.subr.bf16.mxu0 0
      %1037 = vmatpush1.bf16.xpose.msra.mxu0 0
      %1038 = vmatprep.subr.bf16.mxu0 0
      %1039 = vmatpush1.bf16.xpose.msra.mxu0 0
      %1040 = vmatprep.mubr.bf16.mxu0 0
      %1041 = vmatmul.mubr.bf16.gmra.mrb[0].mxu0 %v1006
      %v1042 = vpop.f32.mrb[0].mxu0
      %v1043 = vadd.f32 0.0, %v1042
      %v1044 = vpop.f32.mrb[0].mxu0
      %v1045 = vpop.f32.mrb[0].mxu0
      %v1046 = vpop.f32.mrb[0].mxu0
      %1047 = vdwg.mxu0
      %v1048 = vmul.f32 %v1000, 0.35355338
      %v1049 = vmul.f32 %v1043, 0.35355338
      %v1050 = vadd.f32 %v1048, %v613
      %v1051 = vadd.f32 %v1049, %v617
      %v1052 = vsel %vm622, %v1050, -inf
      %1053 = vmax.xlane.f32.xlu0 %v1052
      %v1054 = vpop.xlane.xlu0 %1053
      %v1055 = vsel %vm622, %v1051, -inf
      %1056 = vmax.xlane.f32.xlu0 %v1055
      %v1057 = vpop.xlane.xlu0 %1056
      %v1058 = vsub.f32 %v1050, %v1054
      %v1059 = vsub.f32 %v1051, %v1057
      %v1060 = vmul.f32 %v1058, 1.442695
      %v1061 = vpow.pop %v1060
      %v1062 = vmul.f32 %v1059, 1.442695
      %v1063 = vpow.pop %v1062
      %v1064 = vsel %vm622, %v1061, 0.0
      %1065 = vadd.xlane.f32.xlu0 %v1064
      %v1066 = vpop.xlane.xlu0 %1065
      %v1067 = vsel %vm622, %v1063, 0.0
      %1068 = vadd.xlane.f32.xlu0 %v1067
      %v1069 = vpop.xlane.xlu0 %1068
      %v1070 = vrcp.pop %v1066
      %v1071 = vrcp.pop %v1069
      %v1072 = vmul.f32 %v1061, %v1070
      %v1073 = vmul.f32 %v1063, %v1071
      %v1074 = vpack.c.bf16 %v1072, %v1072
      %v1075 = vpack.c.bf16 %v1073, %v1073
      %v1077 = vsel %vm622, %v1074, 0
      %v1080 = vsel %vm772, %v960, 0
      %1082 = vmatprep.subr.bf16.mxu0 0
      %1083 = vmatpush1.bf16.msra.mxu0 %v1080
      %1084 = vmatprep.subr.bf16.mxu0 0
      %1085 = vmatpush1.bf16.msra.mxu0 0
      %1086 = vmatprep.subr.bf16.mxu0 0
      %1087 = vmatpush1.bf16.msra.mxu0 0
      %1088 = vmatprep.subr.bf16.mxu0 0
      %1089 = vmatpush1.bf16.msra.mxu0 0
      %1090 = vmatprep.subr.bf16.mxu0 0
      %1091 = vmatpush1.bf16.msra.mxu0 0
      %1092 = vmatprep.subr.bf16.mxu0 0
      %1093 = vmatpush1.bf16.msra.mxu0 0
      %1094 = vmatprep.subr.bf16.mxu0 0
      %1095 = vmatpush1.bf16.msra.mxu0 0
      %1096 = vmatprep.subr.bf16.mxu0 0
      %1097 = vmatpush1.bf16.msra.mxu0 0
      %1098 = vmatprep.subr.bf16.mxu0 0
      %1099 = vmatpush1.bf16.msra.mxu0 0
      %1100 = vmatprep.subr.bf16.mxu0 0
      %1101 = vmatpush1.bf16.msra.mxu0 0
      %1102 = vmatprep.subr.bf16.mxu0 0
      %1103 = vmatpush1.bf16.msra.mxu0 0
      %1104 = vmatprep.subr.bf16.mxu0 0
      %1105 = vmatpush1.bf16.msra.mxu0 0
      %1106 = vmatprep.subr.bf16.mxu0 0
      %1107 = vmatpush1.bf16.msra.mxu0 0
      %1108 = vmatprep.subr.bf16.mxu0 0
      %1109 = vmatpush1.bf16.msra.mxu0 0
      %1110 = vmatprep.subr.bf16.mxu0 0
      %1111 = vmatpush1.bf16.msra.mxu0 0
      %1112 = vmatprep.subr.bf16.mxu0 0
      %1113 = vmatpush1.bf16.msra.mxu0 0
      %1114 = vmatprep.mubr.bf16.mxu0 0
      %1115 = vmatmul.mubr.bf16.gmra.mrb[0].mxu0 %v1077
      %v1116 = vpop.f32.mrb[0].mxu0
      %v1117 = vadd.f32 0.0, %v1116
      %v1118 = vpop.f32.mrb[0].mxu0
      %v1119 = vpop.f32.mrb[0].mxu0
      %v1120 = vpop.f32.mrb[0].mxu0
      %1121 = vdwg.mxu0
      %v1123 = vsel %vm622, %v1075, 0
      %v1126 = vsel %vm772, %v961, 0
      %1128 = vmatprep.subr.bf16.mxu0 0
      %1129 = vmatpush1.bf16.msra.mxu0 %v1126
      %1130 = vmatprep.subr.bf16.mxu0 0
      %1131 = vmatpush1.bf16.msra.mxu0 0
      %1132 = vmatprep.subr.bf16.mxu0 0
      %1133 = vmatpush1.bf16.msra.mxu0 0
      %1134 = vmatprep.subr.bf16.mxu0 0
      %1135 = vmatpush1.bf16.msra.mxu0 0
      %1136 = vmatprep.subr.bf16.mxu0 0
      %1137 = vmatpush1.bf16.msra.mxu0 0
      %1138 = vmatprep.subr.bf16.mxu0 0
      %1139 = vmatpush1.bf16.msra.mxu0 0
      %1140 = vmatprep.subr.bf16.mxu0 0
      %1141 = vmatpush1.bf16.msra.mxu0 0
      %1142 = vmatprep.subr.bf16.mxu0 0
      %1143 = vmatpush1.bf16.msra.mxu0 0
      %1144 = vmatprep.subr.bf16.mxu0 0
      %1145 = vmatpush1.bf16.msra.mxu0 0
      %1146 = vmatprep.subr.bf16.mxu0 0
      %1147 = vmatpush1.bf16.msra.mxu0 0
      %1148 = vmatprep.subr.bf16.mxu0 0
      %1149 = vmatpush1.bf16.msra.mxu0 0
      %1150 = vmatprep.subr.bf16.mxu0 0
      %1151 = vmatpush1.bf16.msra.mxu0 0
      %1152 = vmatprep.subr.bf16.mxu0 0
      %1153 = vmatpush1.bf16.msra.mxu0 0
      %1154 = vmatprep.subr.bf16.mxu0 0
      %1155 = vmatpush1.bf16.msra.mxu0 0
      %1156 = vmatprep.subr.bf16.mxu0 0
      %1157 = vmatpush1.bf16.msra.mxu0 0
      %1158 = vmatprep.subr.bf16.mxu0 0
      %1159 = vmatpush1.bf16.msra.mxu0 0
      %1160 = vmatprep.mubr.bf16.mxu0 0
      %1161 = vmatmul.mubr.bf16.gmra.mrb[0].mxu0 %v1123
      %v1162 = vpop.f32.mrb[0].mxu0
      %v1163 = vadd.f32 0.0, %v1162
      %v1164 = vpop.f32.mrb[0].mxu0
      %v1165 = vpop.f32.mrb[0].mxu0
      %v1166 = vpop.f32.mrb[0].mxu0
      %1167 = vdwg.mxu0
      %v1168 = vadd.f32 %v903, %v1117
      %v1169 = vadd.f32 %v949, %v1163
      %v1170 = vmul.f32 %v408, %v312
      %v1171 = vmul.f32 %v411, %v312
      %v1172 = vpack.c.bf16 %v1170, %v1170
      %v1173 = vpack.c.bf16 %v1171, %v1171
      %v1174 = vmul.f32 %v498, %v312
      %v1175 = vmul.f32 %v501, %v312
      %v1176 = vpack.c.bf16 %v1174, %v1174
      %v1177 = vpack.c.bf16 %v1175, %v1175
      %v1179 = vsel %vm249, %v1172, 0
      %1181 = vmatprep.subr.bf16.mxu0 0
      %1182 = vmatpush1.bf16.xpose.msra.mxu0 %v518
      %1183 = vmatprep.subr.bf16.mxu0 0
      %1184 = vmatpush1.bf16.xpose.msra.mxu0 0
      %1185 = vmatprep.subr.bf16.mxu0 0
      %1186 = vmatpush1.bf16.xpose.msra.mxu0 0
      %1187 = vmatprep.subr.bf16.mxu0 0
      %1188 = vmatpush1.bf16.xpose.msra.mxu0 0
      %1189 = vmatprep.subr.bf16.mxu0 0
      %1190 = vmatpush1.bf16.xpose.msra.mxu0 0
      %1191 = vmatprep.subr.bf16.mxu0 0
      %1192 = vmatpush1.bf16.xpose.msra.mxu0 0
      %1193 = vmatprep.subr.bf16.mxu0 0
      %1194 = vmatpush1.bf16.xpose.msra.mxu0 0
      %1195 = vmatprep.subr.bf16.mxu0 0
      %1196 = vmatpush1.bf16.xpose.msra.mxu0 0
      %1197 = vmatprep.subr.bf16.mxu0 0
      %1198 = vmatpush1.bf16.xpose.msra.mxu0 0
      %1199 = vmatprep.subr.bf16.mxu0 0
      %1200 = vmatpush1.bf16.xpose.msra.mxu0 0
      %1201 = vmatprep.subr.bf16.mxu0 0
      %1202 = vmatpush1.bf16.xpose.msra.mxu0 0
      %1203 = vmatprep.subr.bf16.mxu0 0
      %1204 = vmatpush1.bf16.xpose.msra.mxu0 0
      %1205 = vmatprep.subr.bf16.mxu0 0
      %1206 = vmatpush1.bf16.xpose.msra.mxu0 0
      %1207 = vmatprep.subr.bf16.mxu0 0
      %1208 = vmatpush1.bf16.xpose.msra.mxu0 0
      %1209 = vmatprep.subr.bf16.mxu0 0
      %1210 = vmatpush1.bf16.xpose.msra.mxu0 0
      %1211 = vmatprep.subr.bf16.mxu0 0
      %1212 = vmatpush1.bf16.xpose.msra.mxu0 0
      %1213 = vmatprep.mubr.bf16.mxu0 0
      %1214 = vmatmul.mubr.bf16.gmra.mrb[0].mxu0 %v1179
      %v1215 = vpop.f32.mrb[0].mxu0
      %v1216 = vadd.f32 0.0, %v1215
      %v1217 = vpop.f32.mrb[0].mxu0
      %v1218 = vpop.f32.mrb[0].mxu0
      %v1219 = vpop.f32.mrb[0].mxu0
      %1220 = vdwg.mxu0
      %v1222 = vsel %vm249, %v1173, 0
      %1224 = vmatprep.subr.bf16.mxu0 0
      %1225 = vmatpush1.bf16.xpose.msra.mxu0 %v564
      %1226 = vmatprep.subr.bf16.mxu0 0
      %1227 = vmatpush1.bf16.xpose.msra.mxu0 0
      %1228 = vmatprep.subr.bf16.mxu0 0
      %1229 = vmatpush1.bf16.xpose.msra.mxu0 0
      %1230 = vmatprep.subr.bf16.mxu0 0
      %1231 = vmatpush1.bf16.xpose.msra.mxu0 0
      %1232 = vmatprep.subr.bf16.mxu0 0
      %1233 = vmatpush1.bf16.xpose.msra.mxu0 0
      %1234 = vmatprep.subr.bf16.mxu0 0
      %1235 = vmatpush1.bf16.xpose.msra.mxu0 0
      %1236 = vmatprep.subr.bf16.mxu0 0
      %1237 = vmatpush1.bf16.xpose.msra.mxu0 0
      %1238 = vmatprep.subr.bf16.mxu0 0
      %1239 = vmatpush1.bf16.xpose.msra.mxu0 0
      %1240 = vmatprep.subr.bf16.mxu0 0
      %1241 = vmatpush1.bf16.xpose.msra.mxu0 0
      %1242 = vmatprep.subr.bf16.mxu0 0
      %1243 = vmatpush1.bf16.xpose.msra.mxu0 0
      %1244 = vmatprep.subr.bf16.mxu0 0
      %1245 = vmatpush1.bf16.xpose.msra.mxu0 0
      %1246 = vmatprep.subr.bf16.mxu0 0
      %1247 = vmatpush1.bf16.xpose.msra.mxu0 0
      %1248 = vmatprep.subr.bf16.mxu0 0
      %1249 = vmatpush1.bf16.xpose.msra.mxu0 0
      %1250 = vmatprep.subr.bf16.mxu0 0
      %1251 = vmatpush1.bf16.xpose.msra.mxu0 0
      %1252 = vmatprep.subr.bf16.mxu0 0
      %1253 = vmatpush1.bf16.xpose.msra.mxu0 0
      %1254 = vmatprep.subr.bf16.mxu0 0
      %1255 = vmatpush1.bf16.xpose.msra.mxu0 0
      %1256 = vmatprep.mubr.bf16.mxu0 0
      %1257 = vmatmul.mubr.bf16.gmra.mrb[0].mxu0 %v1222
      %v1258 = vpop.f32.mrb[0].mxu0
      %v1259 = vadd.f32 0.0, %v1258
      %v1260 = vpop.f32.mrb[0].mxu0
      %v1261 = vpop.f32.mrb[0].mxu0
      %v1262 = vpop.f32.mrb[0].mxu0
      %1263 = vdwg.mxu0
      %v1264 = vmul.f32 %v1216, 0.35355338
      %v1265 = vmul.f32 %v1259, 0.35355338
      %v1266 = vadd.f32 %v1264, %v613
      %v1267 = vadd.f32 %v1265, %v617
      %v1268 = vsel %vm622, %v1266, -inf
      %1269 = vmax.xlane.f32.xlu0 %v1268
      %v1270 = vpop.xlane.xlu0 %1269
      %v1271 = vsel %vm622, %v1267, -inf
      %1272 = vmax.xlane.f32.xlu0 %v1271
      %v1273 = vpop.xlane.xlu0 %1272
      %v1274 = vsub.f32 %v1266, %v1270
      %v1275 = vsub.f32 %v1267, %v1273
      %v1276 = vmul.f32 %v1274, 1.442695
      %v1277 = vpow.pop %v1276
      %v1278 = vmul.f32 %v1275, 1.442695
      %v1279 = vpow.pop %v1278
      %v1280 = vsel %vm622, %v1277, 0.0
      %1281 = vadd.xlane.f32.xlu0 %v1280
      %v1282 = vpop.xlane.xlu0 %1281
      %v1283 = vsel %vm622, %v1279, 0.0
      %1284 = vadd.xlane.f32.xlu0 %v1283
      %v1285 = vpop.xlane.xlu0 %1284
      %v1286 = vrcp.pop %v1282
      %v1287 = vrcp.pop %v1285
      %v1288 = vmul.f32 %v1277, %v1286
      %v1289 = vmul.f32 %v1279, %v1287
      %v1290 = vpack.c.bf16 %v1288, %v1288
      %v1291 = vpack.c.bf16 %v1289, %v1289
      %v1293 = vsel %vm622, %v1290, 0
      %v1296 = vsel %vm772, %v1176, 0
      %1298 = vmatprep.subr.bf16.mxu0 0
      %1299 = vmatpush1.bf16.msra.mxu0 %v1296
      %1300 = vmatprep.subr.bf16.mxu0 0
      %1301 = vmatpush1.bf16.msra.mxu0 0
      %1302 = vmatprep.subr.bf16.mxu0 0
      %1303 = vmatpush1.bf16.msra.mxu0 0
      %1304 = vmatprep.subr.bf16.mxu0 0
      %1305 = vmatpush1.bf16.msra.mxu0 0
      %1306 = vmatprep.subr.bf16.mxu0 0
      %1307 = vmatpush1.bf16.msra.mxu0 0
      %1308 = vmatprep.subr.bf16.mxu0 0
      %1309 = vmatpush1.bf16.msra.mxu0 0
      %1310 = vmatprep.subr.bf16.mxu0 0
      %1311 = vmatpush1.bf16.msra.mxu0 0
      %1312 = vmatprep.subr.bf16.mxu0 0
      %1313 = vmatpush1.bf16.msra.mxu0 0
      %1314 = vmatprep.subr.bf16.mxu0 0
      %1315 = vmatpush1.bf16.msra.mxu0 0
      %1316 = vmatprep.subr.bf16.mxu0 0
      %1317 = vmatpush1.bf16.msra.mxu0 0
      %1318 = vmatprep.subr.bf16.mxu0 0
      %1319 = vmatpush1.bf16.msra.mxu0 0
      %1320 = vmatprep.subr.bf16.mxu0 0
      %1321 = vmatpush1.bf16.msra.mxu0 0
      %1322 = vmatprep.subr.bf16.mxu0 0
      %1323 = vmatpush1.bf16.msra.mxu0 0
      %1324 = vmatprep.subr.bf16.mxu0 0
      %1325 = vmatpush1.bf16.msra.mxu0 0
      %1326 = vmatprep.subr.bf16.mxu0 0
      %1327 = vmatpush1.bf16.msra.mxu0 0
      %1328 = vmatprep.subr.bf16.mxu0 0
      %1329 = vmatpush1.bf16.msra.mxu0 0
      %1330 = vmatprep.mubr.bf16.mxu0 0
      %1331 = vmatmul.mubr.bf16.gmra.mrb[0].mxu0 %v1293
      %v1332 = vpop.f32.mrb[0].mxu0
      %v1333 = vadd.f32 0.0, %v1332
      %v1334 = vpop.f32.mrb[0].mxu0
      %v1335 = vpop.f32.mrb[0].mxu0
      %v1336 = vpop.f32.mrb[0].mxu0
      %1337 = vdwg.mxu0
      %v1339 = vsel %vm622, %v1291, 0
      %v1342 = vsel %vm772, %v1177, 0
      %1344 = vmatprep.subr.bf16.mxu0 0
      %1345 = vmatpush1.bf16.msra.mxu0 %v1342
      %1346 = vmatprep.subr.bf16.mxu0 0
      %1347 = vmatpush1.bf16.msra.mxu0 0
      %1348 = vmatprep.subr.bf16.mxu0 0
      %1349 = vmatpush1.bf16.msra.mxu0 0
      %1350 = vmatprep.subr.bf16.mxu0 0
      %1351 = vmatpush1.bf16.msra.mxu0 0
      %1352 = vmatprep.subr.bf16.mxu0 0
      %1353 = vmatpush1.bf16.msra.mxu0 0
      %1354 = vmatprep.subr.bf16.mxu0 0
      %1355 = vmatpush1.bf16.msra.mxu0 0
      %1356 = vmatprep.subr.bf16.mxu0 0
      %1357 = vmatpush1.bf16.msra.mxu0 0
      %1358 = vmatprep.subr.bf16.mxu0 0
      %1359 = vmatpush1.bf16.msra.mxu0 0
      %1360 = vmatprep.subr.bf16.mxu0 0
      %1361 = vmatpush1.bf16.msra.mxu0 0
      %1362 = vmatprep.subr.bf16.mxu0 0
      %1363 = vmatpush1.bf16.msra.mxu0 0
      %1364 = vmatprep.subr.bf16.mxu0 0
      %1365 = vmatpush1.bf16.msra.mxu0 0
      %1366 = vmatprep.subr.bf16.mxu0 0
      %1367 = vmatpush1.bf16.msra.mxu0 0
      %1368 = vmatprep.subr.bf16.mxu0 0
      %1369 = vmatpush1.bf16.msra.mxu0 0
      %1370 = vmatprep.subr.bf16.mxu0 0
      %1371 = vmatpush1.bf16.msra.mxu0 0
      %1372 = vmatprep.subr.bf16.mxu0 0
      %1373 = vmatpush1.bf16.msra.mxu0 0
      %1374 = vmatprep.subr.bf16.mxu0 0
      %1375 = vmatpush1.bf16.msra.mxu0 0
      %1376 = vmatprep.mubr.bf16.mxu0 0
      %1377 = vmatmul.mubr.bf16.gmra.mrb[0].mxu0 %v1339
      %v1378 = vpop.f32.mrb[0].mxu0
      %v1379 = vadd.f32 0.0, %v1378
      %v1380 = vpop.f32.mrb[0].mxu0
      %v1381 = vpop.f32.mrb[0].mxu0
      %v1382 = vpop.f32.mrb[0].mxu0
      %1383 = vdwg.mxu0
      %v1384 = vadd.f32 %v1168, %v1333
      %v1385 = vadd.f32 %v1169, %v1379
      %v1386 = vpack.c.bf16 %v1385, %v1384
      %v1387 = vlaneseq
      %v1388 = vshrl.u32 %v1387, 7
      %v1389 = vsub.s32 0, %v1388
      %v1390 = vrot.slane %v352, %v1389
      %v1392 = vsel %vm249, %v1386, 0
      %1394 = vmatprep.subr.bf16.mxu0 0
      %1395 = vmatpush1.bf16.msra.mxu0 %v335
      %1396 = vmatprep.subr.bf16.mxu0 0
      %1397 = vmatpush1.bf16.msra.mxu0 %v336
      %1398 = vmatprep.subr.bf16.mxu0 0
      %1399 = vmatpush1.bf16.msra.mxu0 0
      %1400 = vmatprep.subr.bf16.mxu0 0
      %1401 = vmatpush1.bf16.msra.mxu0 0
      %1402 = vmatprep.subr.bf16.mxu0 0
      %1403 = vmatpush1.bf16.msra.mxu0 0
      %1404 = vmatprep.subr.bf16.mxu0 0
      %1405 = vmatpush1.bf16.msra.mxu0 0
      %1406 = vmatprep.subr.bf16.mxu0 0
      %1407 = vmatpush1.bf16.msra.mxu0 0
      %1408 = vmatprep.subr.bf16.mxu0 0
      %1409 = vmatpush1.bf16.msra.mxu0 0
      %1410 = vmatprep.subr.bf16.mxu0 0
      %1411 = vmatpush1.bf16.msra.mxu0 0
      %1412 = vmatprep.subr.bf16.mxu0 0
      %1413 = vmatpush1.bf16.msra.mxu0 0
      %1414 = vmatprep.subr.bf16.mxu0 0
      %1415 = vmatpush1.bf16.msra.mxu0 0
      %1416 = vmatprep.subr.bf16.mxu0 0
      %1417 = vmatpush1.bf16.msra.mxu0 0
      %1418 = vmatprep.subr.bf16.mxu0 0
      %1419 = vmatpush1.bf16.msra.mxu0 0
      %1420 = vmatprep.subr.bf16.mxu0 0
      %1421 = vmatpush1.bf16.msra.mxu0 0
      %1422 = vmatprep.subr.bf16.mxu0 0
      %1423 = vmatpush1.bf16.msra.mxu0 0
      %1424 = vmatprep.subr.bf16.mxu0 0
      %1425 = vmatpush1.bf16.msra.mxu0 0
      %1426 = vmatprep.mubr.bf16.mxu0 0
      %1427 = vmatmul.mubr.bf16.gmra.mrb[0].mxu0 %v1392
      %v1428 = vpop.f32.mrb[0].mxu0
      %v1429 = vadd.f32 %v1390, %v1428
      %v1430 = vpop.f32.mrb[0].mxu0
      %v1431 = vpop.f32.mrb[0].mxu0
      %v1432 = vadd.f32 %v1390, %v1431
      %v1433 = vpop.f32.mrb[0].mxu0
      %1434 = vdwg.mxu0
      %v1435 = vadd.f32 %v1429, %v287
      %v1436 = vadd.f32 %v1432, %v288
      %v1437 = vsel %vm249, %v1435, 0.0
      %1438 = vadd.xlane.f32.xlu0 %v1437
      %v1439 = vpop.xlane.xlu0 %1438
      %v1440 = vsel %vm249, %v1436, 0.0
      %1441 = vadd.xlane.f32.xlu0 %v1440
      %v1442 = vpop.xlane.xlu0 %1441
      %v1443 = vmul.f32 %v1439, %v256
      %v1444 = vmul.f32 %v1442, %v256
      %v1445 = vsub.f32 %v1435, %v1443
      %v1446 = vsub.f32 %v1436, %v1444
      %v1447 = vmul.f32 %v1445, %v1445
      %v1448 = vmul.f32 %v1446, %v1446
      %v1449 = vsel %vm249, %v1447, 0.0
      %1450 = vadd.xlane.f32.xlu0 %v1449
      %v1451 = vpop.xlane.xlu0 %1450
      %v1452 = vsel %vm249, %v1448, 0.0
      %1453 = vadd.xlane.f32.xlu0 %v1452
      %v1454 = vpop.xlane.xlu0 %1453
      %v1455 = vmul.f32 %v1451, %v256
      %v1456 = vmul.f32 %v1454, %v256
      %v1457 = vadd.f32 %v1455, 1e-12
      %v1458 = vadd.f32 %v1456, 1e-12
      %v1459 = vrsqrt.pop %v1457
      %v1460 = vrsqrt.pop %v1458
      %v1461 = vmul.f32 %v1445, %v1459
      %v1462 = vmul.f32 %v1446, %v1460
      %v1463 = vlaneseq
      %v1464 = vshrl.u32 %v1463, 7
      %v1465 = vsub.s32 0, %v1464
      %v1466 = vrot.slane %v353, %v1465
      %v1467 = vmul.f32 %v1461, %v1466
      %v1468 = vmul.f32 %v1462, %v1466
      %v1469 = vlaneseq
      %v1470 = vshrl.u32 %v1469, 7
      %v1471 = vsub.s32 0, %v1470
      %v1472 = vrot.slane %v354, %v1471
      %v1473 = vadd.f32 %v1467, %v1472
      %v1474 = vadd.f32 %v1468, %v1472
      %v1475 = vpack.c.bf16 %v1474, %v1473
      %v1476 = vlaneseq
      %v1477 = vshrl.u32 %v1476, 7
      %v1478 = vsub.s32 0, %v1477
      %v1479 = vrot.slane %v364, %v1478
      %v1481 = vsel %vm249, %v1475, 0
      %1483 = vmatprep.subr.bf16.mxu0 0
      %1484 = vmatpush1.bf16.msra.mxu0 %v362
      %1485 = vmatprep.subr.bf16.mxu0 0
      %1486 = vmatpush1.bf16.msra.mxu0 %v363
      %1487 = vmatprep.subr.bf16.mxu0 0
      %1488 = vmatpush1.bf16.msra.mxu0 0
      %1489 = vmatprep.subr.bf16.mxu0 0
      %1490 = vmatpush1.bf16.msra.mxu0 0
      %1491 = vmatprep.subr.bf16.mxu0 0
      %1492 = vmatpush1.bf16.msra.mxu0 0
      %1493 = vmatprep.subr.bf16.mxu0 0
      %1494 = vmatpush1.bf16.msra.mxu0 0
      %1495 = vmatprep.subr.bf16.mxu0 0
      %1496 = vmatpush1.bf16.msra.mxu0 0
      %1497 = vmatprep.subr.bf16.mxu0 0
      %1498 = vmatpush1.bf16.msra.mxu0 0
      %1499 = vmatprep.subr.bf16.mxu0 0
      %1500 = vmatpush1.bf16.msra.mxu0 0
      %1501 = vmatprep.subr.bf16.mxu0 0
      %1502 = vmatpush1.bf16.msra.mxu0 0
      %1503 = vmatprep.subr.bf16.mxu0 0
      %1504 = vmatpush1.bf16.msra.mxu0 0
      %1505 = vmatprep.subr.bf16.mxu0 0
      %1506 = vmatpush1.bf16.msra.mxu0 0
      %1507 = vmatprep.subr.bf16.mxu0 0
      %1508 = vmatpush1.bf16.msra.mxu0 0
      %1509 = vmatprep.subr.bf16.mxu0 0
      %1510 = vmatpush1.bf16.msra.mxu0 0
      %1511 = vmatprep.subr.bf16.mxu0 0
      %1512 = vmatpush1.bf16.msra.mxu0 0
      %1513 = vmatprep.subr.bf16.mxu0 0
      %1514 = vmatpush1.bf16.msra.mxu0 0
      %1515 = vmatprep.mubr.bf16.mxu0 0
      %1516 = vmatmul.mubr.bf16.gmra.mrb[0].mxu0 %v1481
      %v1517 = vpop.f32.mrb[0].mxu0
      %v1518 = vadd.f32 %v1479, %v1517
      %v1519 = vpop.f32.mrb[0].mxu0
      %v1520 = vpop.f32.mrb[0].mxu0
      %v1521 = vadd.f32 %v1479, %v1520
      %v1522 = vpop.f32.mrb[0].mxu0
      %1523 = vdwg.mxu0
      %v1524 = vmul.f32 %v1518, 0.5
      %v1525 = vmul.f32 %v1521, 0.5
      %v1526 = vmul.f32 %v1518, 0.044715
      %v1527 = vmul.f32 %v1521, 0.044715
      %v1528 = vmul.f32 %v1526, %v1518
      %v1529 = vmul.f32 %v1527, %v1521
      %v1530 = vmul.f32 %v1528, %v1518
      %v1531 = vmul.f32 %v1529, %v1521
      %v1532 = vadd.f32 %v1518, %v1530
      %v1533 = vadd.f32 %v1521, %v1531
      %v1534 = vmul.f32 %v1532, 0.7978846
      %v1535 = vmul.f32 %v1533, 0.7978846
      %v1536 = vtanh.pop %v1534
      %v1537 = vtanh.pop %v1535
      %v1538 = vadd.f32 %v1536, 1.0
      %v1539 = vadd.f32 %v1537, 1.0
      %v1540 = vmul.f32 %v1524, %v1538
      %v1541 = vmul.f32 %v1525, %v1539
      %v1542 = vpack.c.bf16 %v1541, %v1540
      %v1543 = vlaneseq
      %v1544 = vshrl.u32 %v1543, 7
      %v1545 = vsub.s32 0, %v1544
      %v1546 = vrot.slane %v355, %v1545
      %vm1547 = vcmask 523264
      %v1549 = vsel %vm1547, %v1542, 0
      %1551 = vmatprep.subr.bf16.mxu0 0
      %1552 = vmatpush1.bf16.msra.mxu0 %v345
      %1553 = vmatprep.subr.bf16.mxu0 0
      %1554 = vmatpush1.bf16.msra.mxu0 %v346
      %1555 = vmatprep.subr.bf16.mxu0 0
      %1556 = vmatpush1.bf16.msra.mxu0 %v347
      %1557 = vmatprep.subr.bf16.mxu0 0
      %1558 = vmatpush1.bf16.msra.mxu0 %v348
      %1559 = vmatprep.subr.bf16.mxu0 0
      %1560 = vmatpush1.bf16.msra.mxu0 0
      %1561 = vmatprep.subr.bf16.mxu0 0
      %1562 = vmatpush1.bf16.msra.mxu0 0
      %1563 = vmatprep.subr.bf16.mxu0 0
      %1564 = vmatpush1.bf16.msra.mxu0 0
      %1565 = vmatprep.subr.bf16.mxu0 0
      %1566 = vmatpush1.bf16.msra.mxu0 0
      %1567 = vmatprep.subr.bf16.mxu0 0
      %1568 = vmatpush1.bf16.msra.mxu0 0
      %1569 = vmatprep.subr.bf16.mxu0 0
      %1570 = vmatpush1.bf16.msra.mxu0 0
      %1571 = vmatprep.subr.bf16.mxu0 0
      %1572 = vmatpush1.bf16.msra.mxu0 0
      %1573 = vmatprep.subr.bf16.mxu0 0
      %1574 = vmatpush1.bf16.msra.mxu0 0
      %1575 = vmatprep.subr.bf16.mxu0 0
      %1576 = vmatpush1.bf16.msra.mxu0 0
      %1577 = vmatprep.subr.bf16.mxu0 0
      %1578 = vmatpush1.bf16.msra.mxu0 0
      %1579 = vmatprep.subr.bf16.mxu0 0
      %1580 = vmatpush1.bf16.msra.mxu0 0
      %1581 = vmatprep.subr.bf16.mxu0 0
      %1582 = vmatpush1.bf16.msra.mxu0 0
      %1583 = vmatprep.mubr.bf16.mxu0 0
      %1584 = vmatmul.mubr.bf16.gmra.mrb[0].mxu0 %v1549
      %v1585 = vpop.f32.mrb[0].mxu0
      %v1586 = vadd.f32 %v1546, %v1585
      %v1587 = vpop.f32.mrb[0].mxu0
      %v1588 = vpop.f32.mrb[0].mxu0
      %v1589 = vadd.f32 %v1546, %v1588
      %v1590 = vpop.f32.mrb[0].mxu0
      %1591 = vdwg.mxu0
      %v1592 = vadd.f32 %v1586, %v1473
      %v1593 = vadd.f32 %v1589, %v1474
      %v1594 = vsel %vm249, %v1592, 0.0
      %1595 = vadd.xlane.f32.xlu0 %v1594
      %v1596 = vpop.xlane.xlu0 %1595
      %v1597 = vsel %vm249, %v1593, 0.0
      %1598 = vadd.xlane.f32.xlu0 %v1597
      %v1599 = vpop.xlane.xlu0 %1598
      %v1600 = vmul.f32 %v1596, %v256
      %v1601 = vmul.f32 %v1599, %v256
      %v1602 = vsub.f32 %v1592, %v1600
      %v1603 = vsub.f32 %v1593, %v1601
      %v1604 = vmul.f32 %v1602, %v1602
      %v1605 = vmul.f32 %v1603, %v1603
      %v1606 = vsel %vm249, %v1604, 0.0
      %1607 = vadd.xlane.f32.xlu0 %v1606
      %v1608 = vpop.xlane.xlu0 %1607
      %v1609 = vsel %vm249, %v1605, 0.0
      %1610 = vadd.xlane.f32.xlu0 %v1609
      %v1611 = vpop.xlane.xlu0 %1610
      %v1612 = vmul.f32 %v1608, %v256
      %v1613 = vmul.f32 %v1611, %v256
      %v1614 = vadd.f32 %v1612, 1e-12
      %v1615 = vadd.f32 %v1613, 1e-12
      %v1616 = vrsqrt.pop %v1614
      %v1617 = vrsqrt.pop %v1615
      %v1618 = vmul.f32 %v1602, %v1616
      %v1619 = vmul.f32 %v1603, %v1617
      %v1620 = vlaneseq
      %v1621 = vshrl.u32 %v1620, 7
      %v1622 = vsub.s32 0, %v1621
      %v1623 = vrot.slane %v356, %v1622
      %v1624 = vmul.f32 %v1618, %v1623
      %v1625 = vmul.f32 %v1619, %v1623
      %v1626 = vlaneseq
      %v1627 = vshrl.u32 %v1626, 7
      %v1628 = vsub.s32 0, %v1627
      %v1629 = vrot.slane %v357, %v1628
      %v1630 = vadd.f32 %v1624, %v1629
      %v1631 = vadd.f32 %v1625, %v1629
      %s1632 = scalar_lea.vmem %s2, 208
      %v1633 = vld [vmem:[%s1632] sm:$0xff]
      %v1634 = vld [vmem:[%s1632 + $0x8] sm:$0xff]
      %v1635 = vld [vmem:[%s1632 + $0x10] sm:$0xff]
      %v1636 = vld [vmem:[%s1632 + $0x18] sm:$0xff]
      %v1637 = vpack.c.bf16 %v1634, %v1633
      %v1638 = vpack.c.bf16 %v1636, %v1635
      %v1639 = vld [vmem:[%s1632 + $0x20] sm:$0xff]
      %v1640 = vld [vmem:[%s1632 + $0x28] sm:$0xff]
      %v1641 = vld [vmem:[%s1632 + $0x30] sm:$0xff]
      %v1642 = vld [vmem:[%s1632 + $0x38] sm:$0xff]
      %v1643 = vpack.c.bf16 %v1640, %v1639
      %v1644 = vpack.c.bf16 %v1642, %v1641
      %v1645 = vld [vmem:[%s1632 + $0x40] sm:$0xff]
      %v1646 = vld [vmem:[%s1632 + $0x48] sm:$0xff]
      %v1647 = vld [vmem:[%s1632 + $0x50] sm:$0xff]
      %v1648 = vld [vmem:[%s1632 + $0x58] sm:$0xff]
      %v1649 = vpack.c.bf16 %v1646, %v1645
      %v1650 = vpack.c.bf16 %v1648, %v1647
      %v1651 = vld [vmem:[%s1632 + $0x60] sm:$0xff]
      %v1652 = vld [vmem:[%s1632 + $0x68] sm:$0xff]
      %v1653 = vld [vmem:[%s1632 + $0x70] sm:$0xff]
      %v1654 = vld [vmem:[%s1632 + $0x78] sm:$0xff]
      %v1655 = vpack.c.bf16 %v1652, %v1651
      %v1656 = vpack.c.bf16 %v1654, %v1653
      %v1657 = vld [vmem:[%s1632 + $0x80] sm:$0xff]
      %v1658 = vld [vmem:[%s1632 + $0x88] sm:$0xff]
      %v1659 = vld [vmem:[%s1632 + $0x90] sm:$0xff]
      %v1660 = vld [vmem:[%s1632 + $0x98] sm:$0xff]
      %v1661 = vld [vmem:[%s1632 + $0xa0] sm:$0xff]
      %v1662 = vld [vmem:[%s1632 + $0xa8] sm:$0xff]
      %v1663 = vld [vmem:[%s1632 + $0xb0] sm:$0xff]
      %v1664 = vld [vmem:[%s1632 + $0xb8] sm:$0xff]
      %v1665 = vpack.c.bf16 %v1658, %v1657
      %v1666 = vpack.c.bf16 %v1660, %v1659
      %v1667 = vpack.c.bf16 %v1662, %v1661
      %v1668 = vpack.c.bf16 %v1664, %v1663
      %v1669 = vld [vmem:[%s1632 + $0xc0] sm:$0x1]
      %v1670 = vld [vmem:[%s1632 + $0xc1] sm:$0x1]
      %v1671 = vld [vmem:[%s1632 + $0xc2] sm:$0x1]
      %v1672 = vld [vmem:[%s1632 + $0xc3] sm:$0x1]
      %v1673 = vld [vmem:[%s1632 + $0xc4] sm:$0x1]
      %v1674 = vld [vmem:[%s1632 + $0xc5] sm:$0x1]
      %v1675 = vld [vmem:[%s1632 + $0xc6] sm:$0x1]
      %v1676 = vld [vmem:[%s1632 + $0xc7] sm:$0x1]
      %v1677 = vld [vmem:[%s1632 + $0xc8] sm:$0x1]
      %s1678 = scalar_lea.vmem %s3, 40
      %v1679 = vld [vmem:[%s1678] sm:$0xff]
      %v1680 = vld [vmem:[%s1678 + $0x8] sm:$0xff]
      %v1681 = vld [vmem:[%s1678 + $0x10] sm:$0xff]
      %v1682 = vld [vmem:[%s1678 + $0x18] sm:$0xff]
      %v1683 = vpack.c.bf16 %v1680, %v1679
      %v1684 = vpack.c.bf16 %v1682, %v1681
      %v1685 = vld [vmem:[%s1678 + $0x20] sm:$0x1]
      %v1686 = vpack.c.bf16 %v1631, %v1630
      %v1687 = vlaneseq
      %v1688 = vshrl.u32 %v1687, 7
      %v1689 = vsub.s32 0, %v1688
      %v1690 = vrot.slane %v1669, %v1689
      %v1692 = vsel %vm249, %v1686, 0
      %1694 = vmatprep.subr.bf16.mxu0 0
      %1695 = vmatpush1.bf16.msra.mxu0 %v1637
      %1696 = vmatprep.subr.bf16.mxu0 0
      %1697 = vmatpush1.bf16.msra.mxu0 %v1638
      %1698 = vmatprep.subr.bf16.mxu0 0
      %1699 = vmatpush1.bf16.msra.mxu0 0
      %1700 = vmatprep.subr.bf16.mxu0 0
      %1701 = vmatpush1.bf16.msra.mxu0 0
      %1702 = vmatprep.subr.bf16.mxu0 0
      %1703 = vmatpush1.bf16.msra.mxu0 0
      %1704 = vmatprep.subr.bf16.mxu0 0
      %1705 = vmatpush1.bf16.msra.mxu0 0
      %1706 = vmatprep.subr.bf16.mxu0 0
      %1707 = vmatpush1.bf16.msra.mxu0 0
      %1708 = vmatprep.subr.bf16.mxu0 0
      %1709 = vmatpush1.bf16.msra.mxu0 0
      %1710 = vmatprep.subr.bf16.mxu0 0
      %1711 = vmatpush1.bf16.msra.mxu0 0
      %1712 = vmatprep.subr.bf16.mxu0 0
      %1713 = vmatpush1.bf16.msra.mxu0 0
      %1714 = vmatprep.subr.bf16.mxu0 0
      %1715 = vmatpush1.bf16.msra.mxu0 0
      %1716 = vmatprep.subr.bf16.mxu0 0
      %1717 = vmatpush1.bf16.msra.mxu0 0
      %1718 = vmatprep.subr.bf16.mxu0 0
      %1719 = vmatpush1.bf16.msra.mxu0 0
      %1720 = vmatprep.subr.bf16.mxu0 0
      %1721 = vmatpush1.bf16.msra.mxu0 0
      %1722 = vmatprep.subr.bf16.mxu0 0
      %1723 = vmatpush1.bf16.msra.mxu0 0
      %1724 = vmatprep.subr.bf16.mxu0 0
      %1725 = vmatpush1.bf16.msra.mxu0 0
      %1726 = vmatprep.mubr.bf16.mxu0 0
      %1727 = vmatmul.mubr.bf16.gmra.mrb[0].mxu0 %v1692
      %v1728 = vpop.f32.mrb[0].mxu0
      %v1729 = vadd.f32 %v1690, %v1728
      %v1730 = vpop.f32.mrb[0].mxu0
      %v1731 = vpop.f32.mrb[0].mxu0
      %v1732 = vadd.f32 %v1690, %v1731
      %v1733 = vpop.f32.mrb[0].mxu0
      %1734 = vdwg.mxu0
      %v1735 = vlaneseq
      %v1736 = vshrl.u32 %v1735, 7
      %v1737 = vsub.s32 0, %v1736
      %v1738 = vrot.slane %v1670, %v1737
      %1739 = vmatprep.subr.bf16.mxu0 0
      %1740 = vmatpush1.bf16.msra.mxu0 %v1643
      %1741 = vmatprep.subr.bf16.mxu0 0
      %1742 = vmatpush1.bf16.msra.mxu0 %v1644
      %1743 = vmatprep.subr.bf16.mxu0 0
      %1744 = vmatpush1.bf16.msra.mxu0 0
      %1745 = vmatprep.subr.bf16.mxu0 0
      %1746 = vmatpush1.bf16.msra.mxu0 0
      %1747 = vmatprep.subr.bf16.mxu0 0
      %1748 = vmatpush1.bf16.msra.mxu0 0
      %1749 = vmatprep.subr.bf16.mxu0 0
      %1750 = vmatpush1.bf16.msra.mxu0 0
      %1751 = vmatprep.subr.bf16.mxu0 0
      %1752 = vmatpush1.bf16.msra.mxu0 0
      %1753 = vmatprep.subr.bf16.mxu0 0
      %1754 = vmatpush1.bf16.msra.mxu0 0
      %1755 = vmatprep.subr.bf16.mxu0 0
      %1756 = vmatpush1.bf16.msra.mxu0 0
      %1757 = vmatprep.subr.bf16.mxu0 0
      %1758 = vmatpush1.bf16.msra.mxu0 0
      %1759 = vmatprep.subr.bf16.mxu0 0
      %1760 = vmatpush1.bf16.msra.mxu0 0
      %1761 = vmatprep.subr.bf16.mxu0 0
      %1762 = vmatpush1.bf16.msra.mxu0 0
      %1763 = vmatprep.subr.bf16.mxu0 0
      %1764 = vmatpush1.bf16.msra.mxu0 0
      %1765 = vmatprep.subr.bf16.mxu0 0
      %1766 = vmatpush1.bf16.msra.mxu0 0
      %1767 = vmatprep.subr.bf16.mxu0 0
      %1768 = vmatpush1.bf16.msra.mxu0 0
      %1769 = vmatprep.subr.bf16.mxu0 0
      %1770 = vmatpush1.bf16.msra.mxu0 0
      %1771 = vmatprep.mubr.bf16.mxu0 0
      %1772 = vmatmul.mubr.bf16.gmra.mrb[0].mxu0 %v1692
      %v1773 = vpop.f32.mrb[0].mxu0
      %v1774 = vadd.f32 %v1738, %v1773
      %v1775 = vpop.f32.mrb[0].mxu0
      %v1776 = vpop.f32.mrb[0].mxu0
      %v1777 = vadd.f32 %v1738, %v1776
      %v1778 = vpop.f32.mrb[0].mxu0
      %1779 = vdwg.mxu0
      %v1780 = vlaneseq
      %v1781 = vshrl.u32 %v1780, 7
      %v1782 = vsub.s32 0, %v1781
      %v1783 = vrot.slane %v1671, %v1782
      %1784 = vmatprep.subr.bf16.mxu0 0
      %1785 = vmatpush1.bf16.msra.mxu0 %v1649
      %1786 = vmatprep.subr.bf16.mxu0 0
      %1787 = vmatpush1.bf16.msra.mxu0 %v1650
      %1788 = vmatprep.subr.bf16.mxu0 0
      %1789 = vmatpush1.bf16.msra.mxu0 0
      %1790 = vmatprep.subr.bf16.mxu0 0
      %1791 = vmatpush1.bf16.msra.mxu0 0
      %1792 = vmatprep.subr.bf16.mxu0 0
      %1793 = vmatpush1.bf16.msra.mxu0 0
      %1794 = vmatprep.subr.bf16.mxu0 0
      %1795 = vmatpush1.bf16.msra.mxu0 0
      %1796 = vmatprep.subr.bf16.mxu0 0
      %1797 = vmatpush1.bf16.msra.mxu0 0
      %1798 = vmatprep.subr.bf16.mxu0 0
      %1799 = vmatpush1.bf16.msra.mxu0 0
      %1800 = vmatprep.subr.bf16.mxu0 0
      %1801 = vmatpush1.bf16.msra.mxu0 0
      %1802 = vmatprep.subr.bf16.mxu0 0
      %1803 = vmatpush1.bf16.msra.mxu0 0
      %1804 = vmatprep.subr.bf16.mxu0 0
      %1805 = vmatpush1.bf16.msra.mxu0 0
      %1806 = vmatprep.subr.bf16.mxu0 0
      %1807 = vmatpush1.bf16.msra.mxu0 0
      %1808 = vmatprep.subr.bf16.mxu0 0
      %1809 = vmatpush1.bf16.msra.mxu0 0
      %1810 = vmatprep.subr.bf16.mxu0 0
      %1811 = vmatpush1.bf16.msra.mxu0 0
      %1812 = vmatprep.subr.bf16.mxu0 0
      %1813 = vmatpush1.bf16.msra.mxu0 0
      %1814 = vmatprep.subr.bf16.mxu0 0
      %1815 = vmatpush1.bf16.msra.mxu0 0
      %1816 = vmatprep.mubr.bf16.mxu0 0
      %1817 = vmatmul.mubr.bf16.gmra.mrb[0].mxu0 %v1692
      %v1818 = vpop.f32.mrb[0].mxu0
      %v1819 = vadd.f32 %v1783, %v1818
      %v1820 = vpop.f32.mrb[0].mxu0
      %v1821 = vpop.f32.mrb[0].mxu0
      %v1822 = vadd.f32 %v1783, %v1821
      %v1823 = vpop.f32.mrb[0].mxu0
      %1824 = vdwg.mxu0
      %v1825 = vpack.c.bf16 %v1774, %v1774
      %v1826 = vpack.c.bf16 %v1777, %v1777
      %v1827 = vmul.f32 %v1729, %v297
      %v1828 = vmul.f32 %v1732, %v297
      %v1829 = vpack.c.bf16 %v1827, %v1827
      %v1830 = vpack.c.bf16 %v1828, %v1828
      %v1831 = vmul.f32 %v1819, %v297
      %v1832 = vmul.f32 %v1822, %v297
      %v1833 = vpack.c.bf16 %v1831, %v1831
      %v1834 = vpack.c.bf16 %v1832, %v1832
      %v1836 = vsel %vm249, %v1829, 0
      %v1839 = vsel %vm249, %v1825, 0
      %1841 = vmatprep.subr.bf16.mxu0 0
      %1842 = vmatpush1.bf16.xpose.msra.mxu0 %v1839
      %1843 = vmatprep.subr.bf16.mxu0 0
      %1844 = vmatpush1.bf16.xpose.msra.mxu0 0
      %1845 = vmatprep.subr.bf16.mxu0 0
      %1846 = vmatpush1.bf16.xpose.msra.mxu0 0
      %1847 = vmatprep.subr.bf16.mxu0 0
      %1848 = vmatpush1.bf16.xpose.msra.mxu0 0
      %1849 = vmatprep.subr.bf16.mxu0 0
      %1850 = vmatpush1.bf16.xpose.msra.mxu0 0
      %1851 = vmatprep.subr.bf16.mxu0 0
      %1852 = vmatpush1.bf16.xpose.msra.mxu0 0
      %1853 = vmatprep.subr.bf16.mxu0 0
      %1854 = vmatpush1.bf16.xpose.msra.mxu0 0
      %1855 = vmatprep.subr.bf16.mxu0 0
      %1856 = vmatpush1.bf16.xpose.msra.mxu0 0
      %1857 = vmatprep.subr.bf16.mxu0 0
      %1858 = vmatpush1.bf16.xpose.msra.mxu0 0
      %1859 = vmatprep.subr.bf16.mxu0 0
      %1860 = vmatpush1.bf16.xpose.msra.mxu0 0
      %1861 = vmatprep.subr.bf16.mxu0 0
      %1862 = vmatpush1.bf16.xpose.msra.mxu0 0
      %1863 = vmatprep.subr.bf16.mxu0 0
      %1864 = vmatpush1.bf16.xpose.msra.mxu0 0
      %1865 = vmatprep.subr.bf16.mxu0 0
      %1866 = vmatpush1.bf16.xpose.msra.mxu0 0
      %1867 = vmatprep.subr.bf16.mxu0 0
      %1868 = vmatpush1.bf16.xpose.msra.mxu0 0
      %1869 = vmatprep.subr.bf16.mxu0 0
      %1870 = vmatpush1.bf16.xpose.msra.mxu0 0
      %1871 = vmatprep.subr.bf16.mxu0 0
      %1872 = vmatpush1.bf16.xpose.msra.mxu0 0
      %1873 = vmatprep.mubr.bf16.mxu0 0
      %1874 = vmatmul.mubr.bf16.gmra.mrb[0].mxu0 %v1836
      %v1875 = vpop.f32.mrb[0].mxu0
      %v1876 = vadd.f32 0.0, %v1875
      %v1877 = vpop.f32.mrb[0].mxu0
      %v1878 = vpop.f32.mrb[0].mxu0
      %v1879 = vpop.f32.mrb[0].mxu0
      %1880 = vdwg.mxu0
      %v1882 = vsel %vm249, %v1830, 0
      %v1885 = vsel %vm249, %v1826, 0
      %1887 = vmatprep.subr.bf16.mxu0 0
      %1888 = vmatpush1.bf16.xpose.msra.mxu0 %v1885
      %1889 = vmatprep.subr.bf16.mxu0 0
      %1890 = vmatpush1.bf16.xpose.msra.mxu0 0
      %1891 = vmatprep.subr.bf16.mxu0 0
      %1892 = vmatpush1.bf16.xpose.msra.mxu0 0
      %1893 = vmatprep.subr.bf16.mxu0 0
      %1894 = vmatpush1.bf16.xpose.msra.mxu0 0
      %1895 = vmatprep.subr.bf16.mxu0 0
      %1896 = vmatpush1.bf16.xpose.msra.mxu0 0
      %1897 = vmatprep.subr.bf16.mxu0 0
      %1898 = vmatpush1.bf16.xpose.msra.mxu0 0
      %1899 = vmatprep.subr.bf16.mxu0 0
      %1900 = vmatpush1.bf16.xpose.msra.mxu0 0
      %1901 = vmatprep.subr.bf16.mxu0 0
      %1902 = vmatpush1.bf16.xpose.msra.mxu0 0
      %1903 = vmatprep.subr.bf16.mxu0 0
      %1904 = vmatpush1.bf16.xpose.msra.mxu0 0
      %1905 = vmatprep.subr.bf16.mxu0 0
      %1906 = vmatpush1.bf16.xpose.msra.mxu0 0
      %1907 = vmatprep.subr.bf16.mxu0 0
      %1908 = vmatpush1.bf16.xpose.msra.mxu0 0
      %1909 = vmatprep.subr.bf16.mxu0 0
      %1910 = vmatpush1.bf16.xpose.msra.mxu0 0
      %1911 = vmatprep.subr.bf16.mxu0 0
      %1912 = vmatpush1.bf16.xpose.msra.mxu0 0
      %1913 = vmatprep.subr.bf16.mxu0 0
      %1914 = vmatpush1.bf16.xpose.msra.mxu0 0
      %1915 = vmatprep.subr.bf16.mxu0 0
      %1916 = vmatpush1.bf16.xpose.msra.mxu0 0
      %1917 = vmatprep.subr.bf16.mxu0 0
      %1918 = vmatpush1.bf16.xpose.msra.mxu0 0
      %1919 = vmatprep.mubr.bf16.mxu0 0
      %1920 = vmatmul.mubr.bf16.gmra.mrb[0].mxu0 %v1882
      %v1921 = vpop.f32.mrb[0].mxu0
      %v1922 = vadd.f32 0.0, %v1921
      %v1923 = vpop.f32.mrb[0].mxu0
      %v1924 = vpop.f32.mrb[0].mxu0
      %v1925 = vpop.f32.mrb[0].mxu0
      %1926 = vdwg.mxu0
      %v1927 = vmul.f32 %v1876, 0.35355338
      %v1928 = vmul.f32 %v1922, 0.35355338
      %v1929 = vadd.f32 %v1927, %v613
      %v1930 = vadd.f32 %v1928, %v617
      %v1931 = vsel %vm622, %v1929, -inf
      %1932 = vmax.xlane.f32.xlu0 %v1931
      %v1933 = vpop.xlane.xlu0 %1932
      %v1934 = vsel %vm622, %v1930, -inf
      %1935 = vmax.xlane.f32.xlu0 %v1934
      %v1936 = vpop.xlane.xlu0 %1935
      %v1937 = vsub.f32 %v1929, %v1933
      %v1938 = vsub.f32 %v1930, %v1936
      %v1939 = vmul.f32 %v1937, 1.442695
      %v1940 = vpow.pop %v1939
      %v1941 = vmul.f32 %v1938, 1.442695
      %v1942 = vpow.pop %v1941
      %v1943 = vsel %vm622, %v1940, 0.0
      %1944 = vadd.xlane.f32.xlu0 %v1943
      %v1945 = vpop.xlane.xlu0 %1944
      %v1946 = vsel %vm622, %v1942, 0.0
      %1947 = vadd.xlane.f32.xlu0 %v1946
      %v1948 = vpop.xlane.xlu0 %1947
      %v1949 = vrcp.pop %v1945
      %v1950 = vrcp.pop %v1948
      %v1951 = vmul.f32 %v1940, %v1949
      %v1952 = vmul.f32 %v1942, %v1950
      %v1953 = vpack.c.bf16 %v1951, %v1951
      %v1954 = vpack.c.bf16 %v1952, %v1952
      %v1955 = vmul.f32 %v1729, %v302
      %v1956 = vmul.f32 %v1732, %v302
      %v1957 = vpack.c.bf16 %v1955, %v1955
      %v1958 = vpack.c.bf16 %v1956, %v1956
      %v1959 = vmul.f32 %v1819, %v302
      %v1960 = vmul.f32 %v1822, %v302
      %v1961 = vpack.c.bf16 %v1959, %v1959
      %v1962 = vpack.c.bf16 %v1960, %v1960
      %v1964 = vsel %vm249, %v1957, 0
      %1966 = vmatprep.subr.bf16.mxu0 0
      %1967 = vmatpush1.bf16.xpose.msra.mxu0 %v1839
      %1968 = vmatprep.subr.bf16.mxu0 0
      %1969 = vmatpush1.bf16.xpose.msra.mxu0 0
      %1970 = vmatprep.subr.bf16.mxu0 0
      %1971 = vmatpush1.bf16.xpose.msra.mxu0 0
      %1972 = vmatprep.subr.bf16.mxu0 0
      %1973 = vmatpush1.bf16.xpose.msra.mxu0 0
      %1974 = vmatprep.subr.bf16.mxu0 0
      %1975 = vmatpush1.bf16.xpose.msra.mxu0 0
      %1976 = vmatprep.subr.bf16.mxu0 0
      %1977 = vmatpush1.bf16.xpose.msra.mxu0 0
      %1978 = vmatprep.subr.bf16.mxu0 0
      %1979 = vmatpush1.bf16.xpose.msra.mxu0 0
      %1980 = vmatprep.subr.bf16.mxu0 0
      %1981 = vmatpush1.bf16.xpose.msra.mxu0 0
      %1982 = vmatprep.subr.bf16.mxu0 0
      %1983 = vmatpush1.bf16.xpose.msra.mxu0 0
      %1984 = vmatprep.subr.bf16.mxu0 0
      %1985 = vmatpush1.bf16.xpose.msra.mxu0 0
      %1986 = vmatprep.subr.bf16.mxu0 0
      %1987 = vmatpush1.bf16.xpose.msra.mxu0 0
      %1988 = vmatprep.subr.bf16.mxu0 0
      %1989 = vmatpush1.bf16.xpose.msra.mxu0 0
      %1990 = vmatprep.subr.bf16.mxu0 0
      %1991 = vmatpush1.bf16.xpose.msra.mxu0 0
      %1992 = vmatprep.subr.bf16.mxu0 0
      %1993 = vmatpush1.bf16.xpose.msra.mxu0 0
      %1994 = vmatprep.subr.bf16.mxu0 0
      %1995 = vmatpush1.bf16.xpose.msra.mxu0 0
      %1996 = vmatprep.subr.bf16.mxu0 0
      %1997 = vmatpush1.bf16.xpose.msra.mxu0 0
      %1998 = vmatprep.mubr.bf16.mxu0 0
      %1999 = vmatmul.mubr.bf16.gmra.mrb[0].mxu0 %v1964
      %v2000 = vpop.f32.mrb[0].mxu0
      %v2001 = vadd.f32 0.0, %v2000
      %v2002 = vpop.f32.mrb[0].mxu0
      %v2003 = vpop.f32.mrb[0].mxu0
      %v2004 = vpop.f32.mrb[0].mxu0
      %2005 = vdwg.mxu0
      %v2007 = vsel %vm249, %v1958, 0
      %2009 = vmatprep.subr.bf16.mxu0 0
      %2010 = vmatpush1.bf16.xpose.msra.mxu0 %v1885
      %2011 = vmatprep.subr.bf16.mxu0 0
      %2012 = vmatpush1.bf16.xpose.msra.mxu0 0
      %2013 = vmatprep.subr.bf16.mxu0 0
      %2014 = vmatpush1.bf16.xpose.msra.mxu0 0
      %2015 = vmatprep.subr.bf16.mxu0 0
      %2016 = vmatpush1.bf16.xpose.msra.mxu0 0
      %2017 = vmatprep.subr.bf16.mxu0 0
      %2018 = vmatpush1.bf16.xpose.msra.mxu0 0
      %2019 = vmatprep.subr.bf16.mxu0 0
      %2020 = vmatpush1.bf16.xpose.msra.mxu0 0
      %2021 = vmatprep.subr.bf16.mxu0 0
      %2022 = vmatpush1.bf16.xpose.msra.mxu0 0
      %2023 = vmatprep.subr.bf16.mxu0 0
      %2024 = vmatpush1.bf16.xpose.msra.mxu0 0
      %2025 = vmatprep.subr.bf16.mxu0 0
      %2026 = vmatpush1.bf16.xpose.msra.mxu0 0
      %2027 = vmatprep.subr.bf16.mxu0 0
      %2028 = vmatpush1.bf16.xpose.msra.mxu0 0
      %2029 = vmatprep.subr.bf16.mxu0 0
      %2030 = vmatpush1.bf16.xpose.msra.mxu0 0
      %2031 = vmatprep.subr.bf16.mxu0 0
      %2032 = vmatpush1.bf16.xpose.msra.mxu0 0
      %2033 = vmatprep.subr.bf16.mxu0 0
      %2034 = vmatpush1.bf16.xpose.msra.mxu0 0
      %2035 = vmatprep.subr.bf16.mxu0 0
      %2036 = vmatpush1.bf16.xpose.msra.mxu0 0
      %2037 = vmatprep.subr.bf16.mxu0 0
      %2038 = vmatpush1.bf16.xpose.msra.mxu0 0
      %2039 = vmatprep.subr.bf16.mxu0 0
      %2040 = vmatpush1.bf16.xpose.msra.mxu0 0
      %2041 = vmatprep.mubr.bf16.mxu0 0
      %2042 = vmatmul.mubr.bf16.gmra.mrb[0].mxu0 %v2007
      %v2043 = vpop.f32.mrb[0].mxu0
      %v2044 = vadd.f32 0.0, %v2043
      %v2045 = vpop.f32.mrb[0].mxu0
      %v2046 = vpop.f32.mrb[0].mxu0
      %v2047 = vpop.f32.mrb[0].mxu0
      %2048 = vdwg.mxu0
      %v2049 = vmul.f32 %v2001, 0.35355338
      %v2050 = vmul.f32 %v2044, 0.35355338
      %v2051 = vadd.f32 %v2049, %v613
      %v2052 = vadd.f32 %v2050, %v617
      %v2053 = vsel %vm622, %v2051, -inf
      %2054 = vmax.xlane.f32.xlu0 %v2053
      %v2055 = vpop.xlane.xlu0 %2054
      %v2056 = vsel %vm622, %v2052, -inf
      %2057 = vmax.xlane.f32.xlu0 %v2056
      %v2058 = vpop.xlane.xlu0 %2057
      %v2059 = vsub.f32 %v2051, %v2055
      %v2060 = vsub.f32 %v2052, %v2058
      %v2061 = vmul.f32 %v2059, 1.442695
      %v2062 = vpow.pop %v2061
      %v2063 = vmul.f32 %v2060, 1.442695
      %v2064 = vpow.pop %v2063
      %v2065 = vsel %vm622, %v2062, 0.0
      %2066 = vadd.xlane.f32.xlu0 %v2065
      %v2067 = vpop.xlane.xlu0 %2066
      %v2068 = vsel %vm622, %v2064, 0.0
      %2069 = vadd.xlane.f32.xlu0 %v2068
      %v2070 = vpop.xlane.xlu0 %2069
      %v2071 = vrcp.pop %v2067
      %v2072 = vrcp.pop %v2070
      %v2073 = vmul.f32 %v2062, %v2071
      %v2074 = vmul.f32 %v2064, %v2072
      %v2075 = vpack.c.bf16 %v2073, %v2073
      %v2076 = vpack.c.bf16 %v2074, %v2074
      %v2078 = vsel %vm622, %v2075, 0
      %v2081 = vsel %vm772, %v1961, 0
      %2083 = vmatprep.subr.bf16.mxu0 0
      %2084 = vmatpush1.bf16.msra.mxu0 %v2081
      %2085 = vmatprep.subr.bf16.mxu0 0
      %2086 = vmatpush1.bf16.msra.mxu0 0
      %2087 = vmatprep.subr.bf16.mxu0 0
      %2088 = vmatpush1.bf16.msra.mxu0 0
      %2089 = vmatprep.subr.bf16.mxu0 0
      %2090 = vmatpush1.bf16.msra.mxu0 0
      %2091 = vmatprep.subr.bf16.mxu0 0
      %2092 = vmatpush1.bf16.msra.mxu0 0
      %2093 = vmatprep.subr.bf16.mxu0 0
      %2094 = vmatpush1.bf16.msra.mxu0 0
      %2095 = vmatprep.subr.bf16.mxu0 0
      %2096 = vmatpush1.bf16.msra.mxu0 0
      %2097 = vmatprep.subr.bf16.mxu0 0
      %2098 = vmatpush1.bf16.msra.mxu0 0
      %2099 = vmatprep.subr.bf16.mxu0 0
      %2100 = vmatpush1.bf16.msra.mxu0 0
      %2101 = vmatprep.subr.bf16.mxu0 0
      %2102 = vmatpush1.bf16.msra.mxu0 0
      %2103 = vmatprep.subr.bf16.mxu0 0
      %2104 = vmatpush1.bf16.msra.mxu0 0
      %2105 = vmatprep.subr.bf16.mxu0 0
      %2106 = vmatpush1.bf16.msra.mxu0 0
      %2107 = vmatprep.subr.bf16.mxu0 0
      %2108 = vmatpush1.bf16.msra.mxu0 0
      %2109 = vmatprep.subr.bf16.mxu0 0
      %2110 = vmatpush1.bf16.msra.mxu0 0
      %2111 = vmatprep.subr.bf16.mxu0 0
      %2112 = vmatpush1.bf16.msra.mxu0 0
      %2113 = vmatprep.subr.bf16.mxu0 0
      %2114 = vmatpush1.bf16.msra.mxu0 0
      %2115 = vmatprep.mubr.bf16.mxu0 0
      %2116 = vmatmul.mubr.bf16.gmra.mrb[0].mxu0 %v2078
      %v2117 = vpop.f32.mrb[0].mxu0
      %v2118 = vadd.f32 0.0, %v2117
      %v2119 = vpop.f32.mrb[0].mxu0
      %v2120 = vpop.f32.mrb[0].mxu0
      %v2121 = vpop.f32.mrb[0].mxu0
      %2122 = vdwg.mxu0
      %v2124 = vsel %vm622, %v2076, 0
      %v2127 = vsel %vm772, %v1962, 0
      %2129 = vmatprep.subr.bf16.mxu0 0
      %2130 = vmatpush1.bf16.msra.mxu0 %v2127
      %2131 = vmatprep.subr.bf16.mxu0 0
      %2132 = vmatpush1.bf16.msra.mxu0 0
      %2133 = vmatprep.subr.bf16.mxu0 0
      %2134 = vmatpush1.bf16.msra.mxu0 0
      %2135 = vmatprep.subr.bf16.mxu0 0
      %2136 = vmatpush1.bf16.msra.mxu0 0
      %2137 = vmatprep.subr.bf16.mxu0 0
      %2138 = vmatpush1.bf16.msra.mxu0 0
      %2139 = vmatprep.subr.bf16.mxu0 0
      %2140 = vmatpush1.bf16.msra.mxu0 0
      %2141 = vmatprep.subr.bf16.mxu0 0
      %2142 = vmatpush1.bf16.msra.mxu0 0
      %2143 = vmatprep.subr.bf16.mxu0 0
      %2144 = vmatpush1.bf16.msra.mxu0 0
      %2145 = vmatprep.subr.bf16.mxu0 0
      %2146 = vmatpush1.bf16.msra.mxu0 0
      %2147 = vmatprep.subr.bf16.mxu0 0
      %2148 = vmatpush1.bf16.msra.mxu0 0
      %2149 = vmatprep.subr.bf16.mxu0 0
      %2150 = vmatpush1.bf16.msra.mxu0 0
      %2151 = vmatprep.subr.bf16.mxu0 0
      %2152 = vmatpush1.bf16.msra.mxu0 0
      %2153 = vmatprep.subr.bf16.mxu0 0
      %2154 = vmatpush1.bf16.msra.mxu0 0
      %2155 = vmatprep.subr.bf16.mxu0 0
      %2156 = vmatpush1.bf16.msra.mxu0 0
      %2157 = vmatprep.subr.bf16.mxu0 0
      %2158 = vmatpush1.bf16.msra.mxu0 0
      %2159 = vmatprep.subr.bf16.mxu0 0
      %2160 = vmatpush1.bf16.msra.mxu0 0
      %2161 = vmatprep.mubr.bf16.mxu0 0
      %2162 = vmatmul.mubr.bf16.gmra.mrb[0].mxu0 %v2124
      %v2163 = vpop.f32.mrb[0].mxu0
      %v2164 = vadd.f32 0.0, %v2163
      %v2165 = vpop.f32.mrb[0].mxu0
      %v2166 = vpop.f32.mrb[0].mxu0
      %v2167 = vpop.f32.mrb[0].mxu0
      %2168 = vdwg.mxu0
      %v2170 = vsel %vm622, %v1953, 0
      %v2173 = vsel %vm772, %v1833, 0
      %2175 = vmatprep.subr.bf16.mxu0 0
      %2176 = vmatpush1.bf16.msra.mxu0 %v2173
      %2177 = vmatprep.subr.bf16.mxu0 0
      %2178 = vmatpush1.bf16.msra.mxu0 0
      %2179 = vmatprep.subr.bf16.mxu0 0
      %2180 = vmatpush1.bf16.msra.mxu0 0
      %2181 = vmatprep.subr.bf16.mxu0 0
      %2182 = vmatpush1.bf16.msra.mxu0 0
      %2183 = vmatprep.subr.bf16.mxu0 0
      %2184 = vmatpush1.bf16.msra.mxu0 0
      %2185 = vmatprep.subr.bf16.mxu0 0
      %2186 = vmatpush1.bf16.msra.mxu0 0
      %2187 = vmatprep.subr.bf16.mxu0 0
      %2188 = vmatpush1.bf16.msra.mxu0 0
      %2189 = vmatprep.subr.bf16.mxu0 0
      %2190 = vmatpush1.bf16.msra.mxu0 0
      %2191 = vmatprep.subr.bf16.mxu0 0
      %2192 = vmatpush1.bf16.msra.mxu0 0
      %2193 = vmatprep.subr.bf16.mxu0 0
      %2194 = vmatpush1.bf16.msra.mxu0 0
      %2195 = vmatprep.subr.bf16.mxu0 0
      %2196 = vmatpush1.bf16.msra.mxu0 0
      %2197 = vmatprep.subr.bf16.mxu0 0
      %2198 = vmatpush1.bf16.msra.mxu0 0
      %2199 = vmatprep.subr.bf16.mxu0 0
      %2200 = vmatpush1.bf16.msra.mxu0 0
      %2201 = vmatprep.subr.bf16.mxu0 0
      %2202 = vmatpush1.bf16.msra.mxu0 0
      %2203 = vmatprep.subr.bf16.mxu0 0
      %2204 = vmatpush1.bf16.msra.mxu0 0
      %2205 = vmatprep.subr.bf16.mxu0 0
      %2206 = vmatpush1.bf16.msra.mxu0 0
      %2207 = vmatprep.mubr.bf16.mxu0 0
      %2208 = vmatmul.mubr.bf16.gmra.mrb[0].mxu0 %v2170
      %v2209 = vpop.f32.mrb[0].mxu0
      %v2210 = vadd.f32 %v2118, %v2209
      %v2211 = vpop.f32.mrb[0].mxu0
      %v2212 = vpop.f32.mrb[0].mxu0
      %v2213 = vpop.f32.mrb[0].mxu0
      %2214 = vdwg.mxu0
      %v2216 = vsel %vm622, %v1954, 0
      %v2219 = vsel %vm772, %v1834, 0
      %2221 = vmatprep.subr.bf16.mxu0 0
      %2222 = vmatpush1.bf16.msra.mxu0 %v2219
      %2223 = vmatprep.subr.bf16.mxu0 0
      %2224 = vmatpush1.bf16.msra.mxu0 0
      %2225 = vmatprep.subr.bf16.mxu0 0
      %2226 = vmatpush1.bf16.msra.mxu0 0
      %2227 = vmatprep.subr.bf16.mxu0 0
      %2228 = vmatpush1.bf16.msra.mxu0 0
      %2229 = vmatprep.subr.bf16.mxu0 0
      %2230 = vmatpush1.bf16.msra.mxu0 0
      %2231 = vmatprep.subr.bf16.mxu0 0
      %2232 = vmatpush1.bf16.msra.mxu0 0
      %2233 = vmatprep.subr.bf16.mxu0 0
      %2234 = vmatpush1.bf16.msra.mxu0 0
      %2235 = vmatprep.subr.bf16.mxu0 0
      %2236 = vmatpush1.bf16.msra.mxu0 0
      %2237 = vmatprep.subr.bf16.mxu0 0
      %2238 = vmatpush1.bf16.msra.mxu0 0
      %2239 = vmatprep.subr.bf16.mxu0 0
      %2240 = vmatpush1.bf16.msra.mxu0 0
      %2241 = vmatprep.subr.bf16.mxu0 0
      %2242 = vmatpush1.bf16.msra.mxu0 0
      %2243 = vmatprep.subr.bf16.mxu0 0
      %2244 = vmatpush1.bf16.msra.mxu0 0
      %2245 = vmatprep.subr.bf16.mxu0 0
      %2246 = vmatpush1.bf16.msra.mxu0 0
      %2247 = vmatprep.subr.bf16.mxu0 0
      %2248 = vmatpush1.bf16.msra.mxu0 0
      %2249 = vmatprep.subr.bf16.mxu0 0
      %2250 = vmatpush1.bf16.msra.mxu0 0
      %2251 = vmatprep.subr.bf16.mxu0 0
      %2252 = vmatpush1.bf16.msra.mxu0 0
      %2253 = vmatprep.mubr.bf16.mxu0 0
      %2254 = vmatmul.mubr.bf16.gmra.mrb[0].mxu0 %v2216
      %v2255 = vpop.f32.mrb[0].mxu0
      %v2256 = vadd.f32 %v2164, %v2255
      %v2257 = vpop.f32.mrb[0].mxu0
      %v2258 = vpop.f32.mrb[0].mxu0
      %v2259 = vpop.f32.mrb[0].mxu0
      %2260 = vdwg.mxu0
      %v2261 = vmul.f32 %v1729, %v307
      %v2262 = vmul.f32 %v1732, %v307
      %v2263 = vpack.c.bf16 %v2261, %v2261
      %v2264 = vpack.c.bf16 %v2262, %v2262
      %v2265 = vmul.f32 %v1819, %v307
      %v2266 = vmul.f32 %v1822, %v307
      %v2267 = vpack.c.bf16 %v2265, %v2265
      %v2268 = vpack.c.bf16 %v2266, %v2266
      %v2270 = vsel %vm249, %v2263, 0
      %2272 = vmatprep.subr.bf16.mxu0 0
      %2273 = vmatpush1.bf16.xpose.msra.mxu0 %v1839
      %2274 = vmatprep.subr.bf16.mxu0 0
      %2275 = vmatpush1.bf16.xpose.msra.mxu0 0
      %2276 = vmatprep.subr.bf16.mxu0 0
      %2277 = vmatpush1.bf16.xpose.msra.mxu0 0
      %2278 = vmatprep.subr.bf16.mxu0 0
      %2279 = vmatpush1.bf16.xpose.msra.mxu0 0
      %2280 = vmatprep.subr.bf16.mxu0 0
      %2281 = vmatpush1.bf16.xpose.msra.mxu0 0
      %2282 = vmatprep.subr.bf16.mxu0 0
      %2283 = vmatpush1.bf16.xpose.msra.mxu0 0
      %2284 = vmatprep.subr.bf16.mxu0 0
      %2285 = vmatpush1.bf16.xpose.msra.mxu0 0
      %2286 = vmatprep.subr.bf16.mxu0 0
      %2287 = vmatpush1.bf16.xpose.msra.mxu0 0
      %2288 = vmatprep.subr.bf16.mxu0 0
      %2289 = vmatpush1.bf16.xpose.msra.mxu0 0
      %2290 = vmatprep.subr.bf16.mxu0 0
      %2291 = vmatpush1.bf16.xpose.msra.mxu0 0
      %2292 = vmatprep.subr.bf16.mxu0 0
      %2293 = vmatpush1.bf16.xpose.msra.mxu0 0
      %2294 = vmatprep.subr.bf16.mxu0 0
      %2295 = vmatpush1.bf16.xpose.msra.mxu0 0
      %2296 = vmatprep.subr.bf16.mxu0 0
      %2297 = vmatpush1.bf16.xpose.msra.mxu0 0
      %2298 = vmatprep.subr.bf16.mxu0 0
      %2299 = vmatpush1.bf16.xpose.msra.mxu0 0
      %2300 = vmatprep.subr.bf16.mxu0 0
      %2301 = vmatpush1.bf16.xpose.msra.mxu0 0
      %2302 = vmatprep.subr.bf16.mxu0 0
      %2303 = vmatpush1.bf16.xpose.msra.mxu0 0
      %2304 = vmatprep.mubr.bf16.mxu0 0
      %2305 = vmatmul.mubr.bf16.gmra.mrb[0].mxu0 %v2270
      %v2306 = vpop.f32.mrb[0].mxu0
      %v2307 = vadd.f32 0.0, %v2306
      %v2308 = vpop.f32.mrb[0].mxu0
      %v2309 = vpop.f32.mrb[0].mxu0
      %v2310 = vpop.f32.mrb[0].mxu0
      %2311 = vdwg.mxu0
      %v2313 = vsel %vm249, %v2264, 0
      %2315 = vmatprep.subr.bf16.mxu0 0
      %2316 = vmatpush1.bf16.xpose.msra.mxu0 %v1885
      %2317 = vmatprep.subr.bf16.mxu0 0
      %2318 = vmatpush1.bf16.xpose.msra.mxu0 0
      %2319 = vmatprep.subr.bf16.mxu0 0
      %2320 = vmatpush1.bf16.xpose.msra.mxu0 0
      %2321 = vmatprep.subr.bf16.mxu0 0
      %2322 = vmatpush1.bf16.xpose.msra.mxu0 0
      %2323 = vmatprep.subr.bf16.mxu0 0
      %2324 = vmatpush1.bf16.xpose.msra.mxu0 0
      %2325 = vmatprep.subr.bf16.mxu0 0
      %2326 = vmatpush1.bf16.xpose.msra.mxu0 0
      %2327 = vmatprep.subr.bf16.mxu0 0
      %2328 = vmatpush1.bf16.xpose.msra.mxu0 0
      %2329 = vmatprep.subr.bf16.mxu0 0
      %2330 = vmatpush1.bf16.xpose.msra.mxu0 0
      %2331 = vmatprep.subr.bf16.mxu0 0
      %2332 = vmatpush1.bf16.xpose.msra.mxu0 0
      %2333 = vmatprep.subr.bf16.mxu0 0
      %2334 = vmatpush1.bf16.xpose.msra.mxu0 0
      %2335 = vmatprep.subr.bf16.mxu0 0
      %2336 = vmatpush1.bf16.xpose.msra.mxu0 0
      %2337 = vmatprep.subr.bf16.mxu0 0
      %2338 = vmatpush1.bf16.xpose.msra.mxu0 0
      %2339 = vmatprep.subr.bf16.mxu0 0
      %2340 = vmatpush1.bf16.xpose.msra.mxu0 0
      %2341 = vmatprep.subr.bf16.mxu0 0
      %2342 = vmatpush1.bf16.xpose.msra.mxu0 0
      %2343 = vmatprep.subr.bf16.mxu0 0
      %2344 = vmatpush1.bf16.xpose.msra.mxu0 0
      %2345 = vmatprep.subr.bf16.mxu0 0
      %2346 = vmatpush1.bf16.xpose.msra.mxu0 0
      %2347 = vmatprep.mubr.bf16.mxu0 0
      %2348 = vmatmul.mubr.bf16.gmra.mrb[0].mxu0 %v2313
      %v2349 = vpop.f32.mrb[0].mxu0
      %v2350 = vadd.f32 0.0, %v2349
      %v2351 = vpop.f32.mrb[0].mxu0
      %v2352 = vpop.f32.mrb[0].mxu0
      %v2353 = vpop.f32.mrb[0].mxu0
      %2354 = vdwg.mxu0
      %v2355 = vmul.f32 %v2307, 0.35355338
      %v2356 = vmul.f32 %v2350, 0.35355338
      %v2357 = vadd.f32 %v2355, %v613
      %v2358 = vadd.f32 %v2356, %v617
      %v2359 = vsel %vm622, %v2357, -inf
      %2360 = vmax.xlane.f32.xlu0 %v2359
      %v2361 = vpop.xlane.xlu0 %2360
      %v2362 = vsel %vm622, %v2358, -inf
      %2363 = vmax.xlane.f32.xlu0 %v2362
      %v2364 = vpop.xlane.xlu0 %2363
      %v2365 = vsub.f32 %v2357, %v2361
      %v2366 = vsub.f32 %v2358, %v2364
      %v2367 = vmul.f32 %v2365, 1.442695
      %v2368 = vpow.pop %v2367
      %v2369 = vmul.f32 %v2366, 1.442695
      %v2370 = vpow.pop %v2369
      %v2371 = vsel %vm622, %v2368, 0.0
      %2372 = vadd.xlane.f32.xlu0 %v2371
      %v2373 = vpop.xlane.xlu0 %2372
      %v2374 = vsel %vm622, %v2370, 0.0
      %2375 = vadd.xlane.f32.xlu0 %v2374
      %v2376 = vpop.xlane.xlu0 %2375
      %v2377 = vrcp.pop %v2373
      %v2378 = vrcp.pop %v2376
      %v2379 = vmul.f32 %v2368, %v2377
      %v2380 = vmul.f32 %v2370, %v2378
      %v2381 = vpack.c.bf16 %v2379, %v2379
      %v2382 = vpack.c.bf16 %v2380, %v2380
      %v2384 = vsel %vm622, %v2381, 0
      %v2387 = vsel %vm772, %v2267, 0
      %2389 = vmatprep.subr.bf16.mxu0 0
      %2390 = vmatpush1.bf16.msra.mxu0 %v2387
      %2391 = vmatprep.subr.bf16.mxu0 0
      %2392 = vmatpush1.bf16.msra.mxu0 0
      %2393 = vmatprep.subr.bf16.mxu0 0
      %2394 = vmatpush1.bf16.msra.mxu0 0
      %2395 = vmatprep.subr.bf16.mxu0 0
      %2396 = vmatpush1.bf16.msra.mxu0 0
      %2397 = vmatprep.subr.bf16.mxu0 0
      %2398 = vmatpush1.bf16.msra.mxu0 0
      %2399 = vmatprep.subr.bf16.mxu0 0
      %2400 = vmatpush1.bf16.msra.mxu0 0
      %2401 = vmatprep.subr.bf16.mxu0 0
      %2402 = vmatpush1.bf16.msra.mxu0 0
      %2403 = vmatprep.subr.bf16.mxu0 0
      %2404 = vmatpush1.bf16.msra.mxu0 0
      %2405 = vmatprep.subr.bf16.mxu0 0
      %2406 = vmatpush1.bf16.msra.mxu0 0
      %2407 = vmatprep.subr.bf16.mxu0 0
      %2408 = vmatpush1.bf16.msra.mxu0 0
      %2409 = vmatprep.subr.bf16.mxu0 0
      %2410 = vmatpush1.bf16.msra.mxu0 0
      %2411 = vmatprep.subr.bf16.mxu0 0
      %2412 = vmatpush1.bf16.msra.mxu0 0
      %2413 = vmatprep.subr.bf16.mxu0 0
      %2414 = vmatpush1.bf16.msra.mxu0 0
      %2415 = vmatprep.subr.bf16.mxu0 0
      %2416 = vmatpush1.bf16.msra.mxu0 0
      %2417 = vmatprep.subr.bf16.mxu0 0
      %2418 = vmatpush1.bf16.msra.mxu0 0
      %2419 = vmatprep.subr.bf16.mxu0 0
      %2420 = vmatpush1.bf16.msra.mxu0 0
      %2421 = vmatprep.mubr.bf16.mxu0 0
      %2422 = vmatmul.mubr.bf16.gmra.mrb[0].mxu0 %v2384
      %v2423 = vpop.f32.mrb[0].mxu0
      %v2424 = vadd.f32 0.0, %v2423
      %v2425 = vpop.f32.mrb[0].mxu0
      %v2426 = vpop.f32.mrb[0].mxu0
      %v2427 = vpop.f32.mrb[0].mxu0
      %2428 = vdwg.mxu0
      %v2430 = vsel %vm622, %v2382, 0
      %v2433 = vsel %vm772, %v2268, 0
      %2435 = vmatprep.subr.bf16.mxu0 0
      %2436 = vmatpush1.bf16.msra.mxu0 %v2433
      %2437 = vmatprep.subr.bf16.mxu0 0
      %2438 = vmatpush1.bf16.msra.mxu0 0
      %2439 = vmatprep.subr.bf16.mxu0 0
      %2440 = vmatpush1.bf16.msra.mxu0 0
      %2441 = vmatprep.subr.bf16.mxu0 0
      %2442 = vmatpush1.bf16.msra.mxu0 0
      %2443 = vmatprep.subr.bf16.mxu0 0
      %2444 = vmatpush1.bf16.msra.mxu0 0
      %2445 = vmatprep.subr.bf16.mxu0 0
      %2446 = vmatpush1.bf16.msra.mxu0 0
      %2447 = vmatprep.subr.bf16.mxu0 0
      %2448 = vmatpush1.bf16.msra.mxu0 0
      %2449 = vmatprep.subr.bf16.mxu0 0
      %2450 = vmatpush1.bf16.msra.mxu0 0
      %2451 = vmatprep.subr.bf16.mxu0 0
      %2452 = vmatpush1.bf16.msra.mxu0 0
      %2453 = vmatprep.subr.bf16.mxu0 0
      %2454 = vmatpush1.bf16.msra.mxu0 0
      %2455 = vmatprep.subr.bf16.mxu0 0
      %2456 = vmatpush1.bf16.msra.mxu0 0
      %2457 = vmatprep.subr.bf16.mxu0 0
      %2458 = vmatpush1.bf16.msra.mxu0 0
      %2459 = vmatprep.subr.bf16.mxu0 0
      %2460 = vmatpush1.bf16.msra.mxu0 0
      %2461 = vmatprep.subr.bf16.mxu0 0
      %2462 = vmatpush1.bf16.msra.mxu0 0
      %2463 = vmatprep.subr.bf16.mxu0 0
      %2464 = vmatpush1.bf16.msra.mxu0 0
      %2465 = vmatprep.subr.bf16.mxu0 0
      %2466 = vmatpush1.bf16.msra.mxu0 0
      %2467 = vmatprep.mubr.bf16.mxu0 0
      %2468 = vmatmul.mubr.bf16.gmra.mrb[0].mxu0 %v2430
      %v2469 = vpop.f32.mrb[0].mxu0
      %v2470 = vadd.f32 0.0, %v2469
      %v2471 = vpop.f32.mrb[0].mxu0
      %v2472 = vpop.f32.mrb[0].mxu0
      %v2473 = vpop.f32.mrb[0].mxu0
      %2474 = vdwg.mxu0
      %v2475 = vadd.f32 %v2210, %v2424
      %v2476 = vadd.f32 %v2256, %v2470
      %v2477 = vmul.f32 %v1729, %v312
      %v2478 = vmul.f32 %v1732, %v312
      %v2479 = vpack.c.bf16 %v2477, %v2477
      %v2480 = vpack.c.bf16 %v2478, %v2478
      %v2481 = vmul.f32 %v1819, %v312
      %v2482 = vmul.f32 %v1822, %v312
      %v2483 = vpack.c.bf16 %v2481, %v2481
      %v2484 = vpack.c.bf16 %v2482, %v2482
      %v2486 = vsel %vm249, %v2479, 0
      %2488 = vmatprep.subr.bf16.mxu0 0
      %2489 = vmatpush1.bf16.xpose.msra.mxu0 %v1839
      %2490 = vmatprep.subr.bf16.mxu0 0
      %2491 = vmatpush1.bf16.xpose.msra.mxu0 0
      %2492 = vmatprep.subr.bf16.mxu0 0
      %2493 = vmatpush1.bf16.xpose.msra.mxu0 0
      %2494 = vmatprep.subr.bf16.mxu0 0
      %2495 = vmatpush1.bf16.xpose.msra.mxu0 0
      %2496 = vmatprep.subr.bf16.mxu0 0
      %2497 = vmatpush1.bf16.xpose.msra.mxu0 0
      %2498 = vmatprep.subr.bf16.mxu0 0
      %2499 = vmatpush1.bf16.xpose.msra.mxu0 0
      %2500 = vmatprep.subr.bf16.mxu0 0
      %2501 = vmatpush1.bf16.xpose.msra.mxu0 0
      %2502 = vmatprep.subr.bf16.mxu0 0
      %2503 = vmatpush1.bf16.xpose.msra.mxu0 0
      %2504 = vmatprep.subr.bf16.mxu0 0
      %2505 = vmatpush1.bf16.xpose.msra.mxu0 0
      %2506 = vmatprep.subr.bf16.mxu0 0
      %2507 = vmatpush1.bf16.xpose.msra.mxu0 0
      %2508 = vmatprep.subr.bf16.mxu0 0
      %2509 = vmatpush1.bf16.xpose.msra.mxu0 0
      %2510 = vmatprep.subr.bf16.mxu0 0
      %2511 = vmatpush1.bf16.xpose.msra.mxu0 0
      %2512 = vmatprep.subr.bf16.mxu0 0
      %2513 = vmatpush1.bf16.xpose.msra.mxu0 0
      %2514 = vmatprep.subr.bf16.mxu0 0
      %2515 = vmatpush1.bf16.xpose.msra.mxu0 0
      %2516 = vmatprep.subr.bf16.mxu0 0
      %2517 = vmatpush1.bf16.xpose.msra.mxu0 0
      %2518 = vmatprep.subr.bf16.mxu0 0
      %2519 = vmatpush1.bf16.xpose.msra.mxu0 0
      %2520 = vmatprep.mubr.bf16.mxu0 0
      %2521 = vmatmul.mubr.bf16.gmra.mrb[0].mxu0 %v2486
      %v2522 = vpop.f32.mrb[0].mxu0
      %v2523 = vadd.f32 0.0, %v2522
      %v2524 = vpop.f32.mrb[0].mxu0
      %v2525 = vpop.f32.mrb[0].mxu0
      %v2526 = vpop.f32.mrb[0].mxu0
      %2527 = vdwg.mxu0
      %v2529 = vsel %vm249, %v2480, 0
      %2531 = vmatprep.subr.bf16.mxu0 0
      %2532 = vmatpush1.bf16.xpose.msra.mxu0 %v1885
      %2533 = vmatprep.subr.bf16.mxu0 0
      %2534 = vmatpush1.bf16.xpose.msra.mxu0 0
      %2535 = vmatprep.subr.bf16.mxu0 0
      %2536 = vmatpush1.bf16.xpose.msra.mxu0 0
      %2537 = vmatprep.subr.bf16.mxu0 0
      %2538 = vmatpush1.bf16.xpose.msra.mxu0 0
      %2539 = vmatprep.subr.bf16.mxu0 0
      %2540 = vmatpush1.bf16.xpose.msra.mxu0 0
      %2541 = vmatprep.subr.bf16.mxu0 0
      %2542 = vmatpush1.bf16.xpose.msra.mxu0 0
      %2543 = vmatprep.subr.bf16.mxu0 0
      %2544 = vmatpush1.bf16.xpose.msra.mxu0 0
      %2545 = vmatprep.subr.bf16.mxu0 0
      %2546 = vmatpush1.bf16.xpose.msra.mxu0 0
      %2547 = vmatprep.subr.bf16.mxu0 0
      %2548 = vmatpush1.bf16.xpose.msra.mxu0 0
      %2549 = vmatprep.subr.bf16.mxu0 0
      %2550 = vmatpush1.bf16.xpose.msra.mxu0 0
      %2551 = vmatprep.subr.bf16.mxu0 0
      %2552 = vmatpush1.bf16.xpose.msra.mxu0 0
      %2553 = vmatprep.subr.bf16.mxu0 0
      %2554 = vmatpush1.bf16.xpose.msra.mxu0 0
      %2555 = vmatprep.subr.bf16.mxu0 0
      %2556 = vmatpush1.bf16.xpose.msra.mxu0 0
      %2557 = vmatprep.subr.bf16.mxu0 0
      %2558 = vmatpush1.bf16.xpose.msra.mxu0 0
      %2559 = vmatprep.subr.bf16.mxu0 0
      %2560 = vmatpush1.bf16.xpose.msra.mxu0 0
      %2561 = vmatprep.subr.bf16.mxu0 0
      %2562 = vmatpush1.bf16.xpose.msra.mxu0 0
      %2563 = vmatprep.mubr.bf16.mxu0 0
      %2564 = vmatmul.mubr.bf16.gmra.mrb[0].mxu0 %v2529
      %v2565 = vpop.f32.mrb[0].mxu0
      %v2566 = vadd.f32 0.0, %v2565
      %v2567 = vpop.f32.mrb[0].mxu0
      %v2568 = vpop.f32.mrb[0].mxu0
      %v2569 = vpop.f32.mrb[0].mxu0
      %2570 = vdwg.mxu0
      %v2571 = vmul.f32 %v2523, 0.35355338
      %v2572 = vmul.f32 %v2566, 0.35355338
      %v2573 = vadd.f32 %v2571, %v613
      %v2574 = vadd.f32 %v2572, %v617
      %v2575 = vsel %vm622, %v2573, -inf
      %2576 = vmax.xlane.f32.xlu0 %v2575
      %v2577 = vpop.xlane.xlu0 %2576
      %v2578 = vsel %vm622, %v2574, -inf
      %2579 = vmax.xlane.f32.xlu0 %v2578
      %v2580 = vpop.xlane.xlu0 %2579
      %v2581 = vsub.f32 %v2573, %v2577
      %v2582 = vsub.f32 %v2574, %v2580
      %v2583 = vmul.f32 %v2581, 1.442695
      %v2584 = vpow.pop %v2583
      %v2585 = vmul.f32 %v2582, 1.442695
      %v2586 = vpow.pop %v2585
      %v2587 = vsel %vm622, %v2584, 0.0
      %2588 = vadd.xlane.f32.xlu0 %v2587
      %v2589 = vpop.xlane.xlu0 %2588
      %v2590 = vsel %vm622, %v2586, 0.0
      %2591 = vadd.xlane.f32.xlu0 %v2590
      %v2592 = vpop.xlane.xlu0 %2591
      %v2593 = vrcp.pop %v2589
      %v2594 = vrcp.pop %v2592
      %v2595 = vmul.f32 %v2584, %v2593
      %v2596 = vmul.f32 %v2586, %v2594
      %v2597 = vpack.c.bf16 %v2595, %v2595
      %v2598 = vpack.c.bf16 %v2596, %v2596
      %v2600 = vsel %vm622, %v2597, 0
      %v2603 = vsel %vm772, %v2483, 0
      %2605 = vmatprep.subr.bf16.mxu0 0
      %2606 = vmatpush1.bf16.msra.mxu0 %v2603
      %2607 = vmatprep.subr.bf16.mxu0 0
      %2608 = vmatpush1.bf16.msra.mxu0 0
      %2609 = vmatprep.subr.bf16.mxu0 0
      %2610 = vmatpush1.bf16.msra.mxu0 0
      %2611 = vmatprep.subr.bf16.mxu0 0
      %2612 = vmatpush1.bf16.msra.mxu0 0
      %2613 = vmatprep.subr.bf16.mxu0 0
      %2614 = vmatpush1.bf16.msra.mxu0 0
      %2615 = vmatprep.subr.bf16.mxu0 0
      %2616 = vmatpush1.bf16.msra.mxu0 0
      %2617 = vmatprep.subr.bf16.mxu0 0
      %2618 = vmatpush1.bf16.msra.mxu0 0
      %2619 = vmatprep.subr.bf16.mxu0 0
      %2620 = vmatpush1.bf16.msra.mxu0 0
      %2621 = vmatprep.subr.bf16.mxu0 0
      %2622 = vmatpush1.bf16.msra.mxu0 0
      %2623 = vmatprep.subr.bf16.mxu0 0
      %2624 = vmatpush1.bf16.msra.mxu0 0
      %2625 = vmatprep.subr.bf16.mxu0 0
      %2626 = vmatpush1.bf16.msra.mxu0 0
      %2627 = vmatprep.subr.bf16.mxu0 0
      %2628 = vmatpush1.bf16.msra.mxu0 0
      %2629 = vmatprep.subr.bf16.mxu0 0
      %2630 = vmatpush1.bf16.msra.mxu0 0
      %2631 = vmatprep.subr.bf16.mxu0 0
      %2632 = vmatpush1.bf16.msra.mxu0 0
      %2633 = vmatprep.subr.bf16.mxu0 0
      %2634 = vmatpush1.bf16.msra.mxu0 0
      %2635 = vmatprep.subr.bf16.mxu0 0
      %2636 = vmatpush1.bf16.msra.mxu0 0
      %2637 = vmatprep.mubr.bf16.mxu0 0
      %2638 = vmatmul.mubr.bf16.gmra.mrb[0].mxu0 %v2600
      %v2639 = vpop.f32.mrb[0].mxu0
      %v2640 = vadd.f32 0.0, %v2639
      %v2641 = vpop.f32.mrb[0].mxu0
      %v2642 = vpop.f32.mrb[0].mxu0
      %v2643 = vpop.f32.mrb[0].mxu0
      %2644 = vdwg.mxu0
      %v2646 = vsel %vm622, %v2598, 0
      %v2649 = vsel %vm772, %v2484, 0
      %2651 = vmatprep.subr.bf16.mxu0 0
      %2652 = vmatpush1.bf16.msra.mxu0 %v2649
      %2653 = vmatprep.subr.bf16.mxu0 0
      %2654 = vmatpush1.bf16.msra.mxu0 0
      %2655 = vmatprep.subr.bf16.mxu0 0
      %2656 = vmatpush1.bf16.msra.mxu0 0
      %2657 = vmatprep.subr.bf16.mxu0 0
      %2658 = vmatpush1.bf16.msra.mxu0 0
      %2659 = vmatprep.subr.bf16.mxu0 0
      %2660 = vmatpush1.bf16.msra.mxu0 0
      %2661 = vmatprep.subr.bf16.mxu0 0
      %2662 = vmatpush1.bf16.msra.mxu0 0
      %2663 = vmatprep.subr.bf16.mxu0 0
      %2664 = vmatpush1.bf16.msra.mxu0 0
      %2665 = vmatprep.subr.bf16.mxu0 0
      %2666 = vmatpush1.bf16.msra.mxu0 0
      %2667 = vmatprep.subr.bf16.mxu0 0
      %2668 = vmatpush1.bf16.msra.mxu0 0
      %2669 = vmatprep.subr.bf16.mxu0 0
      %2670 = vmatpush1.bf16.msra.mxu0 0
      %2671 = vmatprep.subr.bf16.mxu0 0
      %2672 = vmatpush1.bf16.msra.mxu0 0
      %2673 = vmatprep.subr.bf16.mxu0 0
      %2674 = vmatpush1.bf16.msra.mxu0 0
      %2675 = vmatprep.subr.bf16.mxu0 0
      %2676 = vmatpush1.bf16.msra.mxu0 0
      %2677 = vmatprep.subr.bf16.mxu0 0
      %2678 = vmatpush1.bf16.msra.mxu0 0
      %2679 = vmatprep.subr.bf16.mxu0 0
      %2680 = vmatpush1.bf16.msra.mxu0 0
      %2681 = vmatprep.subr.bf16.mxu0 0
      %2682 = vmatpush1.bf16.msra.mxu0 0
      %2683 = vmatprep.mubr.bf16.mxu0 0
      %2684 = vmatmul.mubr.bf16.gmra.mrb[0].mxu0 %v2646
      %v2685 = vpop.f32.mrb[0].mxu0
      %v2686 = vadd.f32 0.0, %v2685
      %v2687 = vpop.f32.mrb[0].mxu0
      %v2688 = vpop.f32.mrb[0].mxu0
      %v2689 = vpop.f32.mrb[0].mxu0
      %2690 = vdwg.mxu0
      %v2691 = vadd.f32 %v2475, %v2640
      %v2692 = vadd.f32 %v2476, %v2686
      %v2693 = vpack.c.bf16 %v2692, %v2691
      %v2694 = vlaneseq
      %v2695 = vshrl.u32 %v2694, 7
      %v2696 = vsub.s32 0, %v2695
      %v2697 = vrot.slane %v1672, %v2696
      %v2699 = vsel %vm249, %v2693, 0
      %2701 = vmatprep.subr.bf16.mxu0 0
      %2702 = vmatpush1.bf16.msra.mxu0 %v1655
      %2703 = vmatprep.subr.bf16.mxu0 0
      %2704 = vmatpush1.bf16.msra.mxu0 %v1656
      %2705 = vmatprep.subr.bf16.mxu0 0
      %2706 = vmatpush1.bf16.msra.mxu0 0
      %2707 = vmatprep.subr.bf16.mxu0 0
      %2708 = vmatpush1.bf16.msra.mxu0 0
      %2709 = vmatprep.subr.bf16.mxu0 0
      %2710 = vmatpush1.bf16.msra.mxu0 0
      %2711 = vmatprep.subr.bf16.mxu0 0
      %2712 = vmatpush1.bf16.msra.mxu0 0
      %2713 = vmatprep.subr.bf16.mxu0 0
      %2714 = vmatpush1.bf16.msra.mxu0 0
      %2715 = vmatprep.subr.bf16.mxu0 0
      %2716 = vmatpush1.bf16.msra.mxu0 0
      %2717 = vmatprep.subr.bf16.mxu0 0
      %2718 = vmatpush1.bf16.msra.mxu0 0
      %2719 = vmatprep.subr.bf16.mxu0 0
      %2720 = vmatpush1.bf16.msra.mxu0 0
      %2721 = vmatprep.subr.bf16.mxu0 0
      %2722 = vmatpush1.bf16.msra.mxu0 0
      %2723 = vmatprep.subr.bf16.mxu0 0
      %2724 = vmatpush1.bf16.msra.mxu0 0
      %2725 = vmatprep.subr.bf16.mxu0 0
      %2726 = vmatpush1.bf16.msra.mxu0 0
      %2727 = vmatprep.subr.bf16.mxu0 0
      %2728 = vmatpush1.bf16.msra.mxu0 0
      %2729 = vmatprep.subr.bf16.mxu0 0
      %2730 = vmatpush1.bf16.msra.mxu0 0
      %2731 = vmatprep.subr.bf16.mxu0 0
      %2732 = vmatpush1.bf16.msra.mxu0 0
      %2733 = vmatprep.mubr.bf16.mxu0 0
      %2734 = vmatmul.mubr.bf16.gmra.mrb[0].mxu0 %v2699
      %v2735 = vpop.f32.mrb[0].mxu0
      %v2736 = vadd.f32 %v2697, %v2735
      %v2737 = vpop.f32.mrb[0].mxu0
      %v2738 = vpop.f32.mrb[0].mxu0
      %v2739 = vadd.f32 %v2697, %v2738
      %v2740 = vpop.f32.mrb[0].mxu0
      %2741 = vdwg.mxu0
      %v2742 = vadd.f32 %v2736, %v1630
      %v2743 = vadd.f32 %v2739, %v1631
      %v2744 = vsel %vm249, %v2742, 0.0
      %2745 = vadd.xlane.f32.xlu0 %v2744
      %v2746 = vpop.xlane.xlu0 %2745
      %v2747 = vsel %vm249, %v2743, 0.0
      %2748 = vadd.xlane.f32.xlu0 %v2747
      %v2749 = vpop.xlane.xlu0 %2748
      %v2750 = vmul.f32 %v2746, %v256
      %v2751 = vmul.f32 %v2749, %v256
      %v2752 = vsub.f32 %v2742, %v2750
      %v2753 = vsub.f32 %v2743, %v2751
      %v2754 = vmul.f32 %v2752, %v2752
      %v2755 = vmul.f32 %v2753, %v2753
      %v2756 = vsel %vm249, %v2754, 0.0
      %2757 = vadd.xlane.f32.xlu0 %v2756
      %v2758 = vpop.xlane.xlu0 %2757
      %v2759 = vsel %vm249, %v2755, 0.0
      %2760 = vadd.xlane.f32.xlu0 %v2759
      %v2761 = vpop.xlane.xlu0 %2760
      %v2762 = vmul.f32 %v2758, %v256
      %v2763 = vmul.f32 %v2761, %v256
      %v2764 = vadd.f32 %v2762, 1e-12
      %v2765 = vadd.f32 %v2763, 1e-12
      %v2766 = vrsqrt.pop %v2764
      %v2767 = vrsqrt.pop %v2765
      %v2768 = vmul.f32 %v2752, %v2766
      %v2769 = vmul.f32 %v2753, %v2767
      %v2770 = vlaneseq
      %v2771 = vshrl.u32 %v2770, 7
      %v2772 = vsub.s32 0, %v2771
      %v2773 = vrot.slane %v1673, %v2772
      %v2774 = vmul.f32 %v2768, %v2773
      %v2775 = vmul.f32 %v2769, %v2773
      %v2776 = vlaneseq
      %v2777 = vshrl.u32 %v2776, 7
      %v2778 = vsub.s32 0, %v2777
      %v2779 = vrot.slane %v1674, %v2778
      %v2780 = vadd.f32 %v2774, %v2779
      %v2781 = vadd.f32 %v2775, %v2779
      %v2782 = vpack.c.bf16 %v2781, %v2780
      %v2783 = vlaneseq
      %v2784 = vshrl.u32 %v2783, 7
      %v2785 = vsub.s32 0, %v2784
      %v2786 = vrot.slane %v1685, %v2785
      %v2788 = vsel %vm249, %v2782, 0
      %2790 = vmatprep.subr.bf16.mxu0 0
      %2791 = vmatpush1.bf16.msra.mxu0 %v1683
      %2792 = vmatprep.subr.bf16.mxu0 0
      %2793 = vmatpush1.bf16.msra.mxu0 %v1684
      %2794 = vmatprep.subr.bf16.mxu0 0
      %2795 = vmatpush1.bf16.msra.mxu0 0
      %2796 = vmatprep.subr.bf16.mxu0 0
      %2797 = vmatpush1.bf16.msra.mxu0 0
      %2798 = vmatprep.subr.bf16.mxu0 0
      %2799 = vmatpush1.bf16.msra.mxu0 0
      %2800 = vmatprep.subr.bf16.mxu0 0
      %2801 = vmatpush1.bf16.msra.mxu0 0
      %2802 = vmatprep.subr.bf16.mxu0 0
      %2803 = vmatpush1.bf16.msra.mxu0 0
      %2804 = vmatprep.subr.bf16.mxu0 0
      %2805 = vmatpush1.bf16.msra.mxu0 0
      %2806 = vmatprep.subr.bf16.mxu0 0
      %2807 = vmatpush1.bf16.msra.mxu0 0
      %2808 = vmatprep.subr.bf16.mxu0 0
      %2809 = vmatpush1.bf16.msra.mxu0 0
      %2810 = vmatprep.subr.bf16.mxu0 0
      %2811 = vmatpush1.bf16.msra.mxu0 0
      %2812 = vmatprep.subr.bf16.mxu0 0
      %2813 = vmatpush1.bf16.msra.mxu0 0
      %2814 = vmatprep.subr.bf16.mxu0 0
      %2815 = vmatpush1.bf16.msra.mxu0 0
      %2816 = vmatprep.subr.bf16.mxu0 0
      %2817 = vmatpush1.bf16.msra.mxu0 0
      %2818 = vmatprep.subr.bf16.mxu0 0
      %2819 = vmatpush1.bf16.msra.mxu0 0
      %2820 = vmatprep.subr.bf16.mxu0 0
      %2821 = vmatpush1.bf16.msra.mxu0 0
      %2822 = vmatprep.mubr.bf16.mxu0 0
      %2823 = vmatmul.mubr.bf16.gmra.mrb[0].mxu0 %v2788
      %v2824 = vpop.f32.mrb[0].mxu0
      %v2825 = vadd.f32 %v2786, %v2824
      %v2826 = vpop.f32.mrb[0].mxu0
      %v2827 = vpop.f32.mrb[0].mxu0
      %v2828 = vadd.f32 %v2786, %v2827
      %v2829 = vpop.f32.mrb[0].mxu0
      %2830 = vdwg.mxu0
      %v2831 = vmul.f32 %v2825, 0.5
      %v2832 = vmul.f32 %v2828, 0.5
      %v2833 = vmul.f32 %v2825, 0.044715
      %v2834 = vmul.f32 %v2828, 0.044715
      %v2835 = vmul.f32 %v2833, %v2825
      %v2836 = vmul.f32 %v2834, %v2828
      %v2837 = vmul.f32 %v2835, %v2825
      %v2838 = vmul.f32 %v2836, %v2828
      %v2839 = vadd.f32 %v2825, %v2837
      %v2840 = vadd.f32 %v2828, %v2838
      %v2841 = vmul.f32 %v2839, 0.7978846
      %v2842 = vmul.f32 %v2840, 0.7978846
      %v2843 = vtanh.pop %v2841
      %v2844 = vtanh.pop %v2842
      %v2845 = vadd.f32 %v2843, 1.0
      %v2846 = vadd.f32 %v2844, 1.0
      %v2847 = vmul.f32 %v2831, %v2845
      %v2848 = vmul.f32 %v2832, %v2846
      %v2849 = vpack.c.bf16 %v2848, %v2847
      %v2850 = vlaneseq
      %v2851 = vshrl.u32 %v2850, 7
      %v2852 = vsub.s32 0, %v2851
      %v2853 = vrot.slane %v1675, %v2852
      %v2855 = vsel %vm1547, %v2849, 0
      %2857 = vmatprep.subr.bf16.mxu0 0
      %2858 = vmatpush1.bf16.msra.mxu0 %v1665
      %2859 = vmatprep.subr.bf16.mxu0 0
      %2860 = vmatpush1.bf16.msra.mxu0 %v1666
      %2861 = vmatprep.subr.bf16.mxu0 0
      %2862 = vmatpush1.bf16.msra.mxu0 %v1667
      %2863 = vmatprep.subr.bf16.mxu0 0
      %2864 = vmatpush1.bf16.msra.mxu0 %v1668
      %2865 = vmatprep.subr.bf16.mxu0 0
      %2866 = vmatpush1.bf16.msra.mxu0 0
      %2867 = vmatprep.subr.bf16.mxu0 0
      %2868 = vmatpush1.bf16.msra.mxu0 0
      %2869 = vmatprep.subr.bf16.mxu0 0
      %2870 = vmatpush1.bf16.msra.mxu0 0
      %2871 = vmatprep.subr.bf16.mxu0 0
      %2872 = vmatpush1.bf16.msra.mxu0 0
      %2873 = vmatprep.subr.bf16.mxu0 0
      %2874 = vmatpush1.bf16.msra.mxu0 0
      %2875 = vmatprep.subr.bf16.mxu0 0
      %2876 = vmatpush1.bf16.msra.mxu0 0
      %2877 = vmatprep.subr.bf16.mxu0 0
      %2878 = vmatpush1.bf16.msra.mxu0 0
      %2879 = vmatprep.subr.bf16.mxu0 0
      %2880 = vmatpush1.bf16.msra.mxu0 0
      %2881 = vmatprep.subr.bf16.mxu0 0
      %2882 = vmatpush1.bf16.msra.mxu0 0
      %2883 = vmatprep.subr.bf16.mxu0 0
      %2884 = vmatpush1.bf16.msra.mxu0 0
      %2885 = vmatprep.subr.bf16.mxu0 0
      %2886 = vmatpush1.bf16.msra.mxu0 0
      %2887 = vmatprep.subr.bf16.mxu0 0
      %2888 = vmatpush1.bf16.msra.mxu0 0
      %2889 = vmatprep.mubr.bf16.mxu0 0
      %2890 = vmatmul.mubr.bf16.gmra.mrb[0].mxu0 %v2855
      %v2891 = vpop.f32.mrb[0].mxu0
      %v2892 = vadd.f32 %v2853, %v2891
      %v2893 = vpop.f32.mrb[0].mxu0
      %v2894 = vpop.f32.mrb[0].mxu0
      %v2895 = vadd.f32 %v2853, %v2894
      %v2896 = vpop.f32.mrb[0].mxu0
      %2897 = vdwg.mxu0
      %v2898 = vadd.f32 %v2892, %v2780
      %v2899 = vadd.f32 %v2895, %v2781
      %v2900 = vsel %vm249, %v2898, 0.0
      %2901 = vadd.xlane.f32.xlu0 %v2900
      %v2902 = vpop.xlane.xlu0 %2901
      %v2903 = vsel %vm249, %v2899, 0.0
      %2904 = vadd.xlane.f32.xlu0 %v2903
      %v2905 = vpop.xlane.xlu0 %2904
      %v2906 = vmul.f32 %v2902, %v256
      %v2907 = vmul.f32 %v2905, %v256
      %v2908 = vsub.f32 %v2898, %v2906
      %v2909 = vsub.f32 %v2899, %v2907
      %v2910 = vmul.f32 %v2908, %v2908
      %v2911 = vmul.f32 %v2909, %v2909
      %v2912 = vsel %vm249, %v2910, 0.0
      %2913 = vadd.xlane.f32.xlu0 %v2912
      %v2914 = vpop.xlane.xlu0 %2913
      %v2915 = vsel %vm249, %v2911, 0.0
      %2916 = vadd.xlane.f32.xlu0 %v2915
      %v2917 = vpop.xlane.xlu0 %2916
      %v2918 = vmul.f32 %v2914, %v256
      %v2919 = vmul.f32 %v2917, %v256
      %v2920 = vadd.f32 %v2918, 1e-12
      %v2921 = vadd.f32 %v2919, 1e-12
      %v2922 = vrsqrt.pop %v2920
      %v2923 = vrsqrt.pop %v2921
      %v2924 = vmul.f32 %v2908, %v2922
      %v2925 = vmul.f32 %v2909, %v2923
      %v2926 = vlaneseq
      %v2927 = vshrl.u32 %v2926, 7
      %v2928 = vsub.s32 0, %v2927
      %v2929 = vrot.slane %v1676, %v2928
      %v2930 = vmul.f32 %v2924, %v2929
      %v2931 = vmul.f32 %v2925, %v2929
      %v2932 = vlaneseq
      %v2933 = vshrl.u32 %v2932, 7
      %v2934 = vsub.s32 0, %v2933
      %v2935 = vrot.slane %v1677, %v2934
      %v2936 = vadd.f32 %v2930, %v2935
      %v2937 = vadd.f32 %v2931, %v2935
      %v2938 = vld [vmem:[%s4 + $0x2] sm:$0x1]
      %v2939 = vld [vmem:[%s4 + $0x3] sm:$0x1]
      %v2940 = vmul.f32 %v2936, %v2938
      %vm2941 = vcmask 253952
      %v2942 = vsel %vm2941, %v2940, 0.0
      %2943 = vadd.xlane.f32.xlu0 %v2942
      %v2944 = vpop.xlane.xlu0 %2943
      %v2945 = vadd.f32 %v2944, %v2939
      %v2946 = vmul.f32 %v2937, %v2938
      %v2947 = vsel %vm2941, %v2946, 0.0
      %2948 = vadd.xlane.f32.xlu0 %v2947
      %v2949 = vpop.xlane.xlu0 %2948
      %v2950 = vadd.f32 %v2949, %v2939
      %2952 = vrot.lane.b32.xlu0 %v2950, 1
      %v2953 = vpop.permute.xlu0 %2952
      %vm2955 = vcmask 7168
      %v2956 = vsel %vm2955, %v2945, %v2953
      %2957 = vst [vmem:[%s243] sm:$0xff] 0.0
      %vm2958 = vcmask 8192
      %2959 = vst.msk [vmem:[%s243] sm:$0x1] %vm2958, %v2956
      %p2960 = scmp.lt.s32.totalorder %s16, 1
      %s2961 = scalar_select %p2960, %s16, 1
      %s2962 = smul.addr %s2961, 8
      %s2963 = scalar_lea.vmem %s5, %s2962
      // Predicated region
      $region41: #{vanilla_bert_ranker_forward.1} parent=39 // pred_check
        %p2964 = pneg %p149
      $region42: #{vanilla_bert_ranker_forward.1} parent=39 // pred_check_branch
        %2966 = sbr.rel (%p2964) target = $region44
      $region43: #{vanilla_bert_ranker_forward.1} parent=39 // pred_region
        _
      $region44: #{vanilla_bert_ranker_forward.1} parent=39 // pred_fallthru
        _
    $region40: #{vanilla_bert_ranker_forward.1} parent=5 // pred_fallthru
      _
    %p2967 = scmp.le.s32.totalorder 2, %s11
    // Predicated region
    $region45: #{vanilla_bert_ranker_forward.1} parent=5 // pred_check
      %p2968 = pneg %p2967
    $region46: #{vanilla_bert_ranker_forward.1} parent=5 // pred_check_branch
      %2970 = sbr.rel (%p2968) target = $region48
    $region47: #{vanilla_bert_ranker_forward.1} parent=5 // pred_region
      %s2971 = ssub.s32 %s11, 2
      // Predicated region
      $region49: #{vanilla_bert_ranker_forward.1} parent=47 // pred_check
        %p2972 = pneg %p155
      $region50: #{vanilla_bert_ranker_forward.1} parent=47 // pred_check_branch
        %2974 = sbr.rel (%p2972) target = $region52
      $region51: #{vanilla_bert_ranker_forward.1} parent=47 // pred_region
        %p2975 = scmp.lt.s32.totalorder %s17, 1
        %s2976 = scalar_select %p2975, %s17, 1
        %s2977 = smul.addr %s2976, 8
        %s2978 = scalar_lea.vmem %s5, %s2977
      $region52: #{vanilla_bert_ranker_forward.1} parent=47 // pred_fallthru
        _
    $region48: #{vanilla_bert_ranker_forward.1} parent=5 // pred_fallthru
      _
  $region6: #{vanilla_bert_ranker_forward.1} parent=0 // loop_footer
    %s15 = sadd.s32 1, %s11
  $region7: #{vanilla_bert_ranker_forward.1} parent=0 // loop_footer_branch
    %10 = sbr.rel target = $region3
  $region8: #{vanilla_bert_ranker_forward.1} parent=0 // loop_exit
    _

</llo_original>
